<compile_context>
chip_gen: v5e
topology: v5e:2x2
jax: 0.10.0
libtpu: 0.0.40
codegen_flags: <defaults>
</compile_context>

<pallas_src>
from functools import partial

import jax
import jax.numpy as jnp
from jax import lax
from jax.experimental import pallas as pl
from jax.experimental.pallas import tpu as pltpu


def _cbam_kernel(x_ref, w1t_ref, b1_ref, w2t_ref, b2_ref, colmask_ref,
                 wconv_ref, bn_ref, o_ref, cp_ref, *, W, pad):
    Bt, C, P = x_ref.shape
    B2 = 2 * Bt
    x = x_ref[...].astype(jnp.float32)                 # (Bt, C, P), P = H*W

    # ---------------- ChannelGate ----------------
    avg = jnp.mean(x, axis=2)                          # (Bt, C)
    mx = jnp.max(x, axis=2)                            # (Bt, C)

    def mlp(p):
        # Weights arrive in bf16 when C >= 128 (wrapper decision); operands
        # are cast to match, accumulation stays f32.
        hh = jnp.dot(p.astype(w1t_ref.dtype), w1t_ref[...],
                     preferred_element_type=jnp.float32)
        hh = jnp.maximum(hh + b1_ref[...], 0.0)        # (rows, C//r)
        return jnp.dot(hh.astype(w2t_ref.dtype), w2t_ref[...],
                       preferred_element_type=jnp.float32) + b2_ref[...]

    if Bt % 8 == 0:
        # Fused avg/max MLP: stack the two pooled stats in registers
        # (sublane-aligned concat, no scratch round trip).
        att = mlp(jnp.concatenate([avg, mx], axis=0))  # (2*Bt, C)
        att_sum = att[:Bt, :] + att[Bt:, :]
    else:
        # Unaligned sublane stacking avoided: two small MLP calls instead.
        att_sum = mlp(avg) + mlp(mx)
    # TODO(synk): at production channel counts, batch all 2*B pooled rows into
    #             one MLP matmul (separate phase) to fill MXU rows.
    c_scale = jax.nn.sigmoid(att_sum)                  # (Bt, C)
    xc = x * c_scale[:, :, None]                       # (Bt, C, P)

    # ---------------- SpatialGate ----------------
    cp_max = jnp.max(xc, axis=1)                       # (Bt, P)
    cp_mean = jnp.mean(xc, axis=1)                     # (Bt, P)

    # Packed, zero-bordered scratch: rows [0, Bt) = channel-max map, rows
    # [Bt, 2Bt) = channel-mean map; each row is [0]*pad ++ cp ++ [0]*pad.
    # Borders rewritten each step so the kernel stays correct when the
    # parallel grid axis is split across TensorCores.
    cp_ref[:, 0:pad] = jnp.zeros((B2, pad), jnp.float32)
    cp_ref[:, pad + P:] = jnp.zeros((B2, pad), jnp.float32)
    cp_ref[0:Bt, pad:pad + P] = cp_max
    cp_ref[Bt:B2, pad:pad + P] = cp_mean

    # Per-row channel selector for the packed layout (hoisted once).
    row = lax.broadcasted_iota(jnp.int32, (B2, 1), 0)
    m_max = (row < Bt).astype(jnp.float32)             # 1 for max-rows
    m_mean = 1.0 - m_max                               # 1 for mean-rows

    # 7x7 "same" conv on the flattened layout: flat shift s = dy*W + dx hits
    # element (y+dy, x+dx) whenever column x+dx is in range; rows that run out
    # of range land in the zero border. A per-dx column mask removes the
    # row-wrap terms, reproducing zero padding exactly. Each tap reads the
    # packed (2*Bt, P) window ONCE and is weighted by a per-row column, so the
    # multiply/adds run on fully occupied vregs; 7 per-dx accumulators expose
    # ILP across the VALU slots.
    parts = []
    for j in range(7):                                 # dx = j - 3
        dx = j - 3
        acc = jnp.zeros((B2, P), jnp.float32)
        for i in range(7):                             # dy = i - 3
            t = i * 7 + j
            lo = pad + (i - 3) * W + dx
            w_col = m_max * wconv_ref[t] + m_mean * wconv_ref[49 + t]
            acc = acc + w_col * cp_ref[:, lo:lo + P]
        parts.append(acc * colmask_ref[j:j + 1, :])
    conv2 = ((parts[0] + parts[1]) + (parts[2] + parts[3])) + \
            ((parts[4] + parts[5]) + parts[6])         # (2*Bt, P)
    conv = conv2[0:Bt, :] + conv2[Bt:B2, :]            # fold max/mean halves

    # BatchNorm (eval mode) folded into scale/shift, then sigmoid.
    s_scale = jax.nn.sigmoid(conv * bn_ref[0] + bn_ref[1])   # (Bt, P)

    # Lane-dense store; reuse the already-materialized xc (no x_ref re-read).
    o_ref[...] = (xc * s_scale[:, None, :]).astype(o_ref.dtype)


def _tpu_generation():
    """Best-effort (TensorCores per device, VMEM bytes); safe fallbacks."""
    kind = ""
    try:
        kind = (jax.devices()[0].device_kind or "").lower()
    except Exception:
        pass
    vmem = 0
    try:
        vmem = int(getattr(pltpu.get_tpu_info(), "vmem_capacity_bytes", 0) or 0)
    except Exception:
        vmem = 0
    if "v7" in kind:
        cores, dflt = 2, 64 << 20
    elif "v5p" in kind or "v4" in kind:
        cores, dflt = 2, 128 << 20
    elif "v5" in kind or "v6" in kind:
        cores, dflt = 1, 128 << 20
    else:
        cores, dflt = 1, 64 << 20
    return cores, (vmem if vmem > 0 else dflt)


def _choose_batch_block(B, C, P, itemsize, num_cores, vmem_cap):
    """Images per grid step: on single-TC chips take the largest divisor that
    fits the per-step budget (typically one step); on multi-TC chips leave
    exactly num_cores steps so every TensorCore gets one block."""
    per_step_bytes = (12 << 20) if vmem_cap >= (96 << 20) else (6 << 20)
    per_img = max(C * P * itemsize, 1)
    cap = max(1, per_step_bytes // per_img)
    divs = [d for d in range(1, B + 1) if B % d == 0 and d <= cap] or [1]
    pref = [d for d in divs if B // d >= num_cores]
    return max(pref) if pref else max(divs)


def cbam_forward(x, w1, b1, w2, b2, wconv, bn_gamma, bn_beta, bn_mean, bn_var,
                 eps=1e-5):
    """x: (B, C, H, W). w1: (C//r, C), b1: (C//r,), w2: (C, C//r), b2: (C,),
    wconv: (1, 2, 7, 7). BatchNorm params are running stats (eval mode)."""
    B, C, H, W = x.shape
    P = H * W
    Ch = w1.shape[0]

    # Lane-dense layout: flatten spatial dims onto the lane axis.
    x_flat = x.reshape(B, C, P)

    # MLP weights transposed for row-matrix @ matrix; bf16 when C is large
    # enough for the MXU native path to matter.
    mlp_dtype = jnp.bfloat16 if C >= 128 else jnp.float32
    w1t = jnp.asarray(w1, jnp.float32).T.astype(mlp_dtype)    # (C, Ch)
    w2t = jnp.asarray(w2, jnp.float32).T.astype(mlp_dtype)    # (Ch, C)
    b1r = jnp.asarray(b1, jnp.float32).reshape(1, Ch)
    b2r = jnp.asarray(b2, jnp.float32).reshape(1, C)

    wconv_flat = jnp.asarray(wconv, jnp.float32).reshape(-1)  # (98,) c*49+i*7+j

    bn_scale = jnp.asarray(bn_gamma, jnp.float32) / jnp.sqrt(
        jnp.asarray(bn_var, jnp.float32) + eps)
    bn_bias = (jnp.asarray(bn_beta, jnp.float32)
               - jnp.asarray(bn_mean, jnp.float32) * bn_scale)
    bn_params = jnp.stack([bn_scale.reshape(()), bn_bias.reshape(())])  # (2,)

    # Column-validity masks for the 7 horizontal tap offsets.
    cols = jnp.arange(P, dtype=jnp.int32) % W
    colmask = jnp.stack(
        [((cols + dx >= 0) & (cols + dx < W)).astype(jnp.float32)
         for dx in range(-3, 4)], axis=0)                     # (7, P)

    num_cores, vmem_cap = _tpu_generation()
    bt = _choose_batch_block(B, C, P, x.dtype.itemsize, num_cores, vmem_cap)
    grid = (B // bt,)

    # Zero border wide enough for the largest flat tap offset (3*W + 3),
    # rounded up to 128 lanes so the interior store stays lane-aligned.
    pad = ((3 * W + 3 + 127) // 128) * 128
    L = pad + P + pad

    # VMEM budget: in+out blocks double-buffered + packed-pool scratch +
    # weights/masks + margin, clamped to [32 MiB, 3/4 of physical VMEM].
    block_bytes = bt * C * P * x.dtype.itemsize
    need = 4 * block_bytes + 2 * bt * L * 4 + (1 << 20) + (8 << 20)
    vmem_limit = int(min(max(need, 32 << 20), (vmem_cap * 3) // 4))

    out_flat = pl.pallas_call(
        partial(_cbam_kernel, W=W, pad=pad),
        out_shape=jax.ShapeDtypeStruct((B, C, P), x.dtype),
        grid_spec=pltpu.PrefetchScalarGridSpec(
            num_scalar_prefetch=0,
            grid=grid,
            in_specs=[
                pl.BlockSpec((bt, C, P), lambda b: (b, 0, 0)),
                pl.BlockSpec((C, Ch), lambda b: (0, 0)),
                pl.BlockSpec((1, Ch), lambda b: (0, 0)),
                pl.BlockSpec((Ch, C), lambda b: (0, 0)),
                pl.BlockSpec((1, C), lambda b: (0, 0)),
                pl.BlockSpec((7, P), lambda b: (0, 0)),
                pl.BlockSpec(memory_space=pltpu.MemorySpace.SMEM),   # wconv
                pl.BlockSpec(memory_space=pltpu.MemorySpace.SMEM),   # bn
            ],
            out_specs=pl.BlockSpec((bt, C, P), lambda b: (b, 0, 0)),
            scratch_shapes=[
                pltpu.VMEM((2 * bt, L), jnp.float32),  # packed zero-bordered pools
            ],
        ),
        compiler_params=pltpu.CompilerParams(
            dimension_semantics=("parallel",),
            vmem_limit_bytes=vmem_limit),
    )(x_flat, w1t, b1r, w2t, b2r, colmask, wconv_flat, bn_params)

    return out_flat.reshape(B, C, H, W)


def cbam_reference(x, w1, b1, w2, b2, wconv, bn_gamma, bn_beta, bn_mean,
                   bn_var, eps=1e-5):
    """Pure-JAX reference matching the PyTorch CBAM forward (eval mode)."""
    avg = x.mean(axis=(2, 3))                          # (B, C)
    mx = x.max(axis=(2, 3))                            # (B, C)

    def mlp(p):
        return jnp.maximum(p @ w1.T + b1, 0.0) @ w2.T + b2

    att = mlp(avg) + mlp(mx)
    cs = jax.nn.sigmoid(att)[:, :, None, None]
    xc = x * cs

    cp = jnp.stack([xc.max(axis=1), xc.mean(axis=1)], axis=1)   # (B, 2, H, W)
    conv = jax.lax.conv_general_dilated(
        cp, wconv, window_strides=(1, 1), padding=((3, 3), (3, 3)),
        dimension_numbers=('NCHW', 'OIHW', 'NCHW'))             # (B, 1, H, W)
    scale = bn_gamma / jnp.sqrt(bn_var + eps)
    bias = bn_beta - bn_mean * scale
    ss = jax.nn.sigmoid(conv * scale + bias)
    return xc * ss


if __name__ == "__main__":
    # Small shapes consistent with CBAM(gate_channels=C, reduction_ratio=4).
    B, C, H, W = 8, 32, 16, 16
    reduction_ratio = 4
    Ch = C // reduction_ratio

    key = jax.random.PRNGKey(0)
    kx, k1, kb1, k2, kb2, kc = jax.random.split(key, 6)

    x = jax.random.normal(kx, (B, C, H, W), jnp.float32)

    # Deterministic synthetic parameters (not a checkpoint load).
    w1 = 0.1 * jax.random.normal(k1, (Ch, C), jnp.float32)   # Linear(C -> Ch)
    b1 = 0.1 * jax.random.normal(kb1, (Ch,), jnp.float32)
    w2 = 0.1 * jax.random.normal(k2, (C, Ch), jnp.float32)   # Linear(Ch -> C)
    b2 = 0.1 * jax.random.normal(kb2, (C,), jnp.float32)
    wconv = 0.1 * jax.random.normal(kc, (1, 2, 7, 7), jnp.float32)

    # BatchNorm2d(1) fresh-init, eval mode.
    bn_gamma = jnp.ones((), jnp.float32)
    bn_beta = jnp.zeros((), jnp.float32)
    bn_mean = jnp.zeros((), jnp.float32)
    bn_var = jnp.ones((), jnp.float32)

    out = cbam_forward(x, w1, b1, w2, b2, wconv,
                       bn_gamma, bn_beta, bn_mean, bn_var)
    out = jax.block_until_ready(out)
    assert out.shape == (B, C, H, W) and out.dtype == x.dtype

    ref = jax.block_until_ready(
        cbam_reference(x, w1, b1, w2, b2, wconv,
                       bn_gamma, bn_beta, bn_mean, bn_var))
    max_err = float(jnp.max(jnp.abs(out - ref)))
    assert max_err < 1e-4, f"max abs error vs reference: {max_err}"

    print("KERNEL_OK")
</pallas_src>

<mosaic_0001>
module attributes {stable_mosaic.version = 11 : i64} {
  func.func @_cbam_kernel(%arg0: i32, %arg1: memref<8x32x256xf32, #tpu.memory_space<vmem>>, %arg2: memref<32x8xf32, #tpu.memory_space<vmem>>, %arg3: memref<1x8xf32, #tpu.memory_space<vmem>>, %arg4: memref<8x32xf32, #tpu.memory_space<vmem>>, %arg5: memref<1x32xf32, #tpu.memory_space<vmem>>, %arg6: memref<7x256xf32, #tpu.memory_space<vmem>>, %arg7: memref<98xf32, #tpu.memory_space<smem>>, %arg8: memref<2xf32, #tpu.memory_space<smem>>, %arg9: memref<8x32x256xf32, #tpu.memory_space<vmem>>, %arg10: memref<16x512xf32, #tpu.memory_space<vmem>>) attributes {dimension_semantics = [#tpu.dimension_semantics<parallel>], iteration_bounds = array<i64: 1>, scalar_prefetch = 0 : i64, scratch_operands = 1 : i64, tpu.core_type = #tpu.core_type<tc>, window_params = [{transform_indices = @transform_0, window_bounds = array<i64: 8, 32, 256>}, {pipeline_mode = #tpu.pipeline_mode<synchronous>, transform_indices = @transform_1, window_bounds = array<i64: 32, 8>}, {pipeline_mode = #tpu.pipeline_mode<synchronous>, transform_indices = @transform_2, window_bounds = array<i64: 1, 8>}, {pipeline_mode = #tpu.pipeline_mode<synchronous>, transform_indices = @transform_3, window_bounds = array<i64: 8, 32>}, {pipeline_mode = #tpu.pipeline_mode<synchronous>, transform_indices = @transform_4, window_bounds = array<i64: 1, 32>}, {pipeline_mode = #tpu.pipeline_mode<synchronous>, transform_indices = @transform_5, window_bounds = array<i64: 7, 256>}, {transform_indices = @transform_6, window_bounds = array<i64: 98>}, {transform_indices = @transform_7, window_bounds = array<i64: 2>}, {transform_indices = @transform_8, window_bounds = array<i64: 8, 32, 256>}]} {
    %c0 = arith.constant 0 : index
    %c0_0 = arith.constant 0 : index
    %c0_1 = arith.constant 0 : index
    %0 = vector.load %arg1[%c0, %c0_0, %c0_1] : memref<8x32x256xf32, #tpu.memory_space<vmem>>, vector<8x32x256xf32>
    %cst = arith.constant dense<0.000000e+00> : vector<8x32xf32>
    %1 = vector.multi_reduction <add>, %0, %cst [2] : vector<8x32x256xf32> to vector<8x32xf32>
    %cst_2 = arith.constant 2.560000e+02 : f32
    %2 = vector.broadcast %cst_2 : f32 to vector<8x32xf32>
    %3 = arith.divf %1, %2 : vector<8x32xf32>
    %cst_3 = arith.constant dense<0xFF800000> : vector<8x32xf32>
    %4 = vector.multi_reduction <maximumf>, %0, %cst_3 [2] : vector<8x32x256xf32> to vector<8x32xf32>
    %5 = tpu.concatenate %3, %4 in 0 : vector<8x32xf32>, vector<8x32xf32> -> vector<16x32xf32>
    %c0_4 = arith.constant 0 : index
    %c0_5 = arith.constant 0 : index
    %6 = vector.load %arg2[%c0_4, %c0_5] : memref<32x8xf32, #tpu.memory_space<vmem>>, vector<32x8xf32>
    %cst_6 = arith.constant dense<0.000000e+00> : vector<16x8xf32>
    %7 = tpu.matmul %5, %6, %cst_6 {dimension_numbers = #tpu.dot_dimension_numbers<[1], [0], [0], [1], [0, 0, 1, 1], [], []>} : vector<16x32xf32>, vector<32x8xf32>, vector<16x8xf32> -> vector<16x8xf32>
    %c0_7 = arith.constant 0 : index
    %c0_8 = arith.constant 0 : index
    %8 = vector.load %arg3[%c0_7, %c0_8] : memref<1x8xf32, #tpu.memory_space<vmem>>, vector<1x8xf32>
    %9 = vector.broadcast %8 : vector<1x8xf32> to vector<16x8xf32>
    %10 = arith.addf %7, %9 : vector<16x8xf32>
    %cst_9 = arith.constant 0.000000e+00 : f32
    %11 = vector.broadcast %cst_9 : f32 to vector<16x8xf32>
    %12 = arith.maximumf %10, %11 : vector<16x8xf32>
    %c0_10 = arith.constant 0 : index
    %c0_11 = arith.constant 0 : index
    %13 = vector.load %arg4[%c0_10, %c0_11] : memref<8x32xf32, #tpu.memory_space<vmem>>, vector<8x32xf32>
    %cst_12 = arith.constant dense<0.000000e+00> : vector<16x32xf32>
    %14 = tpu.matmul %12, %13, %cst_12 {dimension_numbers = #tpu.dot_dimension_numbers<[1], [0], [0], [1], [0, 0, 1, 1], [], []>} : vector<16x8xf32>, vector<8x32xf32>, vector<16x32xf32> -> vector<16x32xf32>
    %c0_13 = arith.constant 0 : index
    %c0_14 = arith.constant 0 : index
    %15 = vector.load %arg5[%c0_13, %c0_14] : memref<1x32xf32, #tpu.memory_space<vmem>>, vector<1x32xf32>
    %16 = vector.broadcast %15 : vector<1x32xf32> to vector<16x32xf32>
    %17 = arith.addf %14, %16 : vector<16x32xf32>
    %18 = vector.extract_strided_slice %17 {offsets = [0, 0], sizes = [8, 32], strides = [1, 1]} : vector<16x32xf32> to vector<8x32xf32>
    %19 = vector.extract_strided_slice %17 {offsets = [8, 0], sizes = [8, 32], strides = [1, 1]} : vector<16x32xf32> to vector<8x32xf32>
    %20 = arith.addf %18, %19 : vector<8x32xf32>
    %21 = arith.negf %20 : vector<8x32xf32>
    %22 = math.exp %21 : vector<8x32xf32>
    %cst_15 = arith.constant 1.000000e+00 : f32
    %23 = vector.broadcast %cst_15 : f32 to vector<8x32xf32>
    %24 = arith.addf %23, %22 : vector<8x32xf32>
    %25 = arith.divf %23, %24 : vector<8x32xf32>
    %26 = vector.shape_cast %25 : vector<8x32xf32> to vector<8x32x1xf32>
    %27 = vector.broadcast %26 : vector<8x32x1xf32> to vector<8x32x256xf32>
    %28 = arith.mulf %0, %27 : vector<8x32x256xf32>
    %cst_16 = arith.constant dense<0xFF800000> : vector<8x256xf32>
    %29 = vector.multi_reduction <maximumf>, %28, %cst_16 [1] : vector<8x32x256xf32> to vector<8x256xf32>
    %cst_17 = arith.constant dense<0.000000e+00> : vector<8x256xf32>
    %30 = vector.multi_reduction <add>, %28, %cst_17 [1] : vector<8x32x256xf32> to vector<8x256xf32>
    %cst_18 = arith.constant 3.200000e+01 : f32
    %31 = vector.broadcast %cst_18 : f32 to vector<8x256xf32>
    %32 = arith.divf %30, %31 : vector<8x256xf32>
    %cst_19 = arith.constant 0.000000e+00 : f32
    %33 = vector.broadcast %cst_19 : f32 to vector<16x128xf32>
    %c0_20 = arith.constant 0 : index
    %c0_21 = arith.constant 0 : index
    %34 = vector.load %arg10[%c0_20, %c0_21] : memref<16x512xf32, #tpu.memory_space<vmem>>, vector<16x128xf32>
    tpu.vector_store %arg10[%c0_20, %c0_21], %33 {strides = array<i32>} : memref<16x512xf32, #tpu.memory_space<vmem>>, vector<16x128xf32>,
    %cst_22 = arith.constant 0.000000e+00 : f32
    %35 = vector.broadcast %cst_22 : f32 to vector<16x128xf32>
    %c0_23 = arith.constant 0 : index
    %c384 = arith.constant 384 : index
    %36 = vector.load %arg10[%c0_23, %c384] : memref<16x512xf32, #tpu.memory_space<vmem>>, vector<16x128xf32>
    tpu.vector_store %arg10[%c0_23, %c384], %35 {strides = array<i32>} : memref<16x512xf32, #tpu.memory_space<vmem>>, vector<16x128xf32>,
    %c0_24 = arith.constant 0 : index
    %c128 = arith.constant 128 : index
    %37 = vector.load %arg10[%c0_24, %c128] : memref<16x512xf32, #tpu.memory_space<vmem>>, vector<8x256xf32>
    tpu.vector_store %arg10[%c0_24, %c128], %29 {strides = array<i32>} : memref<16x512xf32, #tpu.memory_space<vmem>>, vector<8x256xf32>,
    %c8 = arith.constant 8 : index
    %c128_25 = arith.constant 128 : index
    %38 = vector.load %arg10[%c8, %c128_25] : memref<16x512xf32, #tpu.memory_space<vmem>>, vector<8x256xf32>
    tpu.vector_store %arg10[%c8, %c128_25], %32 {strides = array<i32>} : memref<16x512xf32, #tpu.memory_space<vmem>>, vector<8x256xf32>,
    %39 = tpu.iota {dimensions = array<i32: 0>} : vector<16x1xi32>
    %c8_i32 = arith.constant 8 : i32
    %40 = vector.broadcast %c8_i32 : i32 to vector<16x1xi32>
    %41 = arith.cmpi slt, %39, %40 : vector<16x1xi32>
    %42 = arith.extui %41 : vector<16x1xi1> to vector<16x1xi32>
    %43 = arith.sitofp %42 : vector<16x1xi32> to vector<16x1xf32>
    %cst_26 = arith.constant 1.000000e+00 : f32
    %44 = vector.broadcast %cst_26 : f32 to vector<16x1xf32>
    %45 = arith.subf %44, %43 : vector<16x1xf32>
    %cst_27 = arith.constant 0.000000e+00 : f32
    %46 = vector.broadcast %cst_27 : f32 to vector<16x256xf32>
    %c0_28 = arith.constant 0 : index
    %47 = memref.load %arg7[%c0_28] : memref<98xf32, #tpu.memory_space<smem>>
    %48 = vector.broadcast %47 : f32 to vector<16x1xf32>
    %49 = arith.mulf %43, %48 : vector<16x1xf32>
    %c49 = arith.constant 49 : index
    %50 = memref.load %arg7[%c49] : memref<98xf32, #tpu.memory_space<smem>>
    %51 = vector.broadcast %50 : f32 to vector<16x1xf32>
    %52 = arith.mulf %45, %51 : vector<16x1xf32>
    %53 = arith.addf %49, %52 : vector<16x1xf32>
    %c0_29 = arith.constant 0 : index
    %c77 = arith.constant 77 : index
    %54 = vector.load %arg10[%c0_29, %c77] : memref<16x512xf32, #tpu.memory_space<vmem>>, vector<16x256xf32>
    %55 = vector.broadcast %53 : vector<16x1xf32> to vector<16x256xf32>
    %56 = arith.mulf %55, %54 : vector<16x256xf32>
    %57 = arith.addf %46, %56 : vector<16x256xf32>
    %c7 = arith.constant 7 : index
    %58 = memref.load %arg7[%c7] : memref<98xf32, #tpu.memory_space<smem>>
    %59 = vector.broadcast %58 : f32 to vector<16x1xf32>
    %60 = arith.mulf %43, %59 : vector<16x1xf32>
    %c56 = arith.constant 56 : index
    %61 = memref.load %arg7[%c56] : memref<98xf32, #tpu.memory_space<smem>>
    %62 = vector.broadcast %61 : f32 to vector<16x1xf32>
    %63 = arith.mulf %45, %62 : vector<16x1xf32>
    %64 = arith.addf %60, %63 : vector<16x1xf32>
    %c0_30 = arith.constant 0 : index
    %c93 = arith.constant 93 : index
    %65 = vector.load %arg10[%c0_30, %c93] : memref<16x512xf32, #tpu.memory_space<vmem>>, vector<16x256xf32>
    %66 = vector.broadcast %64 : vector<16x1xf32> to vector<16x256xf32>
    %67 = arith.mulf %66, %65 : vector<16x256xf32>
    %68 = arith.addf %57, %67 : vector<16x256xf32>
    %c14 = arith.constant 14 : index
    %69 = memref.load %arg7[%c14] : memref<98xf32, #tpu.memory_space<smem>>
    %70 = vector.broadcast %69 : f32 to vector<16x1xf32>
    %71 = arith.mulf %43, %70 : vector<16x1xf32>
    %c63 = arith.constant 63 : index
    %72 = memref.load %arg7[%c63] : memref<98xf32, #tpu.memory_space<smem>>
    %73 = vector.broadcast %72 : f32 to vector<16x1xf32>
    %74 = arith.mulf %45, %73 : vector<16x1xf32>
    %75 = arith.addf %71, %74 : vector<16x1xf32>
    %c0_31 = arith.constant 0 : index
    %c109 = arith.constant 109 : index
    %76 = vector.load %arg10[%c0_31, %c109] : memref<16x512xf32, #tpu.memory_space<vmem>>, vector<16x256xf32>
    %77 = vector.broadcast %75 : vector<16x1xf32> to vector<16x256xf32>
    %78 = arith.mulf %77, %76 : vector<16x256xf32>
    %79 = arith.addf %68, %78 : vector<16x256xf32>
    %c21 = arith.constant 21 : index
    %80 = memref.load %arg7[%c21] : memref<98xf32, #tpu.memory_space<smem>>
    %81 = vector.broadcast %80 : f32 to vector<16x1xf32>
    %82 = arith.mulf %43, %81 : vector<16x1xf32>
    %c70 = arith.constant 70 : index
    %83 = memref.load %arg7[%c70] : memref<98xf32, #tpu.memory_space<smem>>
    %84 = vector.broadcast %83 : f32 to vector<16x1xf32>
    %85 = arith.mulf %45, %84 : vector<16x1xf32>
    %86 = arith.addf %82, %85 : vector<16x1xf32>
    %c0_32 = arith.constant 0 : index
    %c125 = arith.constant 125 : index
    %87 = vector.load %arg10[%c0_32, %c125] : memref<16x512xf32, #tpu.memory_space<vmem>>, vector<16x256xf32>
    %88 = vector.broadcast %86 : vector<16x1xf32> to vector<16x256xf32>
    %89 = arith.mulf %88, %87 : vector<16x256xf32>
    %90 = arith.addf %79, %89 : vector<16x256xf32>
    %c28 = arith.constant 28 : index
    %91 = memref.load %arg7[%c28] : memref<98xf32, #tpu.memory_space<smem>>
    %92 = vector.broadcast %91 : f32 to vector<16x1xf32>
    %93 = arith.mulf %43, %92 : vector<16x1xf32>
    %c77_33 = arith.constant 77 : index
    %94 = memref.load %arg7[%c77_33] : memref<98xf32, #tpu.memory_space<smem>>
    %95 = vector.broadcast %94 : f32 to vector<16x1xf32>
    %96 = arith.mulf %45, %95 : vector<16x1xf32>
    %97 = arith.addf %93, %96 : vector<16x1xf32>
    %c0_34 = arith.constant 0 : index
    %c141 = arith.constant 141 : index
    %98 = vector.load %arg10[%c0_34, %c141] : memref<16x512xf32, #tpu.memory_space<vmem>>, vector<16x256xf32>
    %99 = vector.broadcast %97 : vector<16x1xf32> to vector<16x256xf32>
    %100 = arith.mulf %99, %98 : vector<16x256xf32>
    %101 = arith.addf %90, %100 : vector<16x256xf32>
    %c35 = arith.constant 35 : index
    %102 = memref.load %arg7[%c35] : memref<98xf32, #tpu.memory_space<smem>>
    %103 = vector.broadcast %102 : f32 to vector<16x1xf32>
    %104 = arith.mulf %43, %103 : vector<16x1xf32>
    %c84 = arith.constant 84 : index
    %105 = memref.load %arg7[%c84] : memref<98xf32, #tpu.memory_space<smem>>
    %106 = vector.broadcast %105 : f32 to vector<16x1xf32>
    %107 = arith.mulf %45, %106 : vector<16x1xf32>
    %108 = arith.addf %104, %107 : vector<16x1xf32>
    %c0_35 = arith.constant 0 : index
    %c157 = arith.constant 157 : index
    %109 = vector.load %arg10[%c0_35, %c157] : memref<16x512xf32, #tpu.memory_space<vmem>>, vector<16x256xf32>
    %110 = vector.broadcast %108 : vector<16x1xf32> to vector<16x256xf32>
    %111 = arith.mulf %110, %109 : vector<16x256xf32>
    %112 = arith.addf %101, %111 : vector<16x256xf32>
    %c42 = arith.constant 42 : index
    %113 = memref.load %arg7[%c42] : memref<98xf32, #tpu.memory_space<smem>>
    %114 = vector.broadcast %113 : f32 to vector<16x1xf32>
    %115 = arith.mulf %43, %114 : vector<16x1xf32>
    %c91 = arith.constant 91 : index
    %116 = memref.load %arg7[%c91] : memref<98xf32, #tpu.memory_space<smem>>
    %117 = vector.broadcast %116 : f32 to vector<16x1xf32>
    %118 = arith.mulf %45, %117 : vector<16x1xf32>
    %119 = arith.addf %115, %118 : vector<16x1xf32>
    %c0_36 = arith.constant 0 : index
    %c173 = arith.constant 173 : index
    %120 = vector.load %arg10[%c0_36, %c173] : memref<16x512xf32, #tpu.memory_space<vmem>>, vector<16x256xf32>
    %121 = vector.broadcast %119 : vector<16x1xf32> to vector<16x256xf32>
    %122 = arith.mulf %121, %120 : vector<16x256xf32>
    %123 = arith.addf %112, %122 : vector<16x256xf32>
    %c0_37 = arith.constant 0 : index
    %c0_38 = arith.constant 0 : index
    %124 = vector.load %arg6[%c0_37, %c0_38] : memref<7x256xf32, #tpu.memory_space<vmem>>, vector<1x256xf32>
    %125 = vector.broadcast %124 : vector<1x256xf32> to vector<16x256xf32>
    %126 = arith.mulf %123, %125 : vector<16x256xf32>
    %cst_39 = arith.constant 0.000000e+00 : f32
    %127 = vector.broadcast %cst_39 : f32 to vector<16x256xf32>
    %c1 = arith.constant 1 : index
    %128 = memref.load %arg7[%c1] : memref<98xf32, #tpu.memory_space<smem>>
    %129 = vector.broadcast %128 : f32 to vector<16x1xf32>
    %130 = arith.mulf %43, %129 : vector<16x1xf32>
    %c50 = arith.constant 50 : index
    %131 = memref.load %arg7[%c50] : memref<98xf32, #tpu.memory_space<smem>>
    %132 = vector.broadcast %131 : f32 to vector<16x1xf32>
    %133 = arith.mulf %45, %132 : vector<16x1xf32>
    %134 = arith.addf %130, %133 : vector<16x1xf32>
    %c0_40 = arith.constant 0 : index
    %c78 = arith.constant 78 : index
    %135 = vector.load %arg10[%c0_40, %c78] : memref<16x512xf32, #tpu.memory_space<vmem>>, vector<16x256xf32>
    %136 = vector.broadcast %134 : vector<16x1xf32> to vector<16x256xf32>
    %137 = arith.mulf %136, %135 : vector<16x256xf32>
    %138 = arith.addf %127, %137 : vector<16x256xf32>
    %c8_41 = arith.constant 8 : index
    %139 = memref.load %arg7[%c8_41] : memref<98xf32, #tpu.memory_space<smem>>
    %140 = vector.broadcast %139 : f32 to vector<16x1xf32>
    %141 = arith.mulf %43, %140 : vector<16x1xf32>
    %c57 = arith.constant 57 : index
    %142 = memref.load %arg7[%c57] : memref<98xf32, #tpu.memory_space<smem>>
    %143 = vector.broadcast %142 : f32 to vector<16x1xf32>
    %144 = arith.mulf %45, %143 : vector<16x1xf32>
    %145 = arith.addf %141, %144 : vector<16x1xf32>
    %c0_42 = arith.constant 0 : index
    %c94 = arith.constant 94 : index
    %146 = vector.load %arg10[%c0_42, %c94] : memref<16x512xf32, #tpu.memory_space<vmem>>, vector<16x256xf32>
    %147 = vector.broadcast %145 : vector<16x1xf32> to vector<16x256xf32>
    %148 = arith.mulf %147, %146 : vector<16x256xf32>
    %149 = arith.addf %138, %148 : vector<16x256xf32>
    %c15 = arith.constant 15 : index
    %150 = memref.load %arg7[%c15] : memref<98xf32, #tpu.memory_space<smem>>
    %151 = vector.broadcast %150 : f32 to vector<16x1xf32>
    %152 = arith.mulf %43, %151 : vector<16x1xf32>
    %c64 = arith.constant 64 : index
    %153 = memref.load %arg7[%c64] : memref<98xf32, #tpu.memory_space<smem>>
    %154 = vector.broadcast %153 : f32 to vector<16x1xf32>
    %155 = arith.mulf %45, %154 : vector<16x1xf32>
    %156 = arith.addf %152, %155 : vector<16x1xf32>
    %c0_43 = arith.constant 0 : index
    %c110 = arith.constant 110 : index
    %157 = vector.load %arg10[%c0_43, %c110] : memref<16x512xf32, #tpu.memory_space<vmem>>, vector<16x256xf32>
    %158 = vector.broadcast %156 : vector<16x1xf32> to vector<16x256xf32>
    %159 = arith.mulf %158, %157 : vector<16x256xf32>
    %160 = arith.addf %149, %159 : vector<16x256xf32>
    %c22 = arith.constant 22 : index
    %161 = memref.load %arg7[%c22] : memref<98xf32, #tpu.memory_space<smem>>
    %162 = vector.broadcast %161 : f32 to vector<16x1xf32>
    %163 = arith.mulf %43, %162 : vector<16x1xf32>
    %c71 = arith.constant 71 : index
    %164 = memref.load %arg7[%c71] : memref<98xf32, #tpu.memory_space<smem>>
    %165 = vector.broadcast %164 : f32 to vector<16x1xf32>
    %166 = arith.mulf %45, %165 : vector<16x1xf32>
    %167 = arith.addf %163, %166 : vector<16x1xf32>
    %c0_44 = arith.constant 0 : index
    %c126 = arith.constant 126 : index
    %168 = vector.load %arg10[%c0_44, %c126] : memref<16x512xf32, #tpu.memory_space<vmem>>, vector<16x256xf32>
    %169 = vector.broadcast %167 : vector<16x1xf32> to vector<16x256xf32>
    %170 = arith.mulf %169, %168 : vector<16x256xf32>
    %171 = arith.addf %160, %170 : vector<16x256xf32>
    %c29 = arith.constant 29 : index
    %172 = memref.load %arg7[%c29] : memref<98xf32, #tpu.memory_space<smem>>
    %173 = vector.broadcast %172 : f32 to vector<16x1xf32>
    %174 = arith.mulf %43, %173 : vector<16x1xf32>
    %c78_45 = arith.constant 78 : index
    %175 = memref.load %arg7[%c78_45] : memref<98xf32, #tpu.memory_space<smem>>
    %176 = vector.broadcast %175 : f32 to vector<16x1xf32>
    %177 = arith.mulf %45, %176 : vector<16x1xf32>
    %178 = arith.addf %174, %177 : vector<16x1xf32>
    %c0_46 = arith.constant 0 : index
    %c142 = arith.constant 142 : index
    %179 = vector.load %arg10[%c0_46, %c142] : memref<16x512xf32, #tpu.memory_space<vmem>>, vector<16x256xf32>
    %180 = vector.broadcast %178 : vector<16x1xf32> to vector<16x256xf32>
    %181 = arith.mulf %180, %179 : vector<16x256xf32>
    %182 = arith.addf %171, %181 : vector<16x256xf32>
    %c36 = arith.constant 36 : index
    %183 = memref.load %arg7[%c36] : memref<98xf32, #tpu.memory_space<smem>>
    %184 = vector.broadcast %183 : f32 to vector<16x1xf32>
    %185 = arith.mulf %43, %184 : vector<16x1xf32>
    %c85 = arith.constant 85 : index
    %186 = memref.load %arg7[%c85] : memref<98xf32, #tpu.memory_space<smem>>
    %187 = vector.broadcast %186 : f32 to vector<16x1xf32>
    %188 = arith.mulf %45, %187 : vector<16x1xf32>
    %189 = arith.addf %185, %188 : vector<16x1xf32>
    %c0_47 = arith.constant 0 : index
    %c158 = arith.constant 158 : index
    %190 = vector.load %arg10[%c0_47, %c158] : memref<16x512xf32, #tpu.memory_space<vmem>>, vector<16x256xf32>
    %191 = vector.broadcast %189 : vector<16x1xf32> to vector<16x256xf32>
    %192 = arith.mulf %191, %190 : vector<16x256xf32>
    %193 = arith.addf %182, %192 : vector<16x256xf32>
    %c43 = arith.constant 43 : index
    %194 = memref.load %arg7[%c43] : memref<98xf32, #tpu.memory_space<smem>>
    %195 = vector.broadcast %194 : f32 to vector<16x1xf32>
    %196 = arith.mulf %43, %195 : vector<16x1xf32>
    %c92 = arith.constant 92 : index
    %197 = memref.load %arg7[%c92] : memref<98xf32, #tpu.memory_space<smem>>
    %198 = vector.broadcast %197 : f32 to vector<16x1xf32>
    %199 = arith.mulf %45, %198 : vector<16x1xf32>
    %200 = arith.addf %196, %199 : vector<16x1xf32>
    %c0_48 = arith.constant 0 : index
    %c174 = arith.constant 174 : index
    %201 = vector.load %arg10[%c0_48, %c174] : memref<16x512xf32, #tpu.memory_space<vmem>>, vector<16x256xf32>
    %202 = vector.broadcast %200 : vector<16x1xf32> to vector<16x256xf32>
    %203 = arith.mulf %202, %201 : vector<16x256xf32>
    %204 = arith.addf %193, %203 : vector<16x256xf32>
    %c1_49 = arith.constant 1 : index
    %c0_50 = arith.constant 0 : index
    %205 = vector.load %arg6[%c1_49, %c0_50] : memref<7x256xf32, #tpu.memory_space<vmem>>, vector<1x256xf32>
    %206 = vector.broadcast %205 : vector<1x256xf32> to vector<16x256xf32>
    %207 = arith.mulf %204, %206 : vector<16x256xf32>
    %cst_51 = arith.constant 0.000000e+00 : f32
    %208 = vector.broadcast %cst_51 : f32 to vector<16x256xf32>
    %c2 = arith.constant 2 : index
    %209 = memref.load %arg7[%c2] : memref<98xf32, #tpu.memory_space<smem>>
    %210 = vector.broadcast %209 : f32 to vector<16x1xf32>
    %211 = arith.mulf %43, %210 : vector<16x1xf32>
    %c51 = arith.constant 51 : index
    %212 = memref.load %arg7[%c51] : memref<98xf32, #tpu.memory_space<smem>>
    %213 = vector.broadcast %212 : f32 to vector<16x1xf32>
    %214 = arith.mulf %45, %213 : vector<16x1xf32>
    %215 = arith.addf %211, %214 : vector<16x1xf32>
    %c0_52 = arith.constant 0 : index
    %c79 = arith.constant 79 : index
    %216 = vector.load %arg10[%c0_52, %c79] : memref<16x512xf32, #tpu.memory_space<vmem>>, vector<16x256xf32>
    %217 = vector.broadcast %215 : vector<16x1xf32> to vector<16x256xf32>
    %218 = arith.mulf %217, %216 : vector<16x256xf32>
    %219 = arith.addf %208, %218 : vector<16x256xf32>
    %c9 = arith.constant 9 : index
    %220 = memref.load %arg7[%c9] : memref<98xf32, #tpu.memory_space<smem>>
    %221 = vector.broadcast %220 : f32 to vector<16x1xf32>
    %222 = arith.mulf %43, %221 : vector<16x1xf32>
    %c58 = arith.constant 58 : index
    %223 = memref.load %arg7[%c58] : memref<98xf32, #tpu.memory_space<smem>>
    %224 = vector.broadcast %223 : f32 to vector<16x1xf32>
    %225 = arith.mulf %45, %224 : vector<16x1xf32>
    %226 = arith.addf %222, %225 : vector<16x1xf32>
    %c0_53 = arith.constant 0 : index
    %c95 = arith.constant 95 : index
    %227 = vector.load %arg10[%c0_53, %c95] : memref<16x512xf32, #tpu.memory_space<vmem>>, vector<16x256xf32>
    %228 = vector.broadcast %226 : vector<16x1xf32> to vector<16x256xf32>
    %229 = arith.mulf %228, %227 : vector<16x256xf32>
    %230 = arith.addf %219, %229 : vector<16x256xf32>
    %c16 = arith.constant 16 : index
    %231 = memref.load %arg7[%c16] : memref<98xf32, #tpu.memory_space<smem>>
    %232 = vector.broadcast %231 : f32 to vector<16x1xf32>
    %233 = arith.mulf %43, %232 : vector<16x1xf32>
    %c65 = arith.constant 65 : index
    %234 = memref.load %arg7[%c65] : memref<98xf32, #tpu.memory_space<smem>>
    %235 = vector.broadcast %234 : f32 to vector<16x1xf32>
    %236 = arith.mulf %45, %235 : vector<16x1xf32>
    %237 = arith.addf %233, %236 : vector<16x1xf32>
    %c0_54 = arith.constant 0 : index
    %c111 = arith.constant 111 : index
    %238 = vector.load %arg10[%c0_54, %c111] : memref<16x512xf32, #tpu.memory_space<vmem>>, vector<16x256xf32>
    %239 = vector.broadcast %237 : vector<16x1xf32> to vector<16x256xf32>
    %240 = arith.mulf %239, %238 : vector<16x256xf32>
    %241 = arith.addf %230, %240 : vector<16x256xf32>
    %c23 = arith.constant 23 : index
    %242 = memref.load %arg7[%c23] : memref<98xf32, #tpu.memory_space<smem>>
    %243 = vector.broadcast %242 : f32 to vector<16x1xf32>
    %244 = arith.mulf %43, %243 : vector<16x1xf32>
    %c72 = arith.constant 72 : index
    %245 = memref.load %arg7[%c72] : memref<98xf32, #tpu.memory_space<smem>>
    %246 = vector.broadcast %245 : f32 to vector<16x1xf32>
    %247 = arith.mulf %45, %246 : vector<16x1xf32>
    %248 = arith.addf %244, %247 : vector<16x1xf32>
    %c0_55 = arith.constant 0 : index
    %c127 = arith.constant 127 : index
    %249 = vector.load %arg10[%c0_55, %c127] : memref<16x512xf32, #tpu.memory_space<vmem>>, vector<16x256xf32>
    %250 = vector.broadcast %248 : vector<16x1xf32> to vector<16x256xf32>
    %251 = arith.mulf %250, %249 : vector<16x256xf32>
    %252 = arith.addf %241, %251 : vector<16x256xf32>
    %c30 = arith.constant 30 : index
    %253 = memref.load %arg7[%c30] : memref<98xf32, #tpu.memory_space<smem>>
    %254 = vector.broadcast %253 : f32 to vector<16x1xf32>
    %255 = arith.mulf %43, %254 : vector<16x1xf32>
    %c79_56 = arith.constant 79 : index
    %256 = memref.load %arg7[%c79_56] : memref<98xf32, #tpu.memory_space<smem>>
    %257 = vector.broadcast %256 : f32 to vector<16x1xf32>
    %258 = arith.mulf %45, %257 : vector<16x1xf32>
    %259 = arith.addf %255, %258 : vector<16x1xf32>
    %c0_57 = arith.constant 0 : index
    %c143 = arith.constant 143 : index
    %260 = vector.load %arg10[%c0_57, %c143] : memref<16x512xf32, #tpu.memory_space<vmem>>, vector<16x256xf32>
    %261 = vector.broadcast %259 : vector<16x1xf32> to vector<16x256xf32>
    %262 = arith.mulf %261, %260 : vector<16x256xf32>
    %263 = arith.addf %252, %262 : vector<16x256xf32>
    %c37 = arith.constant 37 : index
    %264 = memref.load %arg7[%c37] : memref<98xf32, #tpu.memory_space<smem>>
    %265 = vector.broadcast %264 : f32 to vector<16x1xf32>
    %266 = arith.mulf %43, %265 : vector<16x1xf32>
    %c86 = arith.constant 86 : index
    %267 = memref.load %arg7[%c86] : memref<98xf32, #tpu.memory_space<smem>>
    %268 = vector.broadcast %267 : f32 to vector<16x1xf32>
    %269 = arith.mulf %45, %268 : vector<16x1xf32>
    %270 = arith.addf %266, %269 : vector<16x1xf32>
    %c0_58 = arith.constant 0 : index
    %c159 = arith.constant 159 : index
    %271 = vector.load %arg10[%c0_58, %c159] : memref<16x512xf32, #tpu.memory_space<vmem>>, vector<16x256xf32>
    %272 = vector.broadcast %270 : vector<16x1xf32> to vector<16x256xf32>
    %273 = arith.mulf %272, %271 : vector<16x256xf32>
    %274 = arith.addf %263, %273 : vector<16x256xf32>
    %c44 = arith.constant 44 : index
    %275 = memref.load %arg7[%c44] : memref<98xf32, #tpu.memory_space<smem>>
    %276 = vector.broadcast %275 : f32 to vector<16x1xf32>
    %277 = arith.mulf %43, %276 : vector<16x1xf32>
    %c93_59 = arith.constant 93 : index
    %278 = memref.load %arg7[%c93_59] : memref<98xf32, #tpu.memory_space<smem>>
    %279 = vector.broadcast %278 : f32 to vector<16x1xf32>
    %280 = arith.mulf %45, %279 : vector<16x1xf32>
    %281 = arith.addf %277, %280 : vector<16x1xf32>
    %c0_60 = arith.constant 0 : index
    %c175 = arith.constant 175 : index
    %282 = vector.load %arg10[%c0_60, %c175] : memref<16x512xf32, #tpu.memory_space<vmem>>, vector<16x256xf32>
    %283 = vector.broadcast %281 : vector<16x1xf32> to vector<16x256xf32>
    %284 = arith.mulf %283, %282 : vector<16x256xf32>
    %285 = arith.addf %274, %284 : vector<16x256xf32>
    %c2_61 = arith.constant 2 : index
    %c0_62 = arith.constant 0 : index
    %286 = vector.load %arg6[%c2_61, %c0_62] : memref<7x256xf32, #tpu.memory_space<vmem>>, vector<1x256xf32>
    %287 = vector.broadcast %286 : vector<1x256xf32> to vector<16x256xf32>
    %288 = arith.mulf %285, %287 : vector<16x256xf32>
    %cst_63 = arith.constant 0.000000e+00 : f32
    %289 = vector.broadcast %cst_63 : f32 to vector<16x256xf32>
    %c3 = arith.constant 3 : index
    %290 = memref.load %arg7[%c3] : memref<98xf32, #tpu.memory_space<smem>>
    %291 = vector.broadcast %290 : f32 to vector<16x1xf32>
    %292 = arith.mulf %43, %291 : vector<16x1xf32>
    %c52 = arith.constant 52 : index
    %293 = memref.load %arg7[%c52] : memref<98xf32, #tpu.memory_space<smem>>
    %294 = vector.broadcast %293 : f32 to vector<16x1xf32>
    %295 = arith.mulf %45, %294 : vector<16x1xf32>
    %296 = arith.addf %292, %295 : vector<16x1xf32>
    %c0_64 = arith.constant 0 : index
    %c80 = arith.constant 80 : index
    %297 = vector.load %arg10[%c0_64, %c80] : memref<16x512xf32, #tpu.memory_space<vmem>>, vector<16x256xf32>
    %298 = vector.broadcast %296 : vector<16x1xf32> to vector<16x256xf32>
    %299 = arith.mulf %298, %297 : vector<16x256xf32>
    %300 = arith.addf %289, %299 : vector<16x256xf32>
    %c10 = arith.constant 10 : index
    %301 = memref.load %arg7[%c10] : memref<98xf32, #tpu.memory_space<smem>>
    %302 = vector.broadcast %301 : f32 to vector<16x1xf32>
    %303 = arith.mulf %43, %302 : vector<16x1xf32>
    %c59 = arith.constant 59 : index
    %304 = memref.load %arg7[%c59] : memref<98xf32, #tpu.memory_space<smem>>
    %305 = vector.broadcast %304 : f32 to vector<16x1xf32>
    %306 = arith.mulf %45, %305 : vector<16x1xf32>
    %307 = arith.addf %303, %306 : vector<16x1xf32>
    %c0_65 = arith.constant 0 : index
    %c96 = arith.constant 96 : index
    %308 = vector.load %arg10[%c0_65, %c96] : memref<16x512xf32, #tpu.memory_space<vmem>>, vector<16x256xf32>
    %309 = vector.broadcast %307 : vector<16x1xf32> to vector<16x256xf32>
    %310 = arith.mulf %309, %308 : vector<16x256xf32>
    %311 = arith.addf %300, %310 : vector<16x256xf32>
    %c17 = arith.constant 17 : index
    %312 = memref.load %arg7[%c17] : memref<98xf32, #tpu.memory_space<smem>>
    %313 = vector.broadcast %312 : f32 to vector<16x1xf32>
    %314 = arith.mulf %43, %313 : vector<16x1xf32>
    %c66 = arith.constant 66 : index
    %315 = memref.load %arg7[%c66] : memref<98xf32, #tpu.memory_space<smem>>
    %316 = vector.broadcast %315 : f32 to vector<16x1xf32>
    %317 = arith.mulf %45, %316 : vector<16x1xf32>
    %318 = arith.addf %314, %317 : vector<16x1xf32>
    %c0_66 = arith.constant 0 : index
    %c112 = arith.constant 112 : index
    %319 = vector.load %arg10[%c0_66, %c112] : memref<16x512xf32, #tpu.memory_space<vmem>>, vector<16x256xf32>
    %320 = vector.broadcast %318 : vector<16x1xf32> to vector<16x256xf32>
    %321 = arith.mulf %320, %319 : vector<16x256xf32>
    %322 = arith.addf %311, %321 : vector<16x256xf32>
    %c24 = arith.constant 24 : index
    %323 = memref.load %arg7[%c24] : memref<98xf32, #tpu.memory_space<smem>>
    %324 = vector.broadcast %323 : f32 to vector<16x1xf32>
    %325 = arith.mulf %43, %324 : vector<16x1xf32>
    %c73 = arith.constant 73 : index
    %326 = memref.load %arg7[%c73] : memref<98xf32, #tpu.memory_space<smem>>
    %327 = vector.broadcast %326 : f32 to vector<16x1xf32>
    %328 = arith.mulf %45, %327 : vector<16x1xf32>
    %329 = arith.addf %325, %328 : vector<16x1xf32>
    %c0_67 = arith.constant 0 : index
    %c128_68 = arith.constant 128 : index
    %330 = vector.load %arg10[%c0_67, %c128_68] : memref<16x512xf32, #tpu.memory_space<vmem>>, vector<16x256xf32>
    %331 = vector.broadcast %329 : vector<16x1xf32> to vector<16x256xf32>
    %332 = arith.mulf %331, %330 : vector<16x256xf32>
    %333 = arith.addf %322, %332 : vector<16x256xf32>
    %c31 = arith.constant 31 : index
    %334 = memref.load %arg7[%c31] : memref<98xf32, #tpu.memory_space<smem>>
    %335 = vector.broadcast %334 : f32 to vector<16x1xf32>
    %336 = arith.mulf %43, %335 : vector<16x1xf32>
    %c80_69 = arith.constant 80 : index
    %337 = memref.load %arg7[%c80_69] : memref<98xf32, #tpu.memory_space<smem>>
    %338 = vector.broadcast %337 : f32 to vector<16x1xf32>
    %339 = arith.mulf %45, %338 : vector<16x1xf32>
    %340 = arith.addf %336, %339 : vector<16x1xf32>
    %c0_70 = arith.constant 0 : index
    %c144 = arith.constant 144 : index
    %341 = vector.load %arg10[%c0_70, %c144] : memref<16x512xf32, #tpu.memory_space<vmem>>, vector<16x256xf32>
    %342 = vector.broadcast %340 : vector<16x1xf32> to vector<16x256xf32>
    %343 = arith.mulf %342, %341 : vector<16x256xf32>
    %344 = arith.addf %333, %343 : vector<16x256xf32>
    %c38 = arith.constant 38 : index
    %345 = memref.load %arg7[%c38] : memref<98xf32, #tpu.memory_space<smem>>
    %346 = vector.broadcast %345 : f32 to vector<16x1xf32>
    %347 = arith.mulf %43, %346 : vector<16x1xf32>
    %c87 = arith.constant 87 : index
    %348 = memref.load %arg7[%c87] : memref<98xf32, #tpu.memory_space<smem>>
    %349 = vector.broadcast %348 : f32 to vector<16x1xf32>
    %350 = arith.mulf %45, %349 : vector<16x1xf32>
    %351 = arith.addf %347, %350 : vector<16x1xf32>
    %c0_71 = arith.constant 0 : index
    %c160 = arith.constant 160 : index
    %352 = vector.load %arg10[%c0_71, %c160] : memref<16x512xf32, #tpu.memory_space<vmem>>, vector<16x256xf32>
    %353 = vector.broadcast %351 : vector<16x1xf32> to vector<16x256xf32>
    %354 = arith.mulf %353, %352 : vector<16x256xf32>
    %355 = arith.addf %344, %354 : vector<16x256xf32>
    %c45 = arith.constant 45 : index
    %356 = memref.load %arg7[%c45] : memref<98xf32, #tpu.memory_space<smem>>
    %357 = vector.broadcast %356 : f32 to vector<16x1xf32>
    %358 = arith.mulf %43, %357 : vector<16x1xf32>
    %c94_72 = arith.constant 94 : index
    %359 = memref.load %arg7[%c94_72] : memref<98xf32, #tpu.memory_space<smem>>
    %360 = vector.broadcast %359 : f32 to vector<16x1xf32>
    %361 = arith.mulf %45, %360 : vector<16x1xf32>
    %362 = arith.addf %358, %361 : vector<16x1xf32>
    %c0_73 = arith.constant 0 : index
    %c176 = arith.constant 176 : index
    %363 = vector.load %arg10[%c0_73, %c176] : memref<16x512xf32, #tpu.memory_space<vmem>>, vector<16x256xf32>
    %364 = vector.broadcast %362 : vector<16x1xf32> to vector<16x256xf32>
    %365 = arith.mulf %364, %363 : vector<16x256xf32>
    %366 = arith.addf %355, %365 : vector<16x256xf32>
    %c3_74 = arith.constant 3 : index
    %c0_75 = arith.constant 0 : index
    %367 = vector.load %arg6[%c3_74, %c0_75] : memref<7x256xf32, #tpu.memory_space<vmem>>, vector<1x256xf32>
    %368 = vector.broadcast %367 : vector<1x256xf32> to vector<16x256xf32>
    %369 = arith.mulf %366, %368 : vector<16x256xf32>
    %cst_76 = arith.constant 0.000000e+00 : f32
    %370 = vector.broadcast %cst_76 : f32 to vector<16x256xf32>
    %c4 = arith.constant 4 : index
    %371 = memref.load %arg7[%c4] : memref<98xf32, #tpu.memory_space<smem>>
    %372 = vector.broadcast %371 : f32 to vector<16x1xf32>
    %373 = arith.mulf %43, %372 : vector<16x1xf32>
    %c53 = arith.constant 53 : index
    %374 = memref.load %arg7[%c53] : memref<98xf32, #tpu.memory_space<smem>>
    %375 = vector.broadcast %374 : f32 to vector<16x1xf32>
    %376 = arith.mulf %45, %375 : vector<16x1xf32>
    %377 = arith.addf %373, %376 : vector<16x1xf32>
    %c0_77 = arith.constant 0 : index
    %c81 = arith.constant 81 : index
    %378 = vector.load %arg10[%c0_77, %c81] : memref<16x512xf32, #tpu.memory_space<vmem>>, vector<16x256xf32>
    %379 = vector.broadcast %377 : vector<16x1xf32> to vector<16x256xf32>
    %380 = arith.mulf %379, %378 : vector<16x256xf32>
    %381 = arith.addf %370, %380 : vector<16x256xf32>
    %c11 = arith.constant 11 : index
    %382 = memref.load %arg7[%c11] : memref<98xf32, #tpu.memory_space<smem>>
    %383 = vector.broadcast %382 : f32 to vector<16x1xf32>
    %384 = arith.mulf %43, %383 : vector<16x1xf32>
    %c60 = arith.constant 60 : index
    %385 = memref.load %arg7[%c60] : memref<98xf32, #tpu.memory_space<smem>>
    %386 = vector.broadcast %385 : f32 to vector<16x1xf32>
    %387 = arith.mulf %45, %386 : vector<16x1xf32>
    %388 = arith.addf %384, %387 : vector<16x1xf32>
    %c0_78 = arith.constant 0 : index
    %c97 = arith.constant 97 : index
    %389 = vector.load %arg10[%c0_78, %c97] : memref<16x512xf32, #tpu.memory_space<vmem>>, vector<16x256xf32>
    %390 = vector.broadcast %388 : vector<16x1xf32> to vector<16x256xf32>
    %391 = arith.mulf %390, %389 : vector<16x256xf32>
    %392 = arith.addf %381, %391 : vector<16x256xf32>
    %c18 = arith.constant 18 : index
    %393 = memref.load %arg7[%c18] : memref<98xf32, #tpu.memory_space<smem>>
    %394 = vector.broadcast %393 : f32 to vector<16x1xf32>
    %395 = arith.mulf %43, %394 : vector<16x1xf32>
    %c67 = arith.constant 67 : index
    %396 = memref.load %arg7[%c67] : memref<98xf32, #tpu.memory_space<smem>>
    %397 = vector.broadcast %396 : f32 to vector<16x1xf32>
    %398 = arith.mulf %45, %397 : vector<16x1xf32>
    %399 = arith.addf %395, %398 : vector<16x1xf32>
    %c0_79 = arith.constant 0 : index
    %c113 = arith.constant 113 : index
    %400 = vector.load %arg10[%c0_79, %c113] : memref<16x512xf32, #tpu.memory_space<vmem>>, vector<16x256xf32>
    %401 = vector.broadcast %399 : vector<16x1xf32> to vector<16x256xf32>
    %402 = arith.mulf %401, %400 : vector<16x256xf32>
    %403 = arith.addf %392, %402 : vector<16x256xf32>
    %c25 = arith.constant 25 : index
    %404 = memref.load %arg7[%c25] : memref<98xf32, #tpu.memory_space<smem>>
    %405 = vector.broadcast %404 : f32 to vector<16x1xf32>
    %406 = arith.mulf %43, %405 : vector<16x1xf32>
    %c74 = arith.constant 74 : index
    %407 = memref.load %arg7[%c74] : memref<98xf32, #tpu.memory_space<smem>>
    %408 = vector.broadcast %407 : f32 to vector<16x1xf32>
    %409 = arith.mulf %45, %408 : vector<16x1xf32>
    %410 = arith.addf %406, %409 : vector<16x1xf32>
    %c0_80 = arith.constant 0 : index
    %c129 = arith.constant 129 : index
    %411 = vector.load %arg10[%c0_80, %c129] : memref<16x512xf32, #tpu.memory_space<vmem>>, vector<16x256xf32>
    %412 = vector.broadcast %410 : vector<16x1xf32> to vector<16x256xf32>
    %413 = arith.mulf %412, %411 : vector<16x256xf32>
    %414 = arith.addf %403, %413 : vector<16x256xf32>
    %c32 = arith.constant 32 : index
    %415 = memref.load %arg7[%c32] : memref<98xf32, #tpu.memory_space<smem>>
    %416 = vector.broadcast %415 : f32 to vector<16x1xf32>
    %417 = arith.mulf %43, %416 : vector<16x1xf32>
    %c81_81 = arith.constant 81 : index
    %418 = memref.load %arg7[%c81_81] : memref<98xf32, #tpu.memory_space<smem>>
    %419 = vector.broadcast %418 : f32 to vector<16x1xf32>
    %420 = arith.mulf %45, %419 : vector<16x1xf32>
    %421 = arith.addf %417, %420 : vector<16x1xf32>
    %c0_82 = arith.constant 0 : index
    %c145 = arith.constant 145 : index
    %422 = vector.load %arg10[%c0_82, %c145] : memref<16x512xf32, #tpu.memory_space<vmem>>, vector<16x256xf32>
    %423 = vector.broadcast %421 : vector<16x1xf32> to vector<16x256xf32>
    %424 = arith.mulf %423, %422 : vector<16x256xf32>
    %425 = arith.addf %414, %424 : vector<16x256xf32>
    %c39 = arith.constant 39 : index
    %426 = memref.load %arg7[%c39] : memref<98xf32, #tpu.memory_space<smem>>
    %427 = vector.broadcast %426 : f32 to vector<16x1xf32>
    %428 = arith.mulf %43, %427 : vector<16x1xf32>
    %c88 = arith.constant 88 : index
    %429 = memref.load %arg7[%c88] : memref<98xf32, #tpu.memory_space<smem>>
    %430 = vector.broadcast %429 : f32 to vector<16x1xf32>
    %431 = arith.mulf %45, %430 : vector<16x1xf32>
    %432 = arith.addf %428, %431 : vector<16x1xf32>
    %c0_83 = arith.constant 0 : index
    %c161 = arith.constant 161 : index
    %433 = vector.load %arg10[%c0_83, %c161] : memref<16x512xf32, #tpu.memory_space<vmem>>, vector<16x256xf32>
    %434 = vector.broadcast %432 : vector<16x1xf32> to vector<16x256xf32>
    %435 = arith.mulf %434, %433 : vector<16x256xf32>
    %436 = arith.addf %425, %435 : vector<16x256xf32>
    %c46 = arith.constant 46 : index
    %437 = memref.load %arg7[%c46] : memref<98xf32, #tpu.memory_space<smem>>
    %438 = vector.broadcast %437 : f32 to vector<16x1xf32>
    %439 = arith.mulf %43, %438 : vector<16x1xf32>
    %c95_84 = arith.constant 95 : index
    %440 = memref.load %arg7[%c95_84] : memref<98xf32, #tpu.memory_space<smem>>
    %441 = vector.broadcast %440 : f32 to vector<16x1xf32>
    %442 = arith.mulf %45, %441 : vector<16x1xf32>
    %443 = arith.addf %439, %442 : vector<16x1xf32>
    %c0_85 = arith.constant 0 : index
    %c177 = arith.constant 177 : index
    %444 = vector.load %arg10[%c0_85, %c177] : memref<16x512xf32, #tpu.memory_space<vmem>>, vector<16x256xf32>
    %445 = vector.broadcast %443 : vector<16x1xf32> to vector<16x256xf32>
    %446 = arith.mulf %445, %444 : vector<16x256xf32>
    %447 = arith.addf %436, %446 : vector<16x256xf32>
    %c4_86 = arith.constant 4 : index
    %c0_87 = arith.constant 0 : index
    %448 = vector.load %arg6[%c4_86, %c0_87] : memref<7x256xf32, #tpu.memory_space<vmem>>, vector<1x256xf32>
    %449 = vector.broadcast %448 : vector<1x256xf32> to vector<16x256xf32>
    %450 = arith.mulf %447, %449 : vector<16x256xf32>
    %cst_88 = arith.constant 0.000000e+00 : f32
    %451 = vector.broadcast %cst_88 : f32 to vector<16x256xf32>
    %c5 = arith.constant 5 : index
    %452 = memref.load %arg7[%c5] : memref<98xf32, #tpu.memory_space<smem>>
    %453 = vector.broadcast %452 : f32 to vector<16x1xf32>
    %454 = arith.mulf %43, %453 : vector<16x1xf32>
    %c54 = arith.constant 54 : index
    %455 = memref.load %arg7[%c54] : memref<98xf32, #tpu.memory_space<smem>>
    %456 = vector.broadcast %455 : f32 to vector<16x1xf32>
    %457 = arith.mulf %45, %456 : vector<16x1xf32>
    %458 = arith.addf %454, %457 : vector<16x1xf32>
    %c0_89 = arith.constant 0 : index
    %c82 = arith.constant 82 : index
    %459 = vector.load %arg10[%c0_89, %c82] : memref<16x512xf32, #tpu.memory_space<vmem>>, vector<16x256xf32>
    %460 = vector.broadcast %458 : vector<16x1xf32> to vector<16x256xf32>
    %461 = arith.mulf %460, %459 : vector<16x256xf32>
    %462 = arith.addf %451, %461 : vector<16x256xf32>
    %c12 = arith.constant 12 : index
    %463 = memref.load %arg7[%c12] : memref<98xf32, #tpu.memory_space<smem>>
    %464 = vector.broadcast %463 : f32 to vector<16x1xf32>
    %465 = arith.mulf %43, %464 : vector<16x1xf32>
    %c61 = arith.constant 61 : index
    %466 = memref.load %arg7[%c61] : memref<98xf32, #tpu.memory_space<smem>>
    %467 = vector.broadcast %466 : f32 to vector<16x1xf32>
    %468 = arith.mulf %45, %467 : vector<16x1xf32>
    %469 = arith.addf %465, %468 : vector<16x1xf32>
    %c0_90 = arith.constant 0 : index
    %c98 = arith.constant 98 : index
    %470 = vector.load %arg10[%c0_90, %c98] : memref<16x512xf32, #tpu.memory_space<vmem>>, vector<16x256xf32>
    %471 = vector.broadcast %469 : vector<16x1xf32> to vector<16x256xf32>
    %472 = arith.mulf %471, %470 : vector<16x256xf32>
    %473 = arith.addf %462, %472 : vector<16x256xf32>
    %c19 = arith.constant 19 : index
    %474 = memref.load %arg7[%c19] : memref<98xf32, #tpu.memory_space<smem>>
    %475 = vector.broadcast %474 : f32 to vector<16x1xf32>
    %476 = arith.mulf %43, %475 : vector<16x1xf32>
    %c68 = arith.constant 68 : index
    %477 = memref.load %arg7[%c68] : memref<98xf32, #tpu.memory_space<smem>>
    %478 = vector.broadcast %477 : f32 to vector<16x1xf32>
    %479 = arith.mulf %45, %478 : vector<16x1xf32>
    %480 = arith.addf %476, %479 : vector<16x1xf32>
    %c0_91 = arith.constant 0 : index
    %c114 = arith.constant 114 : index
    %481 = vector.load %arg10[%c0_91, %c114] : memref<16x512xf32, #tpu.memory_space<vmem>>, vector<16x256xf32>
    %482 = vector.broadcast %480 : vector<16x1xf32> to vector<16x256xf32>
    %483 = arith.mulf %482, %481 : vector<16x256xf32>
    %484 = arith.addf %473, %483 : vector<16x256xf32>
    %c26 = arith.constant 26 : index
    %485 = memref.load %arg7[%c26] : memref<98xf32, #tpu.memory_space<smem>>
    %486 = vector.broadcast %485 : f32 to vector<16x1xf32>
    %487 = arith.mulf %43, %486 : vector<16x1xf32>
    %c75 = arith.constant 75 : index
    %488 = memref.load %arg7[%c75] : memref<98xf32, #tpu.memory_space<smem>>
    %489 = vector.broadcast %488 : f32 to vector<16x1xf32>
    %490 = arith.mulf %45, %489 : vector<16x1xf32>
    %491 = arith.addf %487, %490 : vector<16x1xf32>
    %c0_92 = arith.constant 0 : index
    %c130 = arith.constant 130 : index
    %492 = vector.load %arg10[%c0_92, %c130] : memref<16x512xf32, #tpu.memory_space<vmem>>, vector<16x256xf32>
    %493 = vector.broadcast %491 : vector<16x1xf32> to vector<16x256xf32>
    %494 = arith.mulf %493, %492 : vector<16x256xf32>
    %495 = arith.addf %484, %494 : vector<16x256xf32>
    %c33 = arith.constant 33 : index
    %496 = memref.load %arg7[%c33] : memref<98xf32, #tpu.memory_space<smem>>
    %497 = vector.broadcast %496 : f32 to vector<16x1xf32>
    %498 = arith.mulf %43, %497 : vector<16x1xf32>
    %c82_93 = arith.constant 82 : index
    %499 = memref.load %arg7[%c82_93] : memref<98xf32, #tpu.memory_space<smem>>
    %500 = vector.broadcast %499 : f32 to vector<16x1xf32>
    %501 = arith.mulf %45, %500 : vector<16x1xf32>
    %502 = arith.addf %498, %501 : vector<16x1xf32>
    %c0_94 = arith.constant 0 : index
    %c146 = arith.constant 146 : index
    %503 = vector.load %arg10[%c0_94, %c146] : memref<16x512xf32, #tpu.memory_space<vmem>>, vector<16x256xf32>
    %504 = vector.broadcast %502 : vector<16x1xf32> to vector<16x256xf32>
    %505 = arith.mulf %504, %503 : vector<16x256xf32>
    %506 = arith.addf %495, %505 : vector<16x256xf32>
    %c40 = arith.constant 40 : index
    %507 = memref.load %arg7[%c40] : memref<98xf32, #tpu.memory_space<smem>>
    %508 = vector.broadcast %507 : f32 to vector<16x1xf32>
    %509 = arith.mulf %43, %508 : vector<16x1xf32>
    %c89 = arith.constant 89 : index
    %510 = memref.load %arg7[%c89] : memref<98xf32, #tpu.memory_space<smem>>
    %511 = vector.broadcast %510 : f32 to vector<16x1xf32>
    %512 = arith.mulf %45, %511 : vector<16x1xf32>
    %513 = arith.addf %509, %512 : vector<16x1xf32>
    %c0_95 = arith.constant 0 : index
    %c162 = arith.constant 162 : index
    %514 = vector.load %arg10[%c0_95, %c162] : memref<16x512xf32, #tpu.memory_space<vmem>>, vector<16x256xf32>
    %515 = vector.broadcast %513 : vector<16x1xf32> to vector<16x256xf32>
    %516 = arith.mulf %515, %514 : vector<16x256xf32>
    %517 = arith.addf %506, %516 : vector<16x256xf32>
    %c47 = arith.constant 47 : index
    %518 = memref.load %arg7[%c47] : memref<98xf32, #tpu.memory_space<smem>>
    %519 = vector.broadcast %518 : f32 to vector<16x1xf32>
    %520 = arith.mulf %43, %519 : vector<16x1xf32>
    %c96_96 = arith.constant 96 : index
    %521 = memref.load %arg7[%c96_96] : memref<98xf32, #tpu.memory_space<smem>>
    %522 = vector.broadcast %521 : f32 to vector<16x1xf32>
    %523 = arith.mulf %45, %522 : vector<16x1xf32>
    %524 = arith.addf %520, %523 : vector<16x1xf32>
    %c0_97 = arith.constant 0 : index
    %c178 = arith.constant 178 : index
    %525 = vector.load %arg10[%c0_97, %c178] : memref<16x512xf32, #tpu.memory_space<vmem>>, vector<16x256xf32>
    %526 = vector.broadcast %524 : vector<16x1xf32> to vector<16x256xf32>
    %527 = arith.mulf %526, %525 : vector<16x256xf32>
    %528 = arith.addf %517, %527 : vector<16x256xf32>
    %c5_98 = arith.constant 5 : index
    %c0_99 = arith.constant 0 : index
    %529 = vector.load %arg6[%c5_98, %c0_99] : memref<7x256xf32, #tpu.memory_space<vmem>>, vector<1x256xf32>
    %530 = vector.broadcast %529 : vector<1x256xf32> to vector<16x256xf32>
    %531 = arith.mulf %528, %530 : vector<16x256xf32>
    %cst_100 = arith.constant 0.000000e+00 : f32
    %532 = vector.broadcast %cst_100 : f32 to vector<16x256xf32>
    %c6 = arith.constant 6 : index
    %533 = memref.load %arg7[%c6] : memref<98xf32, #tpu.memory_space<smem>>
    %534 = vector.broadcast %533 : f32 to vector<16x1xf32>
    %535 = arith.mulf %43, %534 : vector<16x1xf32>
    %c55 = arith.constant 55 : index
    %536 = memref.load %arg7[%c55] : memref<98xf32, #tpu.memory_space<smem>>
    %537 = vector.broadcast %536 : f32 to vector<16x1xf32>
    %538 = arith.mulf %45, %537 : vector<16x1xf32>
    %539 = arith.addf %535, %538 : vector<16x1xf32>
    %c0_101 = arith.constant 0 : index
    %c83 = arith.constant 83 : index
    %540 = vector.load %arg10[%c0_101, %c83] : memref<16x512xf32, #tpu.memory_space<vmem>>, vector<16x256xf32>
    %541 = vector.broadcast %539 : vector<16x1xf32> to vector<16x256xf32>
    %542 = arith.mulf %541, %540 : vector<16x256xf32>
    %543 = arith.addf %532, %542 : vector<16x256xf32>
    %c13 = arith.constant 13 : index
    %544 = memref.load %arg7[%c13] : memref<98xf32, #tpu.memory_space<smem>>
    %545 = vector.broadcast %544 : f32 to vector<16x1xf32>
    %546 = arith.mulf %43, %545 : vector<16x1xf32>
    %c62 = arith.constant 62 : index
    %547 = memref.load %arg7[%c62] : memref<98xf32, #tpu.memory_space<smem>>
    %548 = vector.broadcast %547 : f32 to vector<16x1xf32>
    %549 = arith.mulf %45, %548 : vector<16x1xf32>
    %550 = arith.addf %546, %549 : vector<16x1xf32>
    %c0_102 = arith.constant 0 : index
    %c99 = arith.constant 99 : index
    %551 = vector.load %arg10[%c0_102, %c99] : memref<16x512xf32, #tpu.memory_space<vmem>>, vector<16x256xf32>
    %552 = vector.broadcast %550 : vector<16x1xf32> to vector<16x256xf32>
    %553 = arith.mulf %552, %551 : vector<16x256xf32>
    %554 = arith.addf %543, %553 : vector<16x256xf32>
    %c20 = arith.constant 20 : index
    %555 = memref.load %arg7[%c20] : memref<98xf32, #tpu.memory_space<smem>>
    %556 = vector.broadcast %555 : f32 to vector<16x1xf32>
    %557 = arith.mulf %43, %556 : vector<16x1xf32>
    %c69 = arith.constant 69 : index
    %558 = memref.load %arg7[%c69] : memref<98xf32, #tpu.memory_space<smem>>
    %559 = vector.broadcast %558 : f32 to vector<16x1xf32>
    %560 = arith.mulf %45, %559 : vector<16x1xf32>
    %561 = arith.addf %557, %560 : vector<16x1xf32>
    %c0_103 = arith.constant 0 : index
    %c115 = arith.constant 115 : index
    %562 = vector.load %arg10[%c0_103, %c115] : memref<16x512xf32, #tpu.memory_space<vmem>>, vector<16x256xf32>
    %563 = vector.broadcast %561 : vector<16x1xf32> to vector<16x256xf32>
    %564 = arith.mulf %563, %562 : vector<16x256xf32>
    %565 = arith.addf %554, %564 : vector<16x256xf32>
    %c27 = arith.constant 27 : index
    %566 = memref.load %arg7[%c27] : memref<98xf32, #tpu.memory_space<smem>>
    %567 = vector.broadcast %566 : f32 to vector<16x1xf32>
    %568 = arith.mulf %43, %567 : vector<16x1xf32>
    %c76 = arith.constant 76 : index
    %569 = memref.load %arg7[%c76] : memref<98xf32, #tpu.memory_space<smem>>
    %570 = vector.broadcast %569 : f32 to vector<16x1xf32>
    %571 = arith.mulf %45, %570 : vector<16x1xf32>
    %572 = arith.addf %568, %571 : vector<16x1xf32>
    %c0_104 = arith.constant 0 : index
    %c131 = arith.constant 131 : index
    %573 = vector.load %arg10[%c0_104, %c131] : memref<16x512xf32, #tpu.memory_space<vmem>>, vector<16x256xf32>
    %574 = vector.broadcast %572 : vector<16x1xf32> to vector<16x256xf32>
    %575 = arith.mulf %574, %573 : vector<16x256xf32>
    %576 = arith.addf %565, %575 : vector<16x256xf32>
    %c34 = arith.constant 34 : index
    %577 = memref.load %arg7[%c34] : memref<98xf32, #tpu.memory_space<smem>>
    %578 = vector.broadcast %577 : f32 to vector<16x1xf32>
    %579 = arith.mulf %43, %578 : vector<16x1xf32>
    %c83_105 = arith.constant 83 : index
    %580 = memref.load %arg7[%c83_105] : memref<98xf32, #tpu.memory_space<smem>>
    %581 = vector.broadcast %580 : f32 to vector<16x1xf32>
    %582 = arith.mulf %45, %581 : vector<16x1xf32>
    %583 = arith.addf %579, %582 : vector<16x1xf32>
    %c0_106 = arith.constant 0 : index
    %c147 = arith.constant 147 : index
    %584 = vector.load %arg10[%c0_106, %c147] : memref<16x512xf32, #tpu.memory_space<vmem>>, vector<16x256xf32>
    %585 = vector.broadcast %583 : vector<16x1xf32> to vector<16x256xf32>
    %586 = arith.mulf %585, %584 : vector<16x256xf32>
    %587 = arith.addf %576, %586 : vector<16x256xf32>
    %c41 = arith.constant 41 : index
    %588 = memref.load %arg7[%c41] : memref<98xf32, #tpu.memory_space<smem>>
    %589 = vector.broadcast %588 : f32 to vector<16x1xf32>
    %590 = arith.mulf %43, %589 : vector<16x1xf32>
    %c90 = arith.constant 90 : index
    %591 = memref.load %arg7[%c90] : memref<98xf32, #tpu.memory_space<smem>>
    %592 = vector.broadcast %591 : f32 to vector<16x1xf32>
    %593 = arith.mulf %45, %592 : vector<16x1xf32>
    %594 = arith.addf %590, %593 : vector<16x1xf32>
    %c0_107 = arith.constant 0 : index
    %c163 = arith.constant 163 : index
    %595 = vector.load %arg10[%c0_107, %c163] : memref<16x512xf32, #tpu.memory_space<vmem>>, vector<16x256xf32>
    %596 = vector.broadcast %594 : vector<16x1xf32> to vector<16x256xf32>
    %597 = arith.mulf %596, %595 : vector<16x256xf32>
    %598 = arith.addf %587, %597 : vector<16x256xf32>
    %c48 = arith.constant 48 : index
    %599 = memref.load %arg7[%c48] : memref<98xf32, #tpu.memory_space<smem>>
    %600 = vector.broadcast %599 : f32 to vector<16x1xf32>
    %601 = arith.mulf %43, %600 : vector<16x1xf32>
    %c97_108 = arith.constant 97 : index
    %602 = memref.load %arg7[%c97_108] : memref<98xf32, #tpu.memory_space<smem>>
    %603 = vector.broadcast %602 : f32 to vector<16x1xf32>
    %604 = arith.mulf %45, %603 : vector<16x1xf32>
    %605 = arith.addf %601, %604 : vector<16x1xf32>
    %c0_109 = arith.constant 0 : index
    %c179 = arith.constant 179 : index
    %606 = vector.load %arg10[%c0_109, %c179] : memref<16x512xf32, #tpu.memory_space<vmem>>, vector<16x256xf32>
    %607 = vector.broadcast %605 : vector<16x1xf32> to vector<16x256xf32>
    %608 = arith.mulf %607, %606 : vector<16x256xf32>
    %609 = arith.addf %598, %608 : vector<16x256xf32>
    %c6_110 = arith.constant 6 : index
    %c0_111 = arith.constant 0 : index
    %610 = vector.load %arg6[%c6_110, %c0_111] : memref<7x256xf32, #tpu.memory_space<vmem>>, vector<1x256xf32>
    %611 = vector.broadcast %610 : vector<1x256xf32> to vector<16x256xf32>
    %612 = arith.mulf %609, %611 : vector<16x256xf32>
    %613 = arith.addf %126, %207 : vector<16x256xf32>
    %614 = arith.addf %288, %369 : vector<16x256xf32>
    %615 = arith.addf %613, %614 : vector<16x256xf32>
    %616 = arith.addf %450, %531 : vector<16x256xf32>
    %617 = arith.addf %616, %612 : vector<16x256xf32>
    %618 = arith.addf %615, %617 : vector<16x256xf32>
    %619 = vector.extract_strided_slice %618 {offsets = [0, 0], sizes = [8, 256], strides = [1, 1]} : vector<16x256xf32> to vector<8x256xf32>
    %620 = vector.extract_strided_slice %618 {offsets = [8, 0], sizes = [8, 256], strides = [1, 1]} : vector<16x256xf32> to vector<8x256xf32>
    %621 = arith.addf %619, %620 : vector<8x256xf32>
    %c0_112 = arith.constant 0 : index
    %622 = memref.load %arg8[%c0_112] : memref<2xf32, #tpu.memory_space<smem>>
    %623 = vector.broadcast %622 : f32 to vector<8x256xf32>
    %624 = arith.mulf %621, %623 : vector<8x256xf32>
    %c1_113 = arith.constant 1 : index
    %625 = memref.load %arg8[%c1_113] : memref<2xf32, #tpu.memory_space<smem>>
    %626 = vector.broadcast %625 : f32 to vector<8x256xf32>
    %627 = arith.addf %624, %626 : vector<8x256xf32>
    %628 = arith.negf %627 : vector<8x256xf32>
    %629 = math.exp %628 : vector<8x256xf32>
    %cst_114 = arith.constant 1.000000e+00 : f32
    %630 = vector.broadcast %cst_114 : f32 to vector<8x256xf32>
    %631 = arith.addf %630, %629 : vector<8x256xf32>
    %632 = arith.divf %630, %631 : vector<8x256xf32>
    %633 = vector.shape_cast %632 : vector<8x256xf32> to vector<8x1x256xf32>
    %634 = vector.broadcast %633 : vector<8x1x256xf32> to vector<8x32x256xf32>
    %635 = arith.mulf %28, %634 : vector<8x32x256xf32>
    %c0_115 = arith.constant 0 : index
    %c0_116 = arith.constant 0 : index
    %c0_117 = arith.constant 0 : index
    %636 = vector.load %arg9[%c0_115, %c0_116, %c0_117] : memref<8x32x256xf32, #tpu.memory_space<vmem>>, vector<8x32x256xf32>
    tpu.vector_store %arg9[%c0_115, %c0_116, %c0_117], %635 {strides = array<i32>} : memref<8x32x256xf32, #tpu.memory_space<vmem>>, vector<8x32x256xf32>,
    return
  }
  func.func @transform_0(%arg0: i32) -> (i32, i32, i32) {
    %c0_i32 = arith.constant 0 : i32
    %c0_i32_0 = arith.constant 0 : i32
    %c0_i32_1 = arith.constant 0 : i32
    return %arg0, %c0_i32, %c0_i32_0 : i32, i32, i32
  }
  func.func @transform_1(%arg0: i32) -> (i32, i32) {
    %c0_i32 = arith.constant 0 : i32
    %c0_i32_0 = arith.constant 0 : i32
    %c0_i32_1 = arith.constant 0 : i32
    return %c0_i32, %c0_i32_0 : i32, i32
  }
  func.func @transform_2(%arg0: i32) -> (i32, i32) {
    %c0_i32 = arith.constant 0 : i32
    %c0_i32_0 = arith.constant 0 : i32
    %c0_i32_1 = arith.constant 0 : i32
    return %c0_i32, %c0_i32_0 : i32, i32
  }
  func.func @transform_3(%arg0: i32) -> (i32, i32) {
    %c0_i32 = arith.constant 0 : i32
    %c0_i32_0 = arith.constant 0 : i32
    %c0_i32_1 = arith.constant 0 : i32
    return %c0_i32, %c0_i32_0 : i32, i32
  }
  func.func @transform_4(%arg0: i32) -> (i32, i32) {
    %c0_i32 = arith.constant 0 : i32
    %c0_i32_0 = arith.constant 0 : i32
    %c0_i32_1 = arith.constant 0 : i32
    return %c0_i32, %c0_i32_0 : i32, i32
  }
  func.func @transform_5(%arg0: i32) -> (i32, i32) {
    %c0_i32 = arith.constant 0 : i32
    %c0_i32_0 = arith.constant 0 : i32
    %c0_i32_1 = arith.constant 0 : i32
    return %c0_i32, %c0_i32_0 : i32, i32
  }
  func.func @transform_6(%arg0: i32) -> i32 {
    %c0_i32 = arith.constant 0 : i32
    %c0_i32_0 = arith.constant 0 : i32
    return %c0_i32 : i32
  }
  func.func @transform_7(%arg0: i32) -> i32 {
    %c0_i32 = arith.constant 0 : i32
    %c0_i32_0 = arith.constant 0 : i32
    return %c0_i32 : i32
  }
  func.func @transform_8(%arg0: i32) -> (i32, i32, i32) {
    %c0_i32 = arith.constant 0 : i32
    %c0_i32_0 = arith.constant 0 : i32
    %c0_i32_1 = arith.constant 0 : i32
    return %arg0, %c0_i32, %c0_i32_0 : i32, i32, i32
  }
}

</mosaic_0001>

<llo_original>
// kernel: tpu_custom_call.1
$region0: #{tpu_custom_call.1}
  #allocation0 [shape = 'u32[]', space=smem, size = 0x4, offset = 0x4, fixed_abs, tag = 'smem constant byte address 0x4 - core index']
  #allocation1 [shape = 'u32[72,128]{1,0:T(1,128)}', space=vmem, size = 0x9000, scoped, tag = 'internal scratch']
  #allocation2 [shape = 'f32[16,512]{1,0:T(8,128)}', space=vmem, size = 0x8000, scoped, tag = 'scratch operand']
  %s0 = inlined_call_operand.hbm [shape: f32[8,32,256], index: 0, kind: input, shape index: {}]
  %s1 = inlined_call_operand.vmem [shape: f32[32,8], index: 1, kind: input, shape index: {}]
  %s2 = inlined_call_operand.vmem [shape: f32[1,8], index: 2, kind: input, shape index: {}]
  %s3 = inlined_call_operand.vmem [shape: f32[8,32], index: 3, kind: input, shape index: {}]
  %s4 = inlined_call_operand.vmem [shape: f32[1,32], index: 4, kind: input, shape index: {}]
  %s5 = inlined_call_operand.vmem [shape: f32[7,256], index: 5, kind: input, shape index: {}]
  %s6 = inlined_call_operand.vmem [shape: f32[98], index: 6, kind: input, shape index: {}]
  %s7 = inlined_call_operand.vmem [shape: f32[2], index: 7, kind: input, shape index: {}]
  %s8 = inlined_call_operand.hbm [shape: f32[8,32,256], index: 8, kind: output, shape index: {}]
  %s9 = sld [smem:[#allocation0]]
  $region54: #{tpu_custom_call.1} parent=0
    _
  %s11 = ssub.s32 1, %s9
  %s12 = scalar_select 0, %s11, %s9
  $region1: #{tpu_custom_call.1} parent=0
    #allocation3 [shape = 'u8[262144]{0}', space=vmem, size = 0x40000, scoped, tag = 'input window, operand 0, single buffered']
    #allocation4 [shape = 's32[1]{0}', space=sflag, size = 0x4, scoped, tag = 'scoped memory for tpu_custom_call.1']
    #allocation5 [shape = 's32[1]{0}', space=sflag, size = 0x4, scoped, tag = 'scoped memory for tpu_custom_call.1']
    #allocation6 [shape = 's32[1]{0}', space=sflag, size = 0x4, scoped, tag = 'scoped memory for tpu_custom_call.1']
    #allocation7 [shape = 'u8[512]{0}', space=smem, size = 0x200, scoped, tag = 'input window, operand 6, single buffered']
    #allocation8 [shape = 'u8[512]{0}', space=smem, size = 0x200, scoped, tag = 'input window, operand 7, single buffered']
    #allocation9 [shape = 's32[1]{0}', space=sflag, size = 0x4, scoped, tag = 'scoped memory for tpu_custom_call.1']
    #allocation10 [shape = 'u8[262144]{0}', space=vmem, size = 0x40000, scoped, tag = 'output window, operand 0, single buffered']
    %13 = vsyncpa [#allocation4], 0
    %14 = vsyncpa [#allocation6], 0
    %15 = vsyncpa [#allocation9], 0
    %16 = vsyncpa [#allocation5], 0
    // Predicated region
    $region2: #{tpu_custom_call.1} parent=1 // pred_check
      _
    $region3: #{tpu_custom_call.1} parent=1 // pred_check_branch
      %18 = sbr.rel (0) target = $region5
    $region4: #{tpu_custom_call.1} parent=1 // pred_region
      %20 = vsyncadd [#allocation4], 0
      %s21 = sshll.u32 %s0, 4
      %s22 = int_to_ptr.hbm [resolvable:$true] %s21
      %s23 = sshll.u32 [#allocation3], 4
      %s24 = int_to_ptr.vmem [resolvable:$true] %s23
      %29 = dma.hbm_to_vmem [thread:$0]  %s22, 8192, %s24, [#allocation4], 256, 256, 16
    $region5: #{tpu_custom_call.1} parent=1 // pred_fallthru
      _
    // Predicated region
    $region6: #{tpu_custom_call.1} parent=1 // pred_check
      _
    $region7: #{tpu_custom_call.1} parent=1 // pred_check_branch
      %31 = sbr.rel (0) target = $region9
    $region8: #{tpu_custom_call.1} parent=1 // pred_region
      _
    $region9: #{tpu_custom_call.1} parent=1 // pred_fallthru
      _
    // Predicated region
    $region10: #{tpu_custom_call.1} parent=1 // pred_check
      _
    $region11: #{tpu_custom_call.1} parent=1 // pred_check_branch
      %33 = sbr.rel (0) target = $region13
    $region12: #{tpu_custom_call.1} parent=1 // pred_region
      _
    $region13: #{tpu_custom_call.1} parent=1 // pred_fallthru
      _
    // Predicated region
    $region14: #{tpu_custom_call.1} parent=1 // pred_check
      _
    $region15: #{tpu_custom_call.1} parent=1 // pred_check_branch
      %35 = sbr.rel (0) target = $region17
    $region16: #{tpu_custom_call.1} parent=1 // pred_region
      _
    $region17: #{tpu_custom_call.1} parent=1 // pred_fallthru
      _
    // Predicated region
    $region18: #{tpu_custom_call.1} parent=1 // pred_check
      _
    $region19: #{tpu_custom_call.1} parent=1 // pred_check_branch
      %37 = sbr.rel (0) target = $region21
    $region20: #{tpu_custom_call.1} parent=1 // pred_region
      _
    $region21: #{tpu_custom_call.1} parent=1 // pred_fallthru
      _
    // Predicated region
    $region22: #{tpu_custom_call.1} parent=1 // pred_check
      _
    $region23: #{tpu_custom_call.1} parent=1 // pred_check_branch
      %39 = sbr.rel (0) target = $region25
    $region24: #{tpu_custom_call.1} parent=1 // pred_region
      _
    $region25: #{tpu_custom_call.1} parent=1 // pred_fallthru
      _
    // Predicated region
    $region26: #{tpu_custom_call.1} parent=1 // pred_check
      _
    $region27: #{tpu_custom_call.1} parent=1 // pred_check_branch
      %41 = sbr.rel (0) target = $region29
    $region28: #{tpu_custom_call.1} parent=1 // pred_region
      %43 = vsyncadd [#allocation6], 0
      %s45 = sshll.u32 %s6, 4
      %s46 = int_to_ptr.vmem [resolvable:$true] %s45
      %48 = dma.vmem_to_smem %s46, 16, [#allocation7], [#allocation6]
    $region29: #{tpu_custom_call.1} parent=1 // pred_fallthru
      _
    // Predicated region
    $region30: #{tpu_custom_call.1} parent=1 // pred_check
      _
    $region31: #{tpu_custom_call.1} parent=1 // pred_check_branch
      %50 = sbr.rel (0) target = $region33
    $region32: #{tpu_custom_call.1} parent=1 // pred_region
      %52 = vsyncadd [#allocation9], 0
      %s54 = sshll.u32 %s7, 4
      %s55 = int_to_ptr.vmem [resolvable:$true] %s54
      %57 = dma.vmem_to_smem %s55, 16, [#allocation8], [#allocation9]
    $region33: #{tpu_custom_call.1} parent=1 // pred_fallthru
      _
    // Predicated region
    $region34: #{tpu_custom_call.1} parent=1 // pred_check
      _
    $region35: #{tpu_custom_call.1} parent=1 // pred_check_branch
      %59 = sbr.rel (0) target = $region37
    $region36: #{tpu_custom_call.1} parent=1 // pred_region
      %61 = dma.done [#allocation4], 8192
    $region37: #{tpu_custom_call.1} parent=1 // pred_fallthru
      _
    // Predicated region
    $region38: #{tpu_custom_call.1} parent=1 // pred_check
      _
    $region39: #{tpu_custom_call.1} parent=1 // pred_check_branch
      %63 = sbr.rel (0) target = $region41
    $region40: #{tpu_custom_call.1} parent=1 // pred_region
      %65 = dma.done [#allocation6], 16
    $region41: #{tpu_custom_call.1} parent=1 // pred_fallthru
      _
    // Predicated region
    $region42: #{tpu_custom_call.1} parent=1 // pred_check
      _
    $region43: #{tpu_custom_call.1} parent=1 // pred_check_branch
      %67 = sbr.rel (0) target = $region45
    $region44: #{tpu_custom_call.1} parent=1 // pred_region
      %69 = dma.done [#allocation9], 16
    $region45: #{tpu_custom_call.1} parent=1 // pred_fallthru
      _
    %70 = sfence
    %v71 = vld [vmem:[#allocation3] sm:$0xff]
    %v72 = vld [vmem:[#allocation3 + $0x8] sm:$0xff]
    %v73 = vld [vmem:[#allocation3 + $0x10] sm:$0xff]
    %v74 = vld [vmem:[#allocation3 + $0x18] sm:$0xff]
    %v75 = vld [vmem:[#allocation3 + $0x20] sm:$0xff]
    %v76 = vld [vmem:[#allocation3 + $0x28] sm:$0xff]
    %v77 = vld [vmem:[#allocation3 + $0x30] sm:$0xff]
    %v78 = vld [vmem:[#allocation3 + $0x38] sm:$0xff]
    %v79 = vld [vmem:[#allocation3 + $0x40] sm:$0xff]
    %v80 = vld [vmem:[#allocation3 + $0x48] sm:$0xff]
    %v81 = vld [vmem:[#allocation3 + $0x50] sm:$0xff]
    %v82 = vld [vmem:[#allocation3 + $0x58] sm:$0xff]
    %v83 = vld [vmem:[#allocation3 + $0x60] sm:$0xff]
    %v84 = vld [vmem:[#allocation3 + $0x68] sm:$0xff]
    %v85 = vld [vmem:[#allocation3 + $0x70] sm:$0xff]
    %v86 = vld [vmem:[#allocation3 + $0x78] sm:$0xff]
    %v87 = vld [vmem:[#allocation3 + $0x80] sm:$0xff]
    %v88 = vld [vmem:[#allocation3 + $0x88] sm:$0xff]
    %v89 = vld [vmem:[#allocation3 + $0x90] sm:$0xff]
    %v90 = vld [vmem:[#allocation3 + $0x98] sm:$0xff]
    %v91 = vld [vmem:[#allocation3 + $0xa0] sm:$0xff]
    %v92 = vld [vmem:[#allocation3 + $0xa8] sm:$0xff]
    %v93 = vld [vmem:[#allocation3 + $0xb0] sm:$0xff]
    %v94 = vld [vmem:[#allocation3 + $0xb8] sm:$0xff]
    %v95 = vld [vmem:[#allocation3 + $0xc0] sm:$0xff]
    %v96 = vld [vmem:[#allocation3 + $0xc8] sm:$0xff]
    %v97 = vld [vmem:[#allocation3 + $0xd0] sm:$0xff]
    %v98 = vld [vmem:[#allocation3 + $0xd8] sm:$0xff]
    %v99 = vld [vmem:[#allocation3 + $0xe0] sm:$0xff]
    %v100 = vld [vmem:[#allocation3 + $0xe8] sm:$0xff]
    %v101 = vld [vmem:[#allocation3 + $0xf0] sm:$0xff]
    %v102 = vld [vmem:[#allocation3 + $0xf8] sm:$0xff]
    %v103 = vld [vmem:[#allocation3 + $0x100] sm:$0xff]
    %v104 = vld [vmem:[#allocation3 + $0x108] sm:$0xff]
    %v105 = vld [vmem:[#allocation3 + $0x110] sm:$0xff]
    %v106 = vld [vmem:[#allocation3 + $0x118] sm:$0xff]
    %v107 = vld [vmem:[#allocation3 + $0x120] sm:$0xff]
    %v108 = vld [vmem:[#allocation3 + $0x128] sm:$0xff]
    %v109 = vld [vmem:[#allocation3 + $0x130] sm:$0xff]
    %v110 = vld [vmem:[#allocation3 + $0x138] sm:$0xff]
    %v111 = vld [vmem:[#allocation3 + $0x140] sm:$0xff]
    %v112 = vld [vmem:[#allocation3 + $0x148] sm:$0xff]
    %v113 = vld [vmem:[#allocation3 + $0x150] sm:$0xff]
    %v114 = vld [vmem:[#allocation3 + $0x158] sm:$0xff]
    %v115 = vld [vmem:[#allocation3 + $0x160] sm:$0xff]
    %v116 = vld [vmem:[#allocation3 + $0x168] sm:$0xff]
    %v117 = vld [vmem:[#allocation3 + $0x170] sm:$0xff]
    %v118 = vld [vmem:[#allocation3 + $0x178] sm:$0xff]
    %v119 = vld [vmem:[#allocation3 + $0x180] sm:$0xff]
    %v120 = vld [vmem:[#allocation3 + $0x188] sm:$0xff]
    %v121 = vld [vmem:[#allocation3 + $0x190] sm:$0xff]
    %v122 = vld [vmem:[#allocation3 + $0x198] sm:$0xff]
    %v123 = vld [vmem:[#allocation3 + $0x1a0] sm:$0xff]
    %v124 = vld [vmem:[#allocation3 + $0x1a8] sm:$0xff]
    %v125 = vld [vmem:[#allocation3 + $0x1b0] sm:$0xff]
    %v126 = vld [vmem:[#allocation3 + $0x1b8] sm:$0xff]
    %v127 = vld [vmem:[#allocation3 + $0x1c0] sm:$0xff]
    %v128 = vld [vmem:[#allocation3 + $0x1c8] sm:$0xff]
    %v129 = vld [vmem:[#allocation3 + $0x1d0] sm:$0xff]
    %v130 = vld [vmem:[#allocation3 + $0x1d8] sm:$0xff]
    %v131 = vld [vmem:[#allocation3 + $0x1e0] sm:$0xff]
    %v132 = vld [vmem:[#allocation3 + $0x1e8] sm:$0xff]
    %v133 = vld [vmem:[#allocation3 + $0x1f0] sm:$0xff]
    %v134 = vld [vmem:[#allocation3 + $0x1f8] sm:$0xff]
    %v135 = vadd.f32 %v71, %v72
    %136 = vadd.xlane.f32.xlu0 %v135
    %v137 = vpop.xlane.xlu0 %136
    %v138 = vadd.f32 %v73, %v74
    %139 = vadd.xlane.f32.xlu0 %v138
    %v140 = vpop.xlane.xlu0 %139
    %v141 = vadd.f32 %v75, %v76
    %142 = vadd.xlane.f32.xlu0 %v141
    %v143 = vpop.xlane.xlu0 %142
    %v144 = vadd.f32 %v77, %v78
    %145 = vadd.xlane.f32.xlu0 %v144
    %v146 = vpop.xlane.xlu0 %145
    %v147 = vadd.f32 %v79, %v80
    %148 = vadd.xlane.f32.xlu0 %v147
    %v149 = vpop.xlane.xlu0 %148
    %v150 = vadd.f32 %v81, %v82
    %151 = vadd.xlane.f32.xlu0 %v150
    %v152 = vpop.xlane.xlu0 %151
    %v153 = vadd.f32 %v83, %v84
    %154 = vadd.xlane.f32.xlu0 %v153
    %v155 = vpop.xlane.xlu0 %154
    %v156 = vadd.f32 %v85, %v86
    %157 = vadd.xlane.f32.xlu0 %v156
    %v158 = vpop.xlane.xlu0 %157
    %v159 = vadd.f32 %v87, %v88
    %160 = vadd.xlane.f32.xlu0 %v159
    %v161 = vpop.xlane.xlu0 %160
    %v162 = vadd.f32 %v89, %v90
    %163 = vadd.xlane.f32.xlu0 %v162
    %v164 = vpop.xlane.xlu0 %163
    %v165 = vadd.f32 %v91, %v92
    %166 = vadd.xlane.f32.xlu0 %v165
    %v167 = vpop.xlane.xlu0 %166
    %v168 = vadd.f32 %v93, %v94
    %169 = vadd.xlane.f32.xlu0 %v168
    %v170 = vpop.xlane.xlu0 %169
    %v171 = vadd.f32 %v95, %v96
    %172 = vadd.xlane.f32.xlu0 %v171
    %v173 = vpop.xlane.xlu0 %172
    %v174 = vadd.f32 %v97, %v98
    %175 = vadd.xlane.f32.xlu0 %v174
    %v176 = vpop.xlane.xlu0 %175
    %v177 = vadd.f32 %v99, %v100
    %178 = vadd.xlane.f32.xlu0 %v177
    %v179 = vpop.xlane.xlu0 %178
    %v180 = vadd.f32 %v101, %v102
    %181 = vadd.xlane.f32.xlu0 %v180
    %v182 = vpop.xlane.xlu0 %181
    %v183 = vadd.f32 %v103, %v104
    %184 = vadd.xlane.f32.xlu0 %v183
    %v185 = vpop.xlane.xlu0 %184
    %v186 = vadd.f32 %v105, %v106
    %187 = vadd.xlane.f32.xlu0 %v186
    %v188 = vpop.xlane.xlu0 %187
    %v189 = vadd.f32 %v107, %v108
    %190 = vadd.xlane.f32.xlu0 %v189
    %v191 = vpop.xlane.xlu0 %190
    %v192 = vadd.f32 %v109, %v110
    %193 = vadd.xlane.f32.xlu0 %v192
    %v194 = vpop.xlane.xlu0 %193
    %v195 = vadd.f32 %v111, %v112
    %196 = vadd.xlane.f32.xlu0 %v195
    %v197 = vpop.xlane.xlu0 %196
    %v198 = vadd.f32 %v113, %v114
    %199 = vadd.xlane.f32.xlu0 %v198
    %v200 = vpop.xlane.xlu0 %199
    %v201 = vadd.f32 %v115, %v116
    %202 = vadd.xlane.f32.xlu0 %v201
    %v203 = vpop.xlane.xlu0 %202
    %v204 = vadd.f32 %v117, %v118
    %205 = vadd.xlane.f32.xlu0 %v204
    %v206 = vpop.xlane.xlu0 %205
    %v207 = vadd.f32 %v119, %v120
    %208 = vadd.xlane.f32.xlu0 %v207
    %v209 = vpop.xlane.xlu0 %208
    %v210 = vadd.f32 %v121, %v122
    %211 = vadd.xlane.f32.xlu0 %v210
    %v212 = vpop.xlane.xlu0 %211
    %v213 = vadd.f32 %v123, %v124
    %214 = vadd.xlane.f32.xlu0 %v213
    %v215 = vpop.xlane.xlu0 %214
    %v216 = vadd.f32 %v125, %v126
    %217 = vadd.xlane.f32.xlu0 %v216
    %v218 = vpop.xlane.xlu0 %217
    %v219 = vadd.f32 %v127, %v128
    %220 = vadd.xlane.f32.xlu0 %v219
    %v221 = vpop.xlane.xlu0 %220
    %v222 = vadd.f32 %v129, %v130
    %223 = vadd.xlane.f32.xlu0 %v222
    %v224 = vpop.xlane.xlu0 %223
    %v225 = vadd.f32 %v131, %v132
    %226 = vadd.xlane.f32.xlu0 %v225
    %v227 = vpop.xlane.xlu0 %226
    %v228 = vadd.f32 %v133, %v134
    %229 = vadd.xlane.f32.xlu0 %v228
    %v230 = vpop.xlane.xlu0 %229
    %v231 = vrcp.pop 256.0
    %v232 = vmul.f32 256.0, %v231
    %v233 = vsub.f32 1.0, %v232
    %v234 = vmul.f32 %v231, %v233
    %v235 = vadd.f32 %v231, %v234
    %vm236 = vweird.f32 %v231
    %v237 = vsel %vm236, %v231, %v235
    %v238 = vmul.f32 %v137, %v237
    %v239 = vmul.f32 %v140, %v237
    %v240 = vmul.f32 %v143, %v237
    %v241 = vmul.f32 %v146, %v237
    %v242 = vmul.f32 %v149, %v237
    %v243 = vmul.f32 %v152, %v237
    %v244 = vmul.f32 %v155, %v237
    %v245 = vmul.f32 %v158, %v237
    %v246 = vmul.f32 %v161, %v237
    %v247 = vmul.f32 %v164, %v237
    %v248 = vmul.f32 %v167, %v237
    %v249 = vmul.f32 %v170, %v237
    %v250 = vmul.f32 %v173, %v237
    %v251 = vmul.f32 %v176, %v237
    %v252 = vmul.f32 %v179, %v237
    %v253 = vmul.f32 %v182, %v237
    %v254 = vmul.f32 %v185, %v237
    %v255 = vmul.f32 %v188, %v237
    %v256 = vmul.f32 %v191, %v237
    %v257 = vmul.f32 %v194, %v237
    %v258 = vmul.f32 %v197, %v237
    %v259 = vmul.f32 %v200, %v237
    %v260 = vmul.f32 %v203, %v237
    %v261 = vmul.f32 %v206, %v237
    %v262 = vmul.f32 %v209, %v237
    %v263 = vmul.f32 %v212, %v237
    %v264 = vmul.f32 %v215, %v237
    %v265 = vmul.f32 %v218, %v237
    %v266 = vmul.f32 %v221, %v237
    %v267 = vmul.f32 %v224, %v237
    %v268 = vmul.f32 %v227, %v237
    %v269 = vmul.f32 %v230, %v237
    %v270 = vmax.f32 %v71, %v72
    %271 = vmax.xlane.f32.xlu0 %v270
    %v272 = vpop.xlane.xlu0 %271
    %v273 = vmax.f32 %v73, %v74
    %274 = vmax.xlane.f32.xlu0 %v273
    %v275 = vpop.xlane.xlu0 %274
    %v276 = vmax.f32 %v75, %v76
    %277 = vmax.xlane.f32.xlu0 %v276
    %v278 = vpop.xlane.xlu0 %277
    %v279 = vmax.f32 %v77, %v78
    %280 = vmax.xlane.f32.xlu0 %v279
    %v281 = vpop.xlane.xlu0 %280
    %v282 = vmax.f32 %v79, %v80
    %283 = vmax.xlane.f32.xlu0 %v282
    %v284 = vpop.xlane.xlu0 %283
    %v285 = vmax.f32 %v81, %v82
    %286 = vmax.xlane.f32.xlu0 %v285
    %v287 = vpop.xlane.xlu0 %286
    %v288 = vmax.f32 %v83, %v84
    %289 = vmax.xlane.f32.xlu0 %v288
    %v290 = vpop.xlane.xlu0 %289
    %v291 = vmax.f32 %v85, %v86
    %292 = vmax.xlane.f32.xlu0 %v291
    %v293 = vpop.xlane.xlu0 %292
    %v294 = vmax.f32 %v87, %v88
    %295 = vmax.xlane.f32.xlu0 %v294
    %v296 = vpop.xlane.xlu0 %295
    %v297 = vmax.f32 %v89, %v90
    %298 = vmax.xlane.f32.xlu0 %v297
    %v299 = vpop.xlane.xlu0 %298
    %v300 = vmax.f32 %v91, %v92
    %301 = vmax.xlane.f32.xlu0 %v300
    %v302 = vpop.xlane.xlu0 %301
    %v303 = vmax.f32 %v93, %v94
    %304 = vmax.xlane.f32.xlu0 %v303
    %v305 = vpop.xlane.xlu0 %304
    %v306 = vmax.f32 %v95, %v96
    %307 = vmax.xlane.f32.xlu0 %v306
    %v308 = vpop.xlane.xlu0 %307
    %v309 = vmax.f32 %v97, %v98
    %310 = vmax.xlane.f32.xlu0 %v309
    %v311 = vpop.xlane.xlu0 %310
    %v312 = vmax.f32 %v99, %v100
    %313 = vmax.xlane.f32.xlu0 %v312
    %v314 = vpop.xlane.xlu0 %313
    %v315 = vmax.f32 %v101, %v102
    %316 = vmax.xlane.f32.xlu0 %v315
    %v317 = vpop.xlane.xlu0 %316
    %v318 = vmax.f32 %v103, %v104
    %319 = vmax.xlane.f32.xlu0 %v318
    %v320 = vpop.xlane.xlu0 %319
    %v321 = vmax.f32 %v105, %v106
    %322 = vmax.xlane.f32.xlu0 %v321
    %v323 = vpop.xlane.xlu0 %322
    %v324 = vmax.f32 %v107, %v108
    %325 = vmax.xlane.f32.xlu0 %v324
    %v326 = vpop.xlane.xlu0 %325
    %v327 = vmax.f32 %v109, %v110
    %328 = vmax.xlane.f32.xlu0 %v327
    %v329 = vpop.xlane.xlu0 %328
    %v330 = vmax.f32 %v111, %v112
    %331 = vmax.xlane.f32.xlu0 %v330
    %v332 = vpop.xlane.xlu0 %331
    %v333 = vmax.f32 %v113, %v114
    %334 = vmax.xlane.f32.xlu0 %v333
    %v335 = vpop.xlane.xlu0 %334
    %v336 = vmax.f32 %v115, %v116
    %337 = vmax.xlane.f32.xlu0 %v336
    %v338 = vpop.xlane.xlu0 %337
    %v339 = vmax.f32 %v117, %v118
    %340 = vmax.xlane.f32.xlu0 %v339
    %v341 = vpop.xlane.xlu0 %340
    %v342 = vmax.f32 %v119, %v120
    %343 = vmax.xlane.f32.xlu0 %v342
    %v344 = vpop.xlane.xlu0 %343
    %v345 = vmax.f32 %v121, %v122
    %346 = vmax.xlane.f32.xlu0 %v345
    %v347 = vpop.xlane.xlu0 %346
    %v348 = vmax.f32 %v123, %v124
    %349 = vmax.xlane.f32.xlu0 %v348
    %v350 = vpop.xlane.xlu0 %349
    %v351 = vmax.f32 %v125, %v126
    %352 = vmax.xlane.f32.xlu0 %v351
    %v353 = vpop.xlane.xlu0 %352
    %v354 = vmax.f32 %v127, %v128
    %355 = vmax.xlane.f32.xlu0 %v354
    %v356 = vpop.xlane.xlu0 %355
    %v357 = vmax.f32 %v129, %v130
    %358 = vmax.xlane.f32.xlu0 %v357
    %v359 = vpop.xlane.xlu0 %358
    %v360 = vmax.f32 %v131, %v132
    %361 = vmax.xlane.f32.xlu0 %v360
    %v362 = vpop.xlane.xlu0 %361
    %v363 = vmax.f32 %v133, %v134
    %364 = vmax.xlane.f32.xlu0 %v363
    %v365 = vpop.xlane.xlu0 %364
    %v398 = vlaneseq
    %v399 = vand.u32 %v398, 127
    %v400 = vperm.slane %v238, %v399
    %v401 = vadd.s32 %v399, 4294967288
    %v402 = vperm.slane %v239, %v401
    %vm403 = vcmask 130112
    %v404 = vsel %vm403, %v402, %v400
    %v405 = vadd.s32 %v399, 4294967280
    %v406 = vperm.slane %v240, %v405
    %vm407 = vcmask 195712
    %v408 = vsel %vm407, %v406, %v404
    %v409 = vadd.s32 %v399, 4294967272
    %v410 = vperm.slane %v241, %v409
    %vm411 = vcmask 261312
    %v412 = vsel %vm411, %v410, %v408
    %v413 = vperm.slane %v242, %v399
    %v414 = vperm.slane %v243, %v401
    %v415 = vsel %vm403, %v414, %v413
    %v416 = vperm.slane %v244, %v405
    %v417 = vsel %vm407, %v416, %v415
    %v418 = vperm.slane %v245, %v409
    %v419 = vsel %vm411, %v418, %v417
    %v420 = vperm.slane %v246, %v399
    %v421 = vperm.slane %v247, %v401
    %v422 = vsel %vm403, %v421, %v420
    %v423 = vperm.slane %v248, %v405
    %v424 = vsel %vm407, %v423, %v422
    %v425 = vperm.slane %v249, %v409
    %v426 = vsel %vm411, %v425, %v424
    %v427 = vperm.slane %v250, %v399
    %v428 = vperm.slane %v251, %v401
    %v429 = vsel %vm403, %v428, %v427
    %v430 = vperm.slane %v252, %v405
    %v431 = vsel %vm407, %v430, %v429
    %v432 = vperm.slane %v253, %v409
    %v433 = vsel %vm411, %v432, %v431
    %v434 = vperm.slane %v254, %v399
    %v435 = vperm.slane %v255, %v401
    %v436 = vsel %vm403, %v435, %v434
    %v437 = vperm.slane %v256, %v405
    %v438 = vsel %vm407, %v437, %v436
    %v439 = vperm.slane %v257, %v409
    %v440 = vsel %vm411, %v439, %v438
    %v441 = vperm.slane %v258, %v399
    %v442 = vperm.slane %v259, %v401
    %v443 = vsel %vm403, %v442, %v441
    %v444 = vperm.slane %v260, %v405
    %v445 = vsel %vm407, %v444, %v443
    %v446 = vperm.slane %v261, %v409
    %v447 = vsel %vm411, %v446, %v445
    %v448 = vperm.slane %v262, %v399
    %v449 = vperm.slane %v263, %v401
    %v450 = vsel %vm403, %v449, %v448
    %v451 = vperm.slane %v264, %v405
    %v452 = vsel %vm407, %v451, %v450
    %v453 = vperm.slane %v265, %v409
    %v454 = vsel %vm411, %v453, %v452
    %v455 = vperm.slane %v266, %v399
    %v456 = vperm.slane %v267, %v401
    %v457 = vsel %vm403, %v456, %v455
    %v458 = vperm.slane %v268, %v405
    %v459 = vsel %vm407, %v458, %v457
    %v460 = vperm.slane %v269, %v409
    %v461 = vsel %vm411, %v460, %v459
    %vm462 = vcmask 1041409
    %v463 = vsel %vm462, %v419, %v412
    %vm464 = vcmask 1042434
    %v465 = vsel %vm464, %v426, %v463
    %vm466 = vcmask 1043459
    %v467 = vsel %vm466, %v433, %v465
    %vm468 = vcmask 1044484
    %v469 = vsel %vm468, %v440, %v467
    %vm470 = vcmask 1045509
    %v471 = vsel %vm470, %v447, %v469
    %vm472 = vcmask 1046534
    %v473 = vsel %vm472, %v454, %v471
    %vm474 = vcmask 1047559
    %v475 = vsel %vm474, %v461, %v473
    %v508 = vperm.slane %v272, %v399
    %v509 = vperm.slane %v275, %v401
    %v510 = vsel %vm403, %v509, %v508
    %v511 = vperm.slane %v278, %v405
    %v512 = vsel %vm407, %v511, %v510
    %v513 = vperm.slane %v281, %v409
    %v514 = vsel %vm411, %v513, %v512
    %v515 = vperm.slane %v284, %v399
    %v516 = vperm.slane %v287, %v401
    %v517 = vsel %vm403, %v516, %v515
    %v518 = vperm.slane %v290, %v405
    %v519 = vsel %vm407, %v518, %v517
    %v520 = vperm.slane %v293, %v409
    %v521 = vsel %vm411, %v520, %v519
    %v522 = vperm.slane %v296, %v399
    %v523 = vperm.slane %v299, %v401
    %v524 = vsel %vm403, %v523, %v522
    %v525 = vperm.slane %v302, %v405
    %v526 = vsel %vm407, %v525, %v524
    %v527 = vperm.slane %v305, %v409
    %v528 = vsel %vm411, %v527, %v526
    %v529 = vperm.slane %v308, %v399
    %v530 = vperm.slane %v311, %v401
    %v531 = vsel %vm403, %v530, %v529
    %v532 = vperm.slane %v314, %v405
    %v533 = vsel %vm407, %v532, %v531
    %v534 = vperm.slane %v317, %v409
    %v535 = vsel %vm411, %v534, %v533
    %v536 = vperm.slane %v320, %v399
    %v537 = vperm.slane %v323, %v401
    %v538 = vsel %vm403, %v537, %v536
    %v539 = vperm.slane %v326, %v405
    %v540 = vsel %vm407, %v539, %v538
    %v541 = vperm.slane %v329, %v409
    %v542 = vsel %vm411, %v541, %v540
    %v543 = vperm.slane %v332, %v399
    %v544 = vperm.slane %v335, %v401
    %v545 = vsel %vm403, %v544, %v543
    %v546 = vperm.slane %v338, %v405
    %v547 = vsel %vm407, %v546, %v545
    %v548 = vperm.slane %v341, %v409
    %v549 = vsel %vm411, %v548, %v547
    %v550 = vperm.slane %v344, %v399
    %v551 = vperm.slane %v347, %v401
    %v552 = vsel %vm403, %v551, %v550
    %v553 = vperm.slane %v350, %v405
    %v554 = vsel %vm407, %v553, %v552
    %v555 = vperm.slane %v353, %v409
    %v556 = vsel %vm411, %v555, %v554
    %v557 = vperm.slane %v356, %v399
    %v558 = vperm.slane %v359, %v401
    %v559 = vsel %vm403, %v558, %v557
    %v560 = vperm.slane %v362, %v405
    %v561 = vsel %vm407, %v560, %v559
    %v562 = vperm.slane %v365, %v409
    %v563 = vsel %vm411, %v562, %v561
    %v564 = vsel %vm462, %v521, %v514
    %v565 = vsel %vm464, %v528, %v564
    %v566 = vsel %vm466, %v535, %v565
    %v567 = vsel %vm468, %v542, %v566
    %v568 = vsel %vm470, %v549, %v567
    %v569 = vsel %vm472, %v556, %v568
    %v570 = vsel %vm474, %v563, %v569
    %v571 = vld [vmem:[%s1] sm:$0xff]
    %v572 = vld [vmem:[%s1 + $0x8] sm:$0xff]
    %v573 = vld [vmem:[%s1 + $0x10] sm:$0xff]
    %v574 = vld [vmem:[%s1 + $0x18] sm:$0xff]
    %v575 = vld [vmem:[%s2] sm:$0x1]
    %v577 = vperm.slane %v575, 0
    %vm579 = vcmask 261120
    %v580 = vsel %vm579, %v475, 0
    %v582 = vsel %vm579, %v570, 0
    %584 = vmatpush.msra.mxu0 0.0
    %585 = vmatpush.msra.mxu0 0.0
    %586 = vmatpush.msra.mxu0 0.0
    %587 = vmatpush.msra.mxu0 0.0
    %588 = vmatpush.msra.mxu0 0.0
    %589 = vmatpush.msra.mxu0 0.0
    %590 = vmatpush.msra.mxu0 0.0
    %591 = vmatpush.msra.mxu0 0.0
    %592 = vmatpush.msra.mxu0 0.0
    %593 = vmatpush.msra.mxu0 0.0
    %594 = vmatpush.msra.mxu0 0.0
    %595 = vmatpush.msra.mxu0 0.0
    %596 = vmatpush.msra.mxu0 %v574
    %597 = vmatpush.msra.mxu0 %v573
    %598 = vmatpush.msra.mxu0 %v572
    %599 = vmatpush.msra.mxu0 %v571
    %600 = vmatmul.f32.gmra.mxu0 %v580
    %v601 = vpop.f32.mrf.mxu0
    %v602 = vadd.f32 %v577, %v601
    %603 = vmatmul.f32.gmra.mxu0 %v582
    %v604 = vpop.f32.mrf.mxu0
    %v605 = vadd.f32 %v577, %v604
    %606 = vdwg.mxu0
    %v607 = vmax.f32 %v602, 0.0
    %v608 = vmax.f32 %v605, 0.0
    %v609 = vld [vmem:[%s3] sm:$0xff]
    %v610 = vld [vmem:[%s4] sm:$0x1]
    %v612 = vperm.slane %v610, 0
    %vm614 = vcmask 64512
    %v616 = vsel %vm614, %v607, 0
    %v619 = vsel %vm614, %v608, 0
    %621 = vmatpush.msra.mxu0 0.0
    %622 = vmatpush.msra.mxu0 0.0
    %623 = vmatpush.msra.mxu0 0.0
    %624 = vmatpush.msra.mxu0 0.0
    %625 = vmatpush.msra.mxu0 0.0
    %626 = vmatpush.msra.mxu0 0.0
    %627 = vmatpush.msra.mxu0 0.0
    %628 = vmatpush.msra.mxu0 0.0
    %629 = vmatpush.msra.mxu0 0.0
    %630 = vmatpush.msra.mxu0 0.0
    %631 = vmatpush.msra.mxu0 0.0
    %632 = vmatpush.msra.mxu0 0.0
    %633 = vmatpush.msra.mxu0 0.0
    %634 = vmatpush.msra.mxu0 0.0
    %635 = vmatpush.msra.mxu0 0.0
    %636 = vmatpush.msra.mxu0 %v609
    %637 = vmatmul.f32.gmra.mxu0 %v616
    %v638 = vpop.f32.mrf.mxu0
    %v639 = vadd.f32 %v612, %v638
    %640 = vmatmul.f32.gmra.mxu0 %v619
    %v641 = vpop.f32.mrf.mxu0
    %v642 = vadd.f32 %v612, %v641
    %643 = vdwg.mxu0
    %v644 = vadd.f32 %v639, %v642
    %v645 = vxor.u32 %v644, 2147483648
    %v646 = vmul.f32 %v645, 1.442695
    %v647 = vpow.pop %v646
    %v648 = vadd.f32 %v647, 1.0
    %v649 = vrcp.pop %v648
    %v650 = vmul.f32 %v648, %v649
    %v651 = vsub.f32 1.0, %v650
    %v652 = vmul.f32 %v649, %v651
    %v653 = vadd.f32 %v649, %v652
    %vm654 = vweird.f32 %v648
    %vm655 = vweird.f32 %v649
    %vm656 = vmor %vm654, %vm655
    %v657 = vsel %vm656, %v649, %v653
    %v658 = vand.u32 2147483647, %v648
    %vm659 = vcmp.eq.f32.partialorder %v658, 8.507059e+37
    %v660 = vand.u32 %v648, 2147483648
    %v661 = vor.u32 1.1754944e-38, %v660
    %v662 = vsel %vm659, %v661, %v657
    %v663 = vmul.f32 1.0, %v662
    %v664 = vperm.slane %v663, 0
    %v665 = vlaneseq
    %v666 = vshrl.u32 %v665, 7
    %668 = vset.pattern.permute.xlu0 %v666
    %669 = vperm.xlu0 %668, %v664
    %v670 = vpop.permute.xlu0 %669
    %v671 = vlaneseq
    %v672 = vshrl.u32 %v671, 7
    %v673 = vadd.s32 %v672, 8
    %674 = vset.pattern.permute.xlu0 %v673
    %675 = vperm.xlu0 %674, %v664
    %v676 = vpop.permute.xlu0 %675
    %v677 = vlaneseq
    %v678 = vshrl.u32 %v677, 7
    %v679 = vadd.s32 %v678, 16
    %680 = vset.pattern.permute.xlu0 %v679
    %681 = vperm.xlu0 %680, %v664
    %v682 = vpop.permute.xlu0 %681
    %v683 = vlaneseq
    %v684 = vshrl.u32 %v683, 7
    %v685 = vadd.s32 %v684, 24
    %686 = vset.pattern.permute.xlu0 %v685
    %687 = vperm.xlu0 %686, %v664
    %v688 = vpop.permute.xlu0 %687
    %v689 = vperm.slane %v663, 1
    %v690 = vlaneseq
    %v691 = vshrl.u32 %v690, 7
    %693 = vset.pattern.permute.xlu0 %v691
    %694 = vperm.xlu0 %693, %v689
    %v695 = vpop.permute.xlu0 %694
    %v696 = vlaneseq
    %v697 = vshrl.u32 %v696, 7
    %v698 = vadd.s32 %v697, 8
    %699 = vset.pattern.permute.xlu0 %v698
    %700 = vperm.xlu0 %699, %v689
    %v701 = vpop.permute.xlu0 %700
    %v702 = vlaneseq
    %v703 = vshrl.u32 %v702, 7
    %v704 = vadd.s32 %v703, 16
    %705 = vset.pattern.permute.xlu0 %v704
    %706 = vperm.xlu0 %705, %v689
    %v707 = vpop.permute.xlu0 %706
    %v708 = vlaneseq
    %v709 = vshrl.u32 %v708, 7
    %v710 = vadd.s32 %v709, 24
    %711 = vset.pattern.permute.xlu0 %v710
    %712 = vperm.xlu0 %711, %v689
    %v713 = vpop.permute.xlu0 %712
    %v714 = vperm.slane %v663, 2
    %v715 = vlaneseq
    %v716 = vshrl.u32 %v715, 7
    %718 = vset.pattern.permute.xlu0 %v716
    %719 = vperm.xlu0 %718, %v714
    %v720 = vpop.permute.xlu0 %719
    %v721 = vlaneseq
    %v722 = vshrl.u32 %v721, 7
    %v723 = vadd.s32 %v722, 8
    %724 = vset.pattern.permute.xlu0 %v723
    %725 = vperm.xlu0 %724, %v714
    %v726 = vpop.permute.xlu0 %725
    %v727 = vlaneseq
    %v728 = vshrl.u32 %v727, 7
    %v729 = vadd.s32 %v728, 16
    %730 = vset.pattern.permute.xlu0 %v729
    %731 = vperm.xlu0 %730, %v714
    %v732 = vpop.permute.xlu0 %731
    %v733 = vlaneseq
    %v734 = vshrl.u32 %v733, 7
    %v735 = vadd.s32 %v734, 24
    %736 = vset.pattern.permute.xlu0 %v735
    %737 = vperm.xlu0 %736, %v714
    %v738 = vpop.permute.xlu0 %737
    %v739 = vperm.slane %v663, 3
    %v740 = vlaneseq
    %v741 = vshrl.u32 %v740, 7
    %743 = vset.pattern.permute.xlu0 %v741
    %744 = vperm.xlu0 %743, %v739
    %v745 = vpop.permute.xlu0 %744
    %v746 = vlaneseq
    %v747 = vshrl.u32 %v746, 7
    %v748 = vadd.s32 %v747, 8
    %749 = vset.pattern.permute.xlu0 %v748
    %750 = vperm.xlu0 %749, %v739
    %v751 = vpop.permute.xlu0 %750
    %v752 = vlaneseq
    %v753 = vshrl.u32 %v752, 7
    %v754 = vadd.s32 %v753, 16
    %755 = vset.pattern.permute.xlu0 %v754
    %756 = vperm.xlu0 %755, %v739
    %v757 = vpop.permute.xlu0 %756
    %v758 = vlaneseq
    %v759 = vshrl.u32 %v758, 7
    %v760 = vadd.s32 %v759, 24
    %761 = vset.pattern.permute.xlu0 %v760
    %762 = vperm.xlu0 %761, %v739
    %v763 = vpop.permute.xlu0 %762
    %v764 = vperm.slane %v663, 4
    %v765 = vlaneseq
    %v766 = vshrl.u32 %v765, 7
    %768 = vset.pattern.permute.xlu0 %v766
    %769 = vperm.xlu0 %768, %v764
    %v770 = vpop.permute.xlu0 %769
    %v771 = vlaneseq
    %v772 = vshrl.u32 %v771, 7
    %v773 = vadd.s32 %v772, 8
    %774 = vset.pattern.permute.xlu0 %v773
    %775 = vperm.xlu0 %774, %v764
    %v776 = vpop.permute.xlu0 %775
    %v777 = vlaneseq
    %v778 = vshrl.u32 %v777, 7
    %v779 = vadd.s32 %v778, 16
    %780 = vset.pattern.permute.xlu0 %v779
    %781 = vperm.xlu0 %780, %v764
    %v782 = vpop.permute.xlu0 %781
    %v783 = vlaneseq
    %v784 = vshrl.u32 %v783, 7
    %v785 = vadd.s32 %v784, 24
    %786 = vset.pattern.permute.xlu0 %v785
    %787 = vperm.xlu0 %786, %v764
    %v788 = vpop.permute.xlu0 %787
    %v789 = vperm.slane %v663, 5
    %v790 = vlaneseq
    %v791 = vshrl.u32 %v790, 7
    %793 = vset.pattern.permute.xlu0 %v791
    %794 = vperm.xlu0 %793, %v789
    %v795 = vpop.permute.xlu0 %794
    %v796 = vlaneseq
    %v797 = vshrl.u32 %v796, 7
    %v798 = vadd.s32 %v797, 8
    %799 = vset.pattern.permute.xlu0 %v798
    %800 = vperm.xlu0 %799, %v789
    %v801 = vpop.permute.xlu0 %800
    %v802 = vlaneseq
    %v803 = vshrl.u32 %v802, 7
    %v804 = vadd.s32 %v803, 16
    %805 = vset.pattern.permute.xlu0 %v804
    %806 = vperm.xlu0 %805, %v789
    %v807 = vpop.permute.xlu0 %806
    %v808 = vlaneseq
    %v809 = vshrl.u32 %v808, 7
    %v810 = vadd.s32 %v809, 24
    %811 = vset.pattern.permute.xlu0 %v810
    %812 = vperm.xlu0 %811, %v789
    %v813 = vpop.permute.xlu0 %812
    %v814 = vperm.slane %v663, 6
    %v815 = vlaneseq
    %v816 = vshrl.u32 %v815, 7
    %818 = vset.pattern.permute.xlu0 %v816
    %819 = vperm.xlu0 %818, %v814
    %v820 = vpop.permute.xlu0 %819
    %v821 = vlaneseq
    %v822 = vshrl.u32 %v821, 7
    %v823 = vadd.s32 %v822, 8
    %824 = vset.pattern.permute.xlu0 %v823
    %825 = vperm.xlu0 %824, %v814
    %v826 = vpop.permute.xlu0 %825
    %v827 = vlaneseq
    %v828 = vshrl.u32 %v827, 7
    %v829 = vadd.s32 %v828, 16
    %830 = vset.pattern.permute.xlu0 %v829
    %831 = vperm.xlu0 %830, %v814
    %v832 = vpop.permute.xlu0 %831
    %v833 = vlaneseq
    %v834 = vshrl.u32 %v833, 7
    %v835 = vadd.s32 %v834, 24
    %836 = vset.pattern.permute.xlu0 %v835
    %837 = vperm.xlu0 %836, %v814
    %v838 = vpop.permute.xlu0 %837
    %v839 = vperm.slane %v663, 7
    %v840 = vlaneseq
    %v841 = vshrl.u32 %v840, 7
    %843 = vset.pattern.permute.xlu0 %v841
    %844 = vperm.xlu0 %843, %v839
    %v845 = vpop.permute.xlu0 %844
    %v846 = vlaneseq
    %v847 = vshrl.u32 %v846, 7
    %v848 = vadd.s32 %v847, 8
    %849 = vset.pattern.permute.xlu0 %v848
    %850 = vperm.xlu0 %849, %v839
    %v851 = vpop.permute.xlu0 %850
    %v852 = vlaneseq
    %v853 = vshrl.u32 %v852, 7
    %v854 = vadd.s32 %v853, 16
    %855 = vset.pattern.permute.xlu0 %v854
    %856 = vperm.xlu0 %855, %v839
    %v857 = vpop.permute.xlu0 %856
    %v858 = vlaneseq
    %v859 = vshrl.u32 %v858, 7
    %v860 = vadd.s32 %v859, 24
    %861 = vset.pattern.permute.xlu0 %v860
    %862 = vperm.xlu0 %861, %v839
    %v863 = vpop.permute.xlu0 %862
    %v864 = vmul.f32 %v71, %v670
    %v865 = vmul.f32 %v72, %v670
    %v866 = vmul.f32 %v73, %v676
    %v867 = vmul.f32 %v74, %v676
    %v868 = vmul.f32 %v75, %v682
    %v869 = vmul.f32 %v76, %v682
    %v870 = vmul.f32 %v77, %v688
    %v871 = vmul.f32 %v78, %v688
    %v872 = vmul.f32 %v79, %v695
    %v873 = vmul.f32 %v80, %v695
    %v874 = vmul.f32 %v81, %v701
    %v875 = vmul.f32 %v82, %v701
    %v876 = vmul.f32 %v83, %v707
    %v877 = vmul.f32 %v84, %v707
    %v878 = vmul.f32 %v85, %v713
    %v879 = vmul.f32 %v86, %v713
    %v880 = vmul.f32 %v87, %v720
    %v881 = vmul.f32 %v88, %v720
    %v882 = vmul.f32 %v89, %v726
    %v883 = vmul.f32 %v90, %v726
    %v884 = vmul.f32 %v91, %v732
    %v885 = vmul.f32 %v92, %v732
    %v886 = vmul.f32 %v93, %v738
    %v887 = vmul.f32 %v94, %v738
    %v888 = vmul.f32 %v95, %v745
    %v889 = vmul.f32 %v96, %v745
    %v890 = vmul.f32 %v97, %v751
    %v891 = vmul.f32 %v98, %v751
    %v892 = vmul.f32 %v99, %v757
    %v893 = vmul.f32 %v100, %v757
    %v894 = vmul.f32 %v101, %v763
    %v895 = vmul.f32 %v102, %v763
    %v896 = vmul.f32 %v103, %v770
    %v897 = vmul.f32 %v104, %v770
    %v898 = vmul.f32 %v105, %v776
    %v899 = vmul.f32 %v106, %v776
    %v900 = vmul.f32 %v107, %v782
    %v901 = vmul.f32 %v108, %v782
    %v902 = vmul.f32 %v109, %v788
    %v903 = vmul.f32 %v110, %v788
    %v904 = vmul.f32 %v111, %v795
    %v905 = vmul.f32 %v112, %v795
    %v906 = vmul.f32 %v113, %v801
    %v907 = vmul.f32 %v114, %v801
    %v908 = vmul.f32 %v115, %v807
    %v909 = vmul.f32 %v116, %v807
    %v910 = vmul.f32 %v117, %v813
    %v911 = vmul.f32 %v118, %v813
    %v912 = vmul.f32 %v119, %v820
    %v913 = vmul.f32 %v120, %v820
    %v914 = vmul.f32 %v121, %v826
    %v915 = vmul.f32 %v122, %v826
    %v916 = vmul.f32 %v123, %v832
    %v917 = vmul.f32 %v124, %v832
    %v918 = vmul.f32 %v125, %v838
    %v919 = vmul.f32 %v126, %v838
    %v920 = vmul.f32 %v127, %v845
    %v921 = vmul.f32 %v128, %v845
    %v922 = vmul.f32 %v129, %v851
    %v923 = vmul.f32 %v130, %v851
    %v924 = vmul.f32 %v131, %v857
    %v925 = vmul.f32 %v132, %v857
    %v926 = vmul.f32 %v133, %v863
    %v927 = vmul.f32 %v134, %v863
    %v928 = vmax.f32 %v864, %v866
    %v929 = vmax.f32 %v928, %v868
    %v930 = vmax.f32 %v929, %v870
    %v931 = vrot.slane %v930, 4
    %v932 = vmax.f32 %v930, %v931
    %v933 = vrot.slane %v932, 2
    %v934 = vmax.f32 %v932, %v933
    %v935 = vrot.slane %v934, 1
    %v936 = vmax.f32 %v934, %v935
    %v937 = vmax.f32 %v865, %v867
    %v938 = vmax.f32 %v937, %v869
    %v939 = vmax.f32 %v938, %v871
    %v940 = vrot.slane %v939, 4
    %v941 = vmax.f32 %v939, %v940
    %v942 = vrot.slane %v941, 2
    %v943 = vmax.f32 %v941, %v942
    %v944 = vrot.slane %v943, 1
    %v945 = vmax.f32 %v943, %v944
    %v946 = vmax.f32 %v872, %v874
    %v947 = vmax.f32 %v946, %v876
    %v948 = vmax.f32 %v947, %v878
    %v949 = vrot.slane %v948, 4
    %v950 = vmax.f32 %v948, %v949
    %v951 = vrot.slane %v950, 2
    %v952 = vmax.f32 %v950, %v951
    %v953 = vrot.slane %v952, 1
    %v954 = vmax.f32 %v952, %v953
    %v955 = vmax.f32 %v873, %v875
    %v956 = vmax.f32 %v955, %v877
    %v957 = vmax.f32 %v956, %v879
    %v958 = vrot.slane %v957, 4
    %v959 = vmax.f32 %v957, %v958
    %v960 = vrot.slane %v959, 2
    %v961 = vmax.f32 %v959, %v960
    %v962 = vrot.slane %v961, 1
    %v963 = vmax.f32 %v961, %v962
    %v964 = vmax.f32 %v880, %v882
    %v965 = vmax.f32 %v964, %v884
    %v966 = vmax.f32 %v965, %v886
    %v967 = vrot.slane %v966, 4
    %v968 = vmax.f32 %v966, %v967
    %v969 = vrot.slane %v968, 2
    %v970 = vmax.f32 %v968, %v969
    %v971 = vrot.slane %v970, 1
    %v972 = vmax.f32 %v970, %v971
    %v973 = vmax.f32 %v881, %v883
    %v974 = vmax.f32 %v973, %v885
    %v975 = vmax.f32 %v974, %v887
    %v976 = vrot.slane %v975, 4
    %v977 = vmax.f32 %v975, %v976
    %v978 = vrot.slane %v977, 2
    %v979 = vmax.f32 %v977, %v978
    %v980 = vrot.slane %v979, 1
    %v981 = vmax.f32 %v979, %v980
    %v982 = vmax.f32 %v888, %v890
    %v983 = vmax.f32 %v982, %v892
    %v984 = vmax.f32 %v983, %v894
    %v985 = vrot.slane %v984, 4
    %v986 = vmax.f32 %v984, %v985
    %v987 = vrot.slane %v986, 2
    %v988 = vmax.f32 %v986, %v987
    %v989 = vrot.slane %v988, 1
    %v990 = vmax.f32 %v988, %v989
    %v991 = vmax.f32 %v889, %v891
    %v992 = vmax.f32 %v991, %v893
    %v993 = vmax.f32 %v992, %v895
    %v994 = vrot.slane %v993, 4
    %v995 = vmax.f32 %v993, %v994
    %v996 = vrot.slane %v995, 2
    %v997 = vmax.f32 %v995, %v996
    %v998 = vrot.slane %v997, 1
    %v999 = vmax.f32 %v997, %v998
    %v1000 = vmax.f32 %v896, %v898
    %v1001 = vmax.f32 %v1000, %v900
    %v1002 = vmax.f32 %v1001, %v902
    %v1003 = vrot.slane %v1002, 4
    %v1004 = vmax.f32 %v1002, %v1003
    %v1005 = vrot.slane %v1004, 2
    %v1006 = vmax.f32 %v1004, %v1005
    %v1007 = vrot.slane %v1006, 1
    %v1008 = vmax.f32 %v1006, %v1007
    %v1009 = vmax.f32 %v897, %v899
    %v1010 = vmax.f32 %v1009, %v901
    %v1011 = vmax.f32 %v1010, %v903
    %v1012 = vrot.slane %v1011, 4
    %v1013 = vmax.f32 %v1011, %v1012
    %v1014 = vrot.slane %v1013, 2
    %v1015 = vmax.f32 %v1013, %v1014
    %v1016 = vrot.slane %v1015, 1
    %v1017 = vmax.f32 %v1015, %v1016
    %v1018 = vmax.f32 %v904, %v906
    %v1019 = vmax.f32 %v1018, %v908
    %v1020 = vmax.f32 %v1019, %v910
    %v1021 = vrot.slane %v1020, 4
    %v1022 = vmax.f32 %v1020, %v1021
    %v1023 = vrot.slane %v1022, 2
    %v1024 = vmax.f32 %v1022, %v1023
    %v1025 = vrot.slane %v1024, 1
    %v1026 = vmax.f32 %v1024, %v1025
    %v1027 = vmax.f32 %v905, %v907
    %v1028 = vmax.f32 %v1027, %v909
    %v1029 = vmax.f32 %v1028, %v911
    %v1030 = vrot.slane %v1029, 4
    %v1031 = vmax.f32 %v1029, %v1030
    %v1032 = vrot.slane %v1031, 2
    %v1033 = vmax.f32 %v1031, %v1032
    %v1034 = vrot.slane %v1033, 1
    %v1035 = vmax.f32 %v1033, %v1034
    %v1036 = vmax.f32 %v912, %v914
    %v1037 = vmax.f32 %v1036, %v916
    %v1038 = vmax.f32 %v1037, %v918
    %v1039 = vrot.slane %v1038, 4
    %v1040 = vmax.f32 %v1038, %v1039
    %v1041 = vrot.slane %v1040, 2
    %v1042 = vmax.f32 %v1040, %v1041
    %v1043 = vrot.slane %v1042, 1
    %v1044 = vmax.f32 %v1042, %v1043
    %v1045 = vmax.f32 %v913, %v915
    %v1046 = vmax.f32 %v1045, %v917
    %v1047 = vmax.f32 %v1046, %v919
    %v1048 = vrot.slane %v1047, 4
    %v1049 = vmax.f32 %v1047, %v1048
    %v1050 = vrot.slane %v1049, 2
    %v1051 = vmax.f32 %v1049, %v1050
    %v1052 = vrot.slane %v1051, 1
    %v1053 = vmax.f32 %v1051, %v1052
    %v1054 = vmax.f32 %v920, %v922
    %v1055 = vmax.f32 %v1054, %v924
    %v1056 = vmax.f32 %v1055, %v926
    %v1057 = vrot.slane %v1056, 4
    %v1058 = vmax.f32 %v1056, %v1057
    %v1059 = vrot.slane %v1058, 2
    %v1060 = vmax.f32 %v1058, %v1059
    %v1061 = vrot.slane %v1060, 1
    %v1062 = vmax.f32 %v1060, %v1061
    %v1063 = vmax.f32 %v921, %v923
    %v1064 = vmax.f32 %v1063, %v925
    %v1065 = vmax.f32 %v1064, %v927
    %v1066 = vrot.slane %v1065, 4
    %v1067 = vmax.f32 %v1065, %v1066
    %v1068 = vrot.slane %v1067, 2
    %v1069 = vmax.f32 %v1067, %v1068
    %v1070 = vrot.slane %v1069, 1
    %v1071 = vmax.f32 %v1069, %v1070
    %v1072 = vadd.f32 %v864, %v866
    %v1073 = vadd.f32 %v1072, %v868
    %v1074 = vadd.f32 %v1073, %v870
    %v1075 = vrot.slane %v1074, 4
    %v1076 = vadd.f32 %v1074, %v1075
    %v1077 = vrot.slane %v1076, 2
    %v1078 = vadd.f32 %v1076, %v1077
    %v1079 = vrot.slane %v1078, 1
    %v1080 = vadd.f32 %v1078, %v1079
    %v1081 = vadd.f32 %v865, %v867
    %v1082 = vadd.f32 %v1081, %v869
    %v1083 = vadd.f32 %v1082, %v871
    %v1084 = vrot.slane %v1083, 4
    %v1085 = vadd.f32 %v1083, %v1084
    %v1086 = vrot.slane %v1085, 2
    %v1087 = vadd.f32 %v1085, %v1086
    %v1088 = vrot.slane %v1087, 1
    %v1089 = vadd.f32 %v1087, %v1088
    %v1090 = vadd.f32 %v872, %v874
    %v1091 = vadd.f32 %v1090, %v876
    %v1092 = vadd.f32 %v1091, %v878
    %v1093 = vrot.slane %v1092, 4
    %v1094 = vadd.f32 %v1092, %v1093
    %v1095 = vrot.slane %v1094, 2
    %v1096 = vadd.f32 %v1094, %v1095
    %v1097 = vrot.slane %v1096, 1
    %v1098 = vadd.f32 %v1096, %v1097
    %v1099 = vadd.f32 %v873, %v875
    %v1100 = vadd.f32 %v1099, %v877
    %v1101 = vadd.f32 %v1100, %v879
    %v1102 = vrot.slane %v1101, 4
    %v1103 = vadd.f32 %v1101, %v1102
    %v1104 = vrot.slane %v1103, 2
    %v1105 = vadd.f32 %v1103, %v1104
    %v1106 = vrot.slane %v1105, 1
    %v1107 = vadd.f32 %v1105, %v1106
    %v1108 = vadd.f32 %v880, %v882
    %v1109 = vadd.f32 %v1108, %v884
    %v1110 = vadd.f32 %v1109, %v886
    %v1111 = vrot.slane %v1110, 4
    %v1112 = vadd.f32 %v1110, %v1111
    %v1113 = vrot.slane %v1112, 2
    %v1114 = vadd.f32 %v1112, %v1113
    %v1115 = vrot.slane %v1114, 1
    %v1116 = vadd.f32 %v1114, %v1115
    %v1117 = vadd.f32 %v881, %v883
    %v1118 = vadd.f32 %v1117, %v885
    %v1119 = vadd.f32 %v1118, %v887
    %v1120 = vrot.slane %v1119, 4
    %v1121 = vadd.f32 %v1119, %v1120
    %v1122 = vrot.slane %v1121, 2
    %v1123 = vadd.f32 %v1121, %v1122
    %v1124 = vrot.slane %v1123, 1
    %v1125 = vadd.f32 %v1123, %v1124
    %v1126 = vadd.f32 %v888, %v890
    %v1127 = vadd.f32 %v1126, %v892
    %v1128 = vadd.f32 %v1127, %v894
    %v1129 = vrot.slane %v1128, 4
    %v1130 = vadd.f32 %v1128, %v1129
    %v1131 = vrot.slane %v1130, 2
    %v1132 = vadd.f32 %v1130, %v1131
    %v1133 = vrot.slane %v1132, 1
    %v1134 = vadd.f32 %v1132, %v1133
    %v1135 = vadd.f32 %v889, %v891
    %v1136 = vadd.f32 %v1135, %v893
    %v1137 = vadd.f32 %v1136, %v895
    %v1138 = vrot.slane %v1137, 4
    %v1139 = vadd.f32 %v1137, %v1138
    %v1140 = vrot.slane %v1139, 2
    %v1141 = vadd.f32 %v1139, %v1140
    %v1142 = vrot.slane %v1141, 1
    %v1143 = vadd.f32 %v1141, %v1142
    %v1144 = vadd.f32 %v896, %v898
    %v1145 = vadd.f32 %v1144, %v900
    %v1146 = vadd.f32 %v1145, %v902
    %v1147 = vrot.slane %v1146, 4
    %v1148 = vadd.f32 %v1146, %v1147
    %v1149 = vrot.slane %v1148, 2
    %v1150 = vadd.f32 %v1148, %v1149
    %v1151 = vrot.slane %v1150, 1
    %v1152 = vadd.f32 %v1150, %v1151
    %v1153 = vadd.f32 %v897, %v899
    %v1154 = vadd.f32 %v1153, %v901
    %v1155 = vadd.f32 %v1154, %v903
    %v1156 = vrot.slane %v1155, 4
    %v1157 = vadd.f32 %v1155, %v1156
    %v1158 = vrot.slane %v1157, 2
    %v1159 = vadd.f32 %v1157, %v1158
    %v1160 = vrot.slane %v1159, 1
    %v1161 = vadd.f32 %v1159, %v1160
    %v1162 = vadd.f32 %v904, %v906
    %v1163 = vadd.f32 %v1162, %v908
    %v1164 = vadd.f32 %v1163, %v910
    %v1165 = vrot.slane %v1164, 4
    %v1166 = vadd.f32 %v1164, %v1165
    %v1167 = vrot.slane %v1166, 2
    %v1168 = vadd.f32 %v1166, %v1167
    %v1169 = vrot.slane %v1168, 1
    %v1170 = vadd.f32 %v1168, %v1169
    %v1171 = vadd.f32 %v905, %v907
    %v1172 = vadd.f32 %v1171, %v909
    %v1173 = vadd.f32 %v1172, %v911
    %v1174 = vrot.slane %v1173, 4
    %v1175 = vadd.f32 %v1173, %v1174
    %v1176 = vrot.slane %v1175, 2
    %v1177 = vadd.f32 %v1175, %v1176
    %v1178 = vrot.slane %v1177, 1
    %v1179 = vadd.f32 %v1177, %v1178
    %v1180 = vadd.f32 %v912, %v914
    %v1181 = vadd.f32 %v1180, %v916
    %v1182 = vadd.f32 %v1181, %v918
    %v1183 = vrot.slane %v1182, 4
    %v1184 = vadd.f32 %v1182, %v1183
    %v1185 = vrot.slane %v1184, 2
    %v1186 = vadd.f32 %v1184, %v1185
    %v1187 = vrot.slane %v1186, 1
    %v1188 = vadd.f32 %v1186, %v1187
    %v1189 = vadd.f32 %v913, %v915
    %v1190 = vadd.f32 %v1189, %v917
    %v1191 = vadd.f32 %v1190, %v919
    %v1192 = vrot.slane %v1191, 4
    %v1193 = vadd.f32 %v1191, %v1192
    %v1194 = vrot.slane %v1193, 2
    %v1195 = vadd.f32 %v1193, %v1194
    %v1196 = vrot.slane %v1195, 1
    %v1197 = vadd.f32 %v1195, %v1196
    %v1198 = vadd.f32 %v920, %v922
    %v1199 = vadd.f32 %v1198, %v924
    %v1200 = vadd.f32 %v1199, %v926
    %v1201 = vrot.slane %v1200, 4
    %v1202 = vadd.f32 %v1200, %v1201
    %v1203 = vrot.slane %v1202, 2
    %v1204 = vadd.f32 %v1202, %v1203
    %v1205 = vrot.slane %v1204, 1
    %v1206 = vadd.f32 %v1204, %v1205
    %v1207 = vadd.f32 %v921, %v923
    %v1208 = vadd.f32 %v1207, %v925
    %v1209 = vadd.f32 %v1208, %v927
    %v1210 = vrot.slane %v1209, 4
    %v1211 = vadd.f32 %v1209, %v1210
    %v1212 = vrot.slane %v1211, 2
    %v1213 = vadd.f32 %v1211, %v1212
    %v1214 = vrot.slane %v1213, 1
    %v1215 = vadd.f32 %v1213, %v1214
    %v1216 = vrcp.pop 32.0
    %v1217 = vmul.f32 32.0, %v1216
    %v1218 = vsub.f32 1.0, %v1217
    %v1219 = vmul.f32 %v1216, %v1218
    %v1220 = vadd.f32 %v1216, %v1219
    %vm1221 = vweird.f32 %v1216
    %v1222 = vsel %vm1221, %v1216, %v1220
    %v1223 = vmul.f32 %v1080, %v1222
    %v1224 = vmul.f32 %v1089, %v1222
    %v1225 = vmul.f32 %v1098, %v1222
    %v1226 = vmul.f32 %v1107, %v1222
    %v1227 = vmul.f32 %v1116, %v1222
    %v1228 = vmul.f32 %v1125, %v1222
    %v1229 = vmul.f32 %v1134, %v1222
    %v1230 = vmul.f32 %v1143, %v1222
    %v1231 = vmul.f32 %v1152, %v1222
    %v1232 = vmul.f32 %v1161, %v1222
    %v1233 = vmul.f32 %v1170, %v1222
    %v1234 = vmul.f32 %v1179, %v1222
    %v1235 = vmul.f32 %v1188, %v1222
    %v1236 = vmul.f32 %v1197, %v1222
    %v1237 = vmul.f32 %v1206, %v1222
    %v1238 = vmul.f32 %v1215, %v1222
    %1239 = vst [vmem:[#allocation2] sm:$0xff] 0.0
    %1240 = vst [vmem:[#allocation2 + $0x20] sm:$0xff] 0.0
    %1241 = vst [vmem:[#allocation2 + $0x18] sm:$0xff] 0.0
    %1242 = vst [vmem:[#allocation2 + $0x38] sm:$0xff] 0.0
    %v1259 = vsel %vm462, %v954, %v936
    %v1260 = vsel %vm464, %v972, %v1259
    %v1261 = vsel %vm466, %v990, %v1260
    %v1262 = vsel %vm468, %v1008, %v1261
    %v1263 = vsel %vm470, %v1026, %v1262
    %v1264 = vsel %vm472, %v1044, %v1263
    %v1265 = vsel %vm474, %v1062, %v1264
    %v1266 = vsel %vm462, %v963, %v945
    %v1267 = vsel %vm464, %v981, %v1266
    %v1268 = vsel %vm466, %v999, %v1267
    %v1269 = vsel %vm468, %v1017, %v1268
    %v1270 = vsel %vm470, %v1035, %v1269
    %v1271 = vsel %vm472, %v1053, %v1270
    %v1272 = vsel %vm474, %v1071, %v1271
    %1275 = vst [vmem:[#allocation2 + $0x8] sm:$0xff] %v1265
    %1276 = vst [vmem:[#allocation2 + $0x10] sm:$0xff] %v1272
    %v1293 = vsel %vm462, %v1225, %v1223
    %v1294 = vsel %vm464, %v1227, %v1293
    %v1295 = vsel %vm466, %v1229, %v1294
    %v1296 = vsel %vm468, %v1231, %v1295
    %v1297 = vsel %vm470, %v1233, %v1296
    %v1298 = vsel %vm472, %v1235, %v1297
    %v1299 = vsel %vm474, %v1237, %v1298
    %v1300 = vsel %vm462, %v1226, %v1224
    %v1301 = vsel %vm464, %v1228, %v1300
    %v1302 = vsel %vm466, %v1230, %v1301
    %v1303 = vsel %vm468, %v1232, %v1302
    %v1304 = vsel %vm470, %v1234, %v1303
    %v1305 = vsel %vm472, %v1236, %v1304
    %v1306 = vsel %vm474, %v1238, %v1305
    %1309 = vst [vmem:[#allocation2 + $0x28] sm:$0xff] %v1299
    %1310 = vst [vmem:[#allocation2 + $0x30] sm:$0xff] %v1306
    %v1311 = vlaneseq
    %v1312 = vshrl.u32 %v1311, 7
    %v1313 = vadd.s32 %v1312, 8
    %vm1314 = vcmp.lt.s32.totalorder %v1312, 8
    %vm1315 = vcmp.lt.s32.totalorder %v1313, 8
    %v1316 = vsel %vm1314, 1, 0
    %v1317 = vsel %vm1315, 1, 0
    %v1318 = vcvt.s32.f32 %v1316
    %v1319 = vcvt.s32.f32 %v1317
    %v1320 = vsub.f32 1.0, %v1318
    %v1321 = vsub.f32 1.0, %v1319
    %s1322 = sld [smem:[#allocation7]]
    %v1323 = vstv %s1322
    %v1324 = vmul.f32 %v1318, %v1323
    %v1325 = vmul.f32 %v1319, %v1323
    %s1326 = sld [smem:[#allocation7 + $0x31]]
    %v1327 = vstv %s1326
    %v1328 = vmul.f32 %v1320, %v1327
    %v1329 = vmul.f32 %v1321, %v1327
    %v1330 = vadd.f32 %v1324, %v1328
    %v1331 = vadd.f32 %v1325, %v1329
    %v1332 = vld [vmem:[#allocation2] sm:$0xff]
    %v1333 = vld [vmem:[#allocation2 + $0x8] sm:$0xff]
    %v1334 = vld [vmem:[#allocation2 + $0x10] sm:$0xff]
    %v1335 = vld [vmem:[#allocation2 + $0x20] sm:$0xff]
    %v1336 = vld [vmem:[#allocation2 + $0x28] sm:$0xff]
    %v1337 = vld [vmem:[#allocation2 + $0x30] sm:$0xff]
    %v1338 = vmul.f32 %v1330, %v1332
    %v1339 = vmul.f32 %v1330, %v1333
    %v1340 = vmul.f32 %v1330, %v1334
    %v1341 = vmul.f32 %v1331, %v1335
    %v1342 = vmul.f32 %v1331, %v1336
    %v1343 = vmul.f32 %v1331, %v1337
    %v1344 = vadd.f32 %v1338, 0.0
    %v1345 = vadd.f32 %v1339, 0.0
    %v1346 = vadd.f32 %v1340, 0.0
    %v1347 = vadd.f32 %v1341, 0.0
    %v1348 = vadd.f32 %v1342, 0.0
    %v1349 = vadd.f32 %v1343, 0.0
    %s1350 = sld [smem:[#allocation7 + $0x7]]
    %v1351 = vstv %s1350
    %v1352 = vmul.f32 %v1318, %v1351
    %v1353 = vmul.f32 %v1319, %v1351
    %s1354 = sld [smem:[#allocation7 + $0x38]]
    %v1355 = vstv %s1354
    %v1356 = vmul.f32 %v1320, %v1355
    %v1357 = vmul.f32 %v1321, %v1355
    %v1358 = vadd.f32 %v1352, %v1356
    %v1359 = vadd.f32 %v1353, %v1357
    %v1360 = vmul.f32 %v1358, %v1332
    %v1361 = vmul.f32 %v1358, %v1333
    %v1362 = vmul.f32 %v1358, %v1334
    %v1363 = vmul.f32 %v1359, %v1335
    %v1364 = vmul.f32 %v1359, %v1336
    %v1365 = vmul.f32 %v1359, %v1337
    %1372 = vrot.lane.b32.xlu0 %v1360, 112
    %v1373 = vpop.permute.xlu0 %1372
    %1374 = vrot.lane.b32.xlu0 %v1361, 112
    %v1375 = vpop.permute.xlu0 %1374
    %1376 = vrot.lane.b32.xlu0 %v1362, 112
    %v1377 = vpop.permute.xlu0 %1376
    %1378 = vrot.lane.b32.xlu0 %v1363, 112
    %v1379 = vpop.permute.xlu0 %1378
    %1380 = vrot.lane.b32.xlu0 %v1364, 112
    %v1381 = vpop.permute.xlu0 %1380
    %1382 = vrot.lane.b32.xlu0 %v1365, 112
    %v1383 = vpop.permute.xlu0 %1382
    %vm1384 = vcmask 916480
    %v1385 = vsel %vm1384, %v1373, %v1375
    %v1386 = vsel %vm1384, %v1375, %v1377
    %v1387 = vsel %vm1384, %v1379, %v1381
    %v1388 = vsel %vm1384, %v1381, %v1383
    %v1395 = vadd.f32 %v1344, %v1385
    %v1396 = vadd.f32 %v1345, %v1386
    %v1397 = vadd.f32 %v1346, %v1377
    %v1398 = vadd.f32 %v1347, %v1387
    %v1399 = vadd.f32 %v1348, %v1388
    %v1400 = vadd.f32 %v1349, %v1383
    %s1401 = sld [smem:[#allocation7 + $0xe]]
    %v1402 = vstv %s1401
    %v1403 = vmul.f32 %v1318, %v1402
    %v1404 = vmul.f32 %v1319, %v1402
    %s1405 = sld [smem:[#allocation7 + $0x3f]]
    %v1406 = vstv %s1405
    %v1407 = vmul.f32 %v1320, %v1406
    %v1408 = vmul.f32 %v1321, %v1406
    %v1409 = vadd.f32 %v1403, %v1407
    %v1410 = vadd.f32 %v1404, %v1408
    %v1411 = vmul.f32 %v1409, %v1332
    %v1412 = vmul.f32 %v1409, %v1333
    %v1413 = vmul.f32 %v1409, %v1334
    %v1414 = vmul.f32 %v1410, %v1335
    %v1415 = vmul.f32 %v1410, %v1336
    %v1416 = vmul.f32 %v1410, %v1337
    %1423 = vrot.lane.b32.xlu0 %v1411, 96
    %v1424 = vpop.permute.xlu0 %1423
    %1425 = vrot.lane.b32.xlu0 %v1412, 96
    %v1426 = vpop.permute.xlu0 %1425
    %1427 = vrot.lane.b32.xlu0 %v1413, 96
    %v1428 = vpop.permute.xlu0 %1427
    %1429 = vrot.lane.b32.xlu0 %v1414, 96
    %v1430 = vpop.permute.xlu0 %1429
    %1431 = vrot.lane.b32.xlu0 %v1415, 96
    %v1432 = vpop.permute.xlu0 %1431
    %1433 = vrot.lane.b32.xlu0 %v1416, 96
    %v1434 = vpop.permute.xlu0 %1433
    %vm1435 = vcmask 785408
    %v1436 = vsel %vm1435, %v1424, %v1426
    %v1437 = vsel %vm1435, %v1426, %v1428
    %v1438 = vsel %vm1435, %v1430, %v1432
    %v1439 = vsel %vm1435, %v1432, %v1434
    %v1446 = vadd.f32 %v1395, %v1436
    %v1447 = vadd.f32 %v1396, %v1437
    %v1448 = vadd.f32 %v1397, %v1428
    %v1449 = vadd.f32 %v1398, %v1438
    %v1450 = vadd.f32 %v1399, %v1439
    %v1451 = vadd.f32 %v1400, %v1434
    %s1452 = sld [smem:[#allocation7 + $0x15]]
    %v1453 = vstv %s1452
    %v1454 = vmul.f32 %v1318, %v1453
    %v1455 = vmul.f32 %v1319, %v1453
    %s1456 = sld [smem:[#allocation7 + $0x46]]
    %v1457 = vstv %s1456
    %v1458 = vmul.f32 %v1320, %v1457
    %v1459 = vmul.f32 %v1321, %v1457
    %v1460 = vadd.f32 %v1454, %v1458
    %v1461 = vadd.f32 %v1455, %v1459
    %v1462 = vmul.f32 %v1460, %v1332
    %v1463 = vmul.f32 %v1460, %v1333
    %v1464 = vmul.f32 %v1460, %v1334
    %v1465 = vmul.f32 %v1461, %v1335
    %v1466 = vmul.f32 %v1461, %v1336
    %v1467 = vmul.f32 %v1461, %v1337
    %1474 = vrot.lane.b32.xlu0 %v1462, 80
    %v1475 = vpop.permute.xlu0 %1474
    %1476 = vrot.lane.b32.xlu0 %v1463, 80
    %v1477 = vpop.permute.xlu0 %1476
    %1478 = vrot.lane.b32.xlu0 %v1464, 80
    %v1479 = vpop.permute.xlu0 %1478
    %1480 = vrot.lane.b32.xlu0 %v1465, 80
    %v1481 = vpop.permute.xlu0 %1480
    %1482 = vrot.lane.b32.xlu0 %v1466, 80
    %v1483 = vpop.permute.xlu0 %1482
    %1484 = vrot.lane.b32.xlu0 %v1467, 80
    %v1485 = vpop.permute.xlu0 %1484
    %vm1486 = vcmask 654336
    %v1487 = vsel %vm1486, %v1475, %v1477
    %v1488 = vsel %vm1486, %v1477, %v1479
    %v1489 = vsel %vm1486, %v1481, %v1483
    %v1490 = vsel %vm1486, %v1483, %v1485
    %v1497 = vadd.f32 %v1446, %v1487
    %v1498 = vadd.f32 %v1447, %v1488
    %v1499 = vadd.f32 %v1448, %v1479
    %v1500 = vadd.f32 %v1449, %v1489
    %v1501 = vadd.f32 %v1450, %v1490
    %v1502 = vadd.f32 %v1451, %v1485
    %s1503 = sld [smem:[#allocation7 + $0x1c]]
    %v1504 = vstv %s1503
    %v1505 = vmul.f32 %v1318, %v1504
    %v1506 = vmul.f32 %v1319, %v1504
    %s1507 = sld [smem:[#allocation7 + $0x4d]]
    %v1508 = vstv %s1507
    %v1509 = vmul.f32 %v1320, %v1508
    %v1510 = vmul.f32 %v1321, %v1508
    %v1511 = vadd.f32 %v1505, %v1509
    %v1512 = vadd.f32 %v1506, %v1510
    %v1513 = vld [vmem:[#allocation2 + $0x8] sm:$0xff]
    %v1514 = vld [vmem:[#allocation2 + $0x10] sm:$0xff]
    %v1515 = vld [vmem:[#allocation2 + $0x18] sm:$0xff]
    %v1516 = vld [vmem:[#allocation2 + $0x28] sm:$0xff]
    %v1517 = vld [vmem:[#allocation2 + $0x30] sm:$0xff]
    %v1518 = vld [vmem:[#allocation2 + $0x38] sm:$0xff]
    %v1519 = vmul.f32 %v1511, %v1513
    %v1520 = vmul.f32 %v1511, %v1514
    %v1521 = vmul.f32 %v1511, %v1515
    %v1522 = vmul.f32 %v1512, %v1516
    %v1523 = vmul.f32 %v1512, %v1517
    %v1524 = vmul.f32 %v1512, %v1518
    %1531 = vrot.lane.b32.xlu0 %v1519, 64
    %v1532 = vpop.permute.xlu0 %1531
    %1533 = vrot.lane.b32.xlu0 %v1520, 64
    %v1534 = vpop.permute.xlu0 %1533
    %1535 = vrot.lane.b32.xlu0 %v1521, 64
    %v1536 = vpop.permute.xlu0 %1535
    %1537 = vrot.lane.b32.xlu0 %v1522, 64
    %v1538 = vpop.permute.xlu0 %1537
    %1539 = vrot.lane.b32.xlu0 %v1523, 64
    %v1540 = vpop.permute.xlu0 %1539
    %1541 = vrot.lane.b32.xlu0 %v1524, 64
    %v1542 = vpop.permute.xlu0 %1541
    %vm1543 = vcmask 523264
    %v1544 = vsel %vm1543, %v1532, %v1534
    %v1545 = vsel %vm1543, %v1534, %v1536
    %v1546 = vsel %vm1543, %v1538, %v1540
    %v1547 = vsel %vm1543, %v1540, %v1542
    %v1554 = vadd.f32 %v1497, %v1532
    %v1555 = vadd.f32 %v1498, %v1544
    %v1556 = vadd.f32 %v1499, %v1545
    %v1557 = vadd.f32 %v1500, %v1538
    %v1558 = vadd.f32 %v1501, %v1546
    %v1559 = vadd.f32 %v1502, %v1547
    %s1560 = sld [smem:[#allocation7 + $0x23]]
    %v1561 = vstv %s1560
    %v1562 = vmul.f32 %v1318, %v1561
    %v1563 = vmul.f32 %v1319, %v1561
    %s1564 = sld [smem:[#allocation7 + $0x54]]
    %v1565 = vstv %s1564
    %v1566 = vmul.f32 %v1320, %v1565
    %v1567 = vmul.f32 %v1321, %v1565
    %v1568 = vadd.f32 %v1562, %v1566
    %v1569 = vadd.f32 %v1563, %v1567
    %v1570 = vmul.f32 %v1568, %v1513
    %v1571 = vmul.f32 %v1568, %v1514
    %v1572 = vmul.f32 %v1568, %v1515
    %v1573 = vmul.f32 %v1569, %v1516
    %v1574 = vmul.f32 %v1569, %v1517
    %v1575 = vmul.f32 %v1569, %v1518
    %1582 = vrot.lane.b32.xlu0 %v1570, 48
    %v1583 = vpop.permute.xlu0 %1582
    %1584 = vrot.lane.b32.xlu0 %v1571, 48
    %v1585 = vpop.permute.xlu0 %1584
    %1586 = vrot.lane.b32.xlu0 %v1572, 48
    %v1587 = vpop.permute.xlu0 %1586
    %1588 = vrot.lane.b32.xlu0 %v1573, 48
    %v1589 = vpop.permute.xlu0 %1588
    %1590 = vrot.lane.b32.xlu0 %v1574, 48
    %v1591 = vpop.permute.xlu0 %1590
    %1592 = vrot.lane.b32.xlu0 %v1575, 48
    %v1593 = vpop.permute.xlu0 %1592
    %vm1594 = vcmask 392192
    %v1595 = vsel %vm1594, %v1583, %v1585
    %v1596 = vsel %vm1594, %v1585, %v1587
    %v1597 = vsel %vm1594, %v1589, %v1591
    %v1598 = vsel %vm1594, %v1591, %v1593
    %v1605 = vadd.f32 %v1554, %v1583
    %v1606 = vadd.f32 %v1555, %v1595
    %v1607 = vadd.f32 %v1556, %v1596
    %v1608 = vadd.f32 %v1557, %v1589
    %v1609 = vadd.f32 %v1558, %v1597
    %v1610 = vadd.f32 %v1559, %v1598
    %s1611 = sld [smem:[#allocation7 + $0x2a]]
    %v1612 = vstv %s1611
    %v1613 = vmul.f32 %v1318, %v1612
    %v1614 = vmul.f32 %v1319, %v1612
    %s1615 = sld [smem:[#allocation7 + $0x5b]]
    %v1616 = vstv %s1615
    %v1617 = vmul.f32 %v1320, %v1616
    %v1618 = vmul.f32 %v1321, %v1616
    %v1619 = vadd.f32 %v1613, %v1617
    %v1620 = vadd.f32 %v1614, %v1618
    %v1621 = vmul.f32 %v1619, %v1513
    %v1622 = vmul.f32 %v1619, %v1514
    %v1623 = vmul.f32 %v1619, %v1515
    %v1624 = vmul.f32 %v1620, %v1516
    %v1625 = vmul.f32 %v1620, %v1517
    %v1626 = vmul.f32 %v1620, %v1518
    %1633 = vrot.lane.b32.xlu0 %v1621, 32
    %v1634 = vpop.permute.xlu0 %1633
    %1635 = vrot.lane.b32.xlu0 %v1622, 32
    %v1636 = vpop.permute.xlu0 %1635
    %1637 = vrot.lane.b32.xlu0 %v1623, 32
    %v1638 = vpop.permute.xlu0 %1637
    %1639 = vrot.lane.b32.xlu0 %v1624, 32
    %v1640 = vpop.permute.xlu0 %1639
    %1641 = vrot.lane.b32.xlu0 %v1625, 32
    %v1642 = vpop.permute.xlu0 %1641
    %1643 = vrot.lane.b32.xlu0 %v1626, 32
    %v1644 = vpop.permute.xlu0 %1643
    %v1645 = vsel %vm579, %v1634, %v1636
    %v1646 = vsel %vm579, %v1636, %v1638
    %v1647 = vsel %vm579, %v1640, %v1642
    %v1648 = vsel %vm579, %v1642, %v1644
    %v1655 = vadd.f32 %v1605, %v1634
    %v1656 = vadd.f32 %v1606, %v1645
    %v1657 = vadd.f32 %v1607, %v1646
    %v1658 = vadd.f32 %v1608, %v1640
    %v1659 = vadd.f32 %v1609, %v1647
    %v1660 = vadd.f32 %v1610, %v1648
    %v1661 = vld [vmem:[%s5] ss:$8 sm:$0x3]
    %v1663 = vperm.slane %v1661, 0
    %v1664 = vperm.slane %v1661, 1
    %1665 = vrot.lane.b32.xlu0 %v1663, 77
    %v1666 = vpop.permute.xlu0 %1665
    %1667 = vrot.lane.b32.xlu0 %v1664, 77
    %v1668 = vpop.permute.xlu0 %1667
    %vm1669 = vcmask 629760
    %v1670 = vsel %vm1669, %v1666, %v1668
    %v1674 = vmul.f32 %v1655, %v1666
    %v1675 = vmul.f32 %v1656, %v1670
    %v1676 = vmul.f32 %v1657, %v1668
    %v1677 = vmul.f32 %v1658, %v1666
    %v1678 = vmul.f32 %v1659, %v1670
    %v1679 = vmul.f32 %v1660, %v1668
    %s1680 = sld [smem:[#allocation7 + $0x1]]
    %v1681 = vstv %s1680
    %v1682 = vmul.f32 %v1318, %v1681
    %v1683 = vmul.f32 %v1319, %v1681
    %s1684 = sld [smem:[#allocation7 + $0x32]]
    %v1685 = vstv %s1684
    %v1686 = vmul.f32 %v1320, %v1685
    %v1687 = vmul.f32 %v1321, %v1685
    %v1688 = vadd.f32 %v1682, %v1686
    %v1689 = vadd.f32 %v1683, %v1687
    %v1690 = vmul.f32 %v1688, %v1332
    %v1691 = vmul.f32 %v1688, %v1333
    %v1692 = vmul.f32 %v1688, %v1334
    %v1693 = vmul.f32 %v1689, %v1335
    %v1694 = vmul.f32 %v1689, %v1336
    %v1695 = vmul.f32 %v1689, %v1337
    %v1696 = vadd.f32 %v1690, 0.0
    %v1697 = vadd.f32 %v1691, 0.0
    %v1698 = vadd.f32 %v1692, 0.0
    %v1699 = vadd.f32 %v1693, 0.0
    %v1700 = vadd.f32 %v1694, 0.0
    %v1701 = vadd.f32 %v1695, 0.0
    %s1702 = sld [smem:[#allocation7 + $0x8]]
    %v1703 = vstv %s1702
    %v1704 = vmul.f32 %v1318, %v1703
    %v1705 = vmul.f32 %v1319, %v1703
    %s1706 = sld [smem:[#allocation7 + $0x39]]
    %v1707 = vstv %s1706
    %v1708 = vmul.f32 %v1320, %v1707
    %v1709 = vmul.f32 %v1321, %v1707
    %v1710 = vadd.f32 %v1704, %v1708
    %v1711 = vadd.f32 %v1705, %v1709
    %v1712 = vmul.f32 %v1710, %v1332
    %v1713 = vmul.f32 %v1710, %v1333
    %v1714 = vmul.f32 %v1710, %v1334
    %v1715 = vmul.f32 %v1711, %v1335
    %v1716 = vmul.f32 %v1711, %v1336
    %v1717 = vmul.f32 %v1711, %v1337
    %1724 = vrot.lane.b32.xlu0 %v1712, 112
    %v1725 = vpop.permute.xlu0 %1724
    %1726 = vrot.lane.b32.xlu0 %v1713, 112
    %v1727 = vpop.permute.xlu0 %1726
    %1728 = vrot.lane.b32.xlu0 %v1714, 112
    %v1729 = vpop.permute.xlu0 %1728
    %1730 = vrot.lane.b32.xlu0 %v1715, 112
    %v1731 = vpop.permute.xlu0 %1730
    %1732 = vrot.lane.b32.xlu0 %v1716, 112
    %v1733 = vpop.permute.xlu0 %1732
    %1734 = vrot.lane.b32.xlu0 %v1717, 112
    %v1735 = vpop.permute.xlu0 %1734
    %v1736 = vsel %vm1384, %v1725, %v1727
    %v1737 = vsel %vm1384, %v1727, %v1729
    %v1738 = vsel %vm1384, %v1731, %v1733
    %v1739 = vsel %vm1384, %v1733, %v1735
    %v1746 = vadd.f32 %v1696, %v1736
    %v1747 = vadd.f32 %v1697, %v1737
    %v1748 = vadd.f32 %v1698, %v1729
    %v1749 = vadd.f32 %v1699, %v1738
    %v1750 = vadd.f32 %v1700, %v1739
    %v1751 = vadd.f32 %v1701, %v1735
    %s1752 = sld [smem:[#allocation7 + $0xf]]
    %v1753 = vstv %s1752
    %v1754 = vmul.f32 %v1318, %v1753
    %v1755 = vmul.f32 %v1319, %v1753
    %s1756 = sld [smem:[#allocation7 + $0x40]]
    %v1757 = vstv %s1756
    %v1758 = vmul.f32 %v1320, %v1757
    %v1759 = vmul.f32 %v1321, %v1757
    %v1760 = vadd.f32 %v1754, %v1758
    %v1761 = vadd.f32 %v1755, %v1759
    %v1762 = vmul.f32 %v1760, %v1332
    %v1763 = vmul.f32 %v1760, %v1333
    %v1764 = vmul.f32 %v1760, %v1334
    %v1765 = vmul.f32 %v1761, %v1335
    %v1766 = vmul.f32 %v1761, %v1336
    %v1767 = vmul.f32 %v1761, %v1337
    %1774 = vrot.lane.b32.xlu0 %v1762, 96
    %v1775 = vpop.permute.xlu0 %1774
    %1776 = vrot.lane.b32.xlu0 %v1763, 96
    %v1777 = vpop.permute.xlu0 %1776
    %1778 = vrot.lane.b32.xlu0 %v1764, 96
    %v1779 = vpop.permute.xlu0 %1778
    %1780 = vrot.lane.b32.xlu0 %v1765, 96
    %v1781 = vpop.permute.xlu0 %1780
    %1782 = vrot.lane.b32.xlu0 %v1766, 96
    %v1783 = vpop.permute.xlu0 %1782
    %1784 = vrot.lane.b32.xlu0 %v1767, 96
    %v1785 = vpop.permute.xlu0 %1784
    %v1786 = vsel %vm1435, %v1775, %v1777
    %v1787 = vsel %vm1435, %v1777, %v1779
    %v1788 = vsel %vm1435, %v1781, %v1783
    %v1789 = vsel %vm1435, %v1783, %v1785
    %v1796 = vadd.f32 %v1746, %v1786
    %v1797 = vadd.f32 %v1747, %v1787
    %v1798 = vadd.f32 %v1748, %v1779
    %v1799 = vadd.f32 %v1749, %v1788
    %v1800 = vadd.f32 %v1750, %v1789
    %v1801 = vadd.f32 %v1751, %v1785
    %s1802 = sld [smem:[#allocation7 + $0x16]]
    %v1803 = vstv %s1802
    %v1804 = vmul.f32 %v1318, %v1803
    %v1805 = vmul.f32 %v1319, %v1803
    %s1806 = sld [smem:[#allocation7 + $0x47]]
    %v1807 = vstv %s1806
    %v1808 = vmul.f32 %v1320, %v1807
    %v1809 = vmul.f32 %v1321, %v1807
    %v1810 = vadd.f32 %v1804, %v1808
    %v1811 = vadd.f32 %v1805, %v1809
    %v1812 = vmul.f32 %v1810, %v1332
    %v1813 = vmul.f32 %v1810, %v1333
    %v1814 = vmul.f32 %v1810, %v1334
    %v1815 = vmul.f32 %v1811, %v1335
    %v1816 = vmul.f32 %v1811, %v1336
    %v1817 = vmul.f32 %v1811, %v1337
    %1824 = vrot.lane.b32.xlu0 %v1812, 80
    %v1825 = vpop.permute.xlu0 %1824
    %1826 = vrot.lane.b32.xlu0 %v1813, 80
    %v1827 = vpop.permute.xlu0 %1826
    %1828 = vrot.lane.b32.xlu0 %v1814, 80
    %v1829 = vpop.permute.xlu0 %1828
    %1830 = vrot.lane.b32.xlu0 %v1815, 80
    %v1831 = vpop.permute.xlu0 %1830
    %1832 = vrot.lane.b32.xlu0 %v1816, 80
    %v1833 = vpop.permute.xlu0 %1832
    %1834 = vrot.lane.b32.xlu0 %v1817, 80
    %v1835 = vpop.permute.xlu0 %1834
    %v1836 = vsel %vm1486, %v1825, %v1827
    %v1837 = vsel %vm1486, %v1827, %v1829
    %v1838 = vsel %vm1486, %v1831, %v1833
    %v1839 = vsel %vm1486, %v1833, %v1835
    %v1846 = vadd.f32 %v1796, %v1836
    %v1847 = vadd.f32 %v1797, %v1837
    %v1848 = vadd.f32 %v1798, %v1829
    %v1849 = vadd.f32 %v1799, %v1838
    %v1850 = vadd.f32 %v1800, %v1839
    %v1851 = vadd.f32 %v1801, %v1835
    %s1852 = sld [smem:[#allocation7 + $0x1d]]
    %v1853 = vstv %s1852
    %v1854 = vmul.f32 %v1318, %v1853
    %v1855 = vmul.f32 %v1319, %v1853
    %s1856 = sld [smem:[#allocation7 + $0x4e]]
    %v1857 = vstv %s1856
    %v1858 = vmul.f32 %v1320, %v1857
    %v1859 = vmul.f32 %v1321, %v1857
    %v1860 = vadd.f32 %v1854, %v1858
    %v1861 = vadd.f32 %v1855, %v1859
    %v1862 = vmul.f32 %v1860, %v1513
    %v1863 = vmul.f32 %v1860, %v1514
    %v1864 = vmul.f32 %v1860, %v1515
    %v1865 = vmul.f32 %v1861, %v1516
    %v1866 = vmul.f32 %v1861, %v1517
    %v1867 = vmul.f32 %v1861, %v1518
    %1874 = vrot.lane.b32.xlu0 %v1862, 64
    %v1875 = vpop.permute.xlu0 %1874
    %1876 = vrot.lane.b32.xlu0 %v1863, 64
    %v1877 = vpop.permute.xlu0 %1876
    %1878 = vrot.lane.b32.xlu0 %v1864, 64
    %v1879 = vpop.permute.xlu0 %1878
    %1880 = vrot.lane.b32.xlu0 %v1865, 64
    %v1881 = vpop.permute.xlu0 %1880
    %1882 = vrot.lane.b32.xlu0 %v1866, 64
    %v1883 = vpop.permute.xlu0 %1882
    %1884 = vrot.lane.b32.xlu0 %v1867, 64
    %v1885 = vpop.permute.xlu0 %1884
    %v1886 = vsel %vm1543, %v1875, %v1877
    %v1887 = vsel %vm1543, %v1877, %v1879
    %v1888 = vsel %vm1543, %v1881, %v1883
    %v1889 = vsel %vm1543, %v1883, %v1885
    %v1896 = vadd.f32 %v1846, %v1875
    %v1897 = vadd.f32 %v1847, %v1886
    %v1898 = vadd.f32 %v1848, %v1887
    %v1899 = vadd.f32 %v1849, %v1881
    %v1900 = vadd.f32 %v1850, %v1888
    %v1901 = vadd.f32 %v1851, %v1889
    %s1902 = sld [smem:[#allocation7 + $0x24]]
    %v1903 = vstv %s1902
    %v1904 = vmul.f32 %v1318, %v1903
    %v1905 = vmul.f32 %v1319, %v1903
    %s1906 = sld [smem:[#allocation7 + $0x55]]
    %v1907 = vstv %s1906
    %v1908 = vmul.f32 %v1320, %v1907
    %v1909 = vmul.f32 %v1321, %v1907
    %v1910 = vadd.f32 %v1904, %v1908
    %v1911 = vadd.f32 %v1905, %v1909
    %v1912 = vmul.f32 %v1910, %v1513
    %v1913 = vmul.f32 %v1910, %v1514
    %v1914 = vmul.f32 %v1910, %v1515
    %v1915 = vmul.f32 %v1911, %v1516
    %v1916 = vmul.f32 %v1911, %v1517
    %v1917 = vmul.f32 %v1911, %v1518
    %1924 = vrot.lane.b32.xlu0 %v1912, 48
    %v1925 = vpop.permute.xlu0 %1924
    %1926 = vrot.lane.b32.xlu0 %v1913, 48
    %v1927 = vpop.permute.xlu0 %1926
    %1928 = vrot.lane.b32.xlu0 %v1914, 48
    %v1929 = vpop.permute.xlu0 %1928
    %1930 = vrot.lane.b32.xlu0 %v1915, 48
    %v1931 = vpop.permute.xlu0 %1930
    %1932 = vrot.lane.b32.xlu0 %v1916, 48
    %v1933 = vpop.permute.xlu0 %1932
    %1934 = vrot.lane.b32.xlu0 %v1917, 48
    %v1935 = vpop.permute.xlu0 %1934
    %v1936 = vsel %vm1594, %v1925, %v1927
    %v1937 = vsel %vm1594, %v1927, %v1929
    %v1938 = vsel %vm1594, %v1931, %v1933
    %v1939 = vsel %vm1594, %v1933, %v1935
    %v1946 = vadd.f32 %v1896, %v1925
    %v1947 = vadd.f32 %v1897, %v1936
    %v1948 = vadd.f32 %v1898, %v1937
    %v1949 = vadd.f32 %v1899, %v1931
    %v1950 = vadd.f32 %v1900, %v1938
    %v1951 = vadd.f32 %v1901, %v1939
    %s1952 = sld [smem:[#allocation7 + $0x2b]]
    %v1953 = vstv %s1952
    %v1954 = vmul.f32 %v1318, %v1953
    %v1955 = vmul.f32 %v1319, %v1953
    %s1956 = sld [smem:[#allocation7 + $0x5c]]
    %v1957 = vstv %s1956
    %v1958 = vmul.f32 %v1320, %v1957
    %v1959 = vmul.f32 %v1321, %v1957
    %v1960 = vadd.f32 %v1954, %v1958
    %v1961 = vadd.f32 %v1955, %v1959
    %v1962 = vmul.f32 %v1960, %v1513
    %v1963 = vmul.f32 %v1960, %v1514
    %v1964 = vmul.f32 %v1960, %v1515
    %v1965 = vmul.f32 %v1961, %v1516
    %v1966 = vmul.f32 %v1961, %v1517
    %v1967 = vmul.f32 %v1961, %v1518
    %1974 = vrot.lane.b32.xlu0 %v1962, 32
    %v1975 = vpop.permute.xlu0 %1974
    %1976 = vrot.lane.b32.xlu0 %v1963, 32
    %v1977 = vpop.permute.xlu0 %1976
    %1978 = vrot.lane.b32.xlu0 %v1964, 32
    %v1979 = vpop.permute.xlu0 %1978
    %1980 = vrot.lane.b32.xlu0 %v1965, 32
    %v1981 = vpop.permute.xlu0 %1980
    %1982 = vrot.lane.b32.xlu0 %v1966, 32
    %v1983 = vpop.permute.xlu0 %1982
    %1984 = vrot.lane.b32.xlu0 %v1967, 32
    %v1985 = vpop.permute.xlu0 %1984
    %v1986 = vsel %vm579, %v1975, %v1977
    %v1987 = vsel %vm579, %v1977, %v1979
    %v1988 = vsel %vm579, %v1981, %v1983
    %v1989 = vsel %vm579, %v1983, %v1985
    %v1996 = vadd.f32 %v1946, %v1975
    %v1997 = vadd.f32 %v1947, %v1986
    %v1998 = vadd.f32 %v1948, %v1987
    %v1999 = vadd.f32 %v1949, %v1981
    %v2000 = vadd.f32 %v1950, %v1988
    %v2001 = vadd.f32 %v1951, %v1989
    %s2002 = scalar_lea.vmem %s5, 1
    %v2003 = vld [vmem:[%s2002] ss:$8 sm:$0x3]
    %v2005 = vperm.slane %v2003, 0
    %v2006 = vperm.slane %v2003, 1
    %2007 = vrot.lane.b32.xlu0 %v2005, 78
    %v2008 = vpop.permute.xlu0 %2007
    %2009 = vrot.lane.b32.xlu0 %v2006, 78
    %v2010 = vpop.permute.xlu0 %2009
    %vm2011 = vcmask 637952
    %v2012 = vsel %vm2011, %v2008, %v2010
    %v2016 = vmul.f32 %v1996, %v2008
    %v2017 = vmul.f32 %v1997, %v2012
    %v2018 = vmul.f32 %v1998, %v2010
    %v2019 = vmul.f32 %v1999, %v2008
    %v2020 = vmul.f32 %v2000, %v2012
    %v2021 = vmul.f32 %v2001, %v2010
    %s2022 = sld [smem:[#allocation7 + $0x2]]
    %v2023 = vstv %s2022
    %v2024 = vmul.f32 %v1318, %v2023
    %v2025 = vmul.f32 %v1319, %v2023
    %s2026 = sld [smem:[#allocation7 + $0x33]]
    %v2027 = vstv %s2026
    %v2028 = vmul.f32 %v1320, %v2027
    %v2029 = vmul.f32 %v1321, %v2027
    %v2030 = vadd.f32 %v2024, %v2028
    %v2031 = vadd.f32 %v2025, %v2029
    %v2032 = vmul.f32 %v2030, %v1332
    %v2033 = vmul.f32 %v2030, %v1333
    %v2034 = vmul.f32 %v2030, %v1334
    %v2035 = vmul.f32 %v2031, %v1335
    %v2036 = vmul.f32 %v2031, %v1336
    %v2037 = vmul.f32 %v2031, %v1337
    %v2038 = vadd.f32 %v2032, 0.0
    %v2039 = vadd.f32 %v2033, 0.0
    %v2040 = vadd.f32 %v2034, 0.0
    %v2041 = vadd.f32 %v2035, 0.0
    %v2042 = vadd.f32 %v2036, 0.0
    %v2043 = vadd.f32 %v2037, 0.0
    %s2044 = sld [smem:[#allocation7 + $0x9]]
    %v2045 = vstv %s2044
    %v2046 = vmul.f32 %v1318, %v2045
    %v2047 = vmul.f32 %v1319, %v2045
    %s2048 = sld [smem:[#allocation7 + $0x3a]]
    %v2049 = vstv %s2048
    %v2050 = vmul.f32 %v1320, %v2049
    %v2051 = vmul.f32 %v1321, %v2049
    %v2052 = vadd.f32 %v2046, %v2050
    %v2053 = vadd.f32 %v2047, %v2051
    %v2054 = vmul.f32 %v2052, %v1332
    %v2055 = vmul.f32 %v2052, %v1333
    %v2056 = vmul.f32 %v2052, %v1334
    %v2057 = vmul.f32 %v2053, %v1335
    %v2058 = vmul.f32 %v2053, %v1336
    %v2059 = vmul.f32 %v2053, %v1337
    %2066 = vrot.lane.b32.xlu0 %v2054, 112
    %v2067 = vpop.permute.xlu0 %2066
    %2068 = vrot.lane.b32.xlu0 %v2055, 112
    %v2069 = vpop.permute.xlu0 %2068
    %2070 = vrot.lane.b32.xlu0 %v2056, 112
    %v2071 = vpop.permute.xlu0 %2070
    %2072 = vrot.lane.b32.xlu0 %v2057, 112
    %v2073 = vpop.permute.xlu0 %2072
    %2074 = vrot.lane.b32.xlu0 %v2058, 112
    %v2075 = vpop.permute.xlu0 %2074
    %2076 = vrot.lane.b32.xlu0 %v2059, 112
    %v2077 = vpop.permute.xlu0 %2076
    %v2078 = vsel %vm1384, %v2067, %v2069
    %v2079 = vsel %vm1384, %v2069, %v2071
    %v2080 = vsel %vm1384, %v2073, %v2075
    %v2081 = vsel %vm1384, %v2075, %v2077
    %v2088 = vadd.f32 %v2038, %v2078
    %v2089 = vadd.f32 %v2039, %v2079
    %v2090 = vadd.f32 %v2040, %v2071
    %v2091 = vadd.f32 %v2041, %v2080
    %v2092 = vadd.f32 %v2042, %v2081
    %v2093 = vadd.f32 %v2043, %v2077
    %s2094 = sld [smem:[#allocation7 + $0x10]]
    %v2095 = vstv %s2094
    %v2096 = vmul.f32 %v1318, %v2095
    %v2097 = vmul.f32 %v1319, %v2095
    %s2098 = sld [smem:[#allocation7 + $0x41]]
    %v2099 = vstv %s2098
    %v2100 = vmul.f32 %v1320, %v2099
    %v2101 = vmul.f32 %v1321, %v2099
    %v2102 = vadd.f32 %v2096, %v2100
    %v2103 = vadd.f32 %v2097, %v2101
    %v2104 = vmul.f32 %v2102, %v1332
    %v2105 = vmul.f32 %v2102, %v1333
    %v2106 = vmul.f32 %v2102, %v1334
    %v2107 = vmul.f32 %v2103, %v1335
    %v2108 = vmul.f32 %v2103, %v1336
    %v2109 = vmul.f32 %v2103, %v1337
    %2116 = vrot.lane.b32.xlu0 %v2104, 96
    %v2117 = vpop.permute.xlu0 %2116
    %2118 = vrot.lane.b32.xlu0 %v2105, 96
    %v2119 = vpop.permute.xlu0 %2118
    %2120 = vrot.lane.b32.xlu0 %v2106, 96
    %v2121 = vpop.permute.xlu0 %2120
    %2122 = vrot.lane.b32.xlu0 %v2107, 96
    %v2123 = vpop.permute.xlu0 %2122
    %2124 = vrot.lane.b32.xlu0 %v2108, 96
    %v2125 = vpop.permute.xlu0 %2124
    %2126 = vrot.lane.b32.xlu0 %v2109, 96
    %v2127 = vpop.permute.xlu0 %2126
    %v2128 = vsel %vm1435, %v2117, %v2119
    %v2129 = vsel %vm1435, %v2119, %v2121
    %v2130 = vsel %vm1435, %v2123, %v2125
    %v2131 = vsel %vm1435, %v2125, %v2127
    %v2138 = vadd.f32 %v2088, %v2128
    %v2139 = vadd.f32 %v2089, %v2129
    %v2140 = vadd.f32 %v2090, %v2121
    %v2141 = vadd.f32 %v2091, %v2130
    %v2142 = vadd.f32 %v2092, %v2131
    %v2143 = vadd.f32 %v2093, %v2127
    %s2144 = sld [smem:[#allocation7 + $0x17]]
    %v2145 = vstv %s2144
    %v2146 = vmul.f32 %v1318, %v2145
    %v2147 = vmul.f32 %v1319, %v2145
    %s2148 = sld [smem:[#allocation7 + $0x48]]
    %v2149 = vstv %s2148
    %v2150 = vmul.f32 %v1320, %v2149
    %v2151 = vmul.f32 %v1321, %v2149
    %v2152 = vadd.f32 %v2146, %v2150
    %v2153 = vadd.f32 %v2147, %v2151
    %v2154 = vmul.f32 %v2152, %v1332
    %v2155 = vmul.f32 %v2152, %v1333
    %v2156 = vmul.f32 %v2152, %v1334
    %v2157 = vmul.f32 %v2153, %v1335
    %v2158 = vmul.f32 %v2153, %v1336
    %v2159 = vmul.f32 %v2153, %v1337
    %2166 = vrot.lane.b32.xlu0 %v2154, 80
    %v2167 = vpop.permute.xlu0 %2166
    %2168 = vrot.lane.b32.xlu0 %v2155, 80
    %v2169 = vpop.permute.xlu0 %2168
    %2170 = vrot.lane.b32.xlu0 %v2156, 80
    %v2171 = vpop.permute.xlu0 %2170
    %2172 = vrot.lane.b32.xlu0 %v2157, 80
    %v2173 = vpop.permute.xlu0 %2172
    %2174 = vrot.lane.b32.xlu0 %v2158, 80
    %v2175 = vpop.permute.xlu0 %2174
    %2176 = vrot.lane.b32.xlu0 %v2159, 80
    %v2177 = vpop.permute.xlu0 %2176
    %v2178 = vsel %vm1486, %v2167, %v2169
    %v2179 = vsel %vm1486, %v2169, %v2171
    %v2180 = vsel %vm1486, %v2173, %v2175
    %v2181 = vsel %vm1486, %v2175, %v2177
    %v2188 = vadd.f32 %v2138, %v2178
    %v2189 = vadd.f32 %v2139, %v2179
    %v2190 = vadd.f32 %v2140, %v2171
    %v2191 = vadd.f32 %v2141, %v2180
    %v2192 = vadd.f32 %v2142, %v2181
    %v2193 = vadd.f32 %v2143, %v2177
    %s2194 = sld [smem:[#allocation7 + $0x1e]]
    %v2195 = vstv %s2194
    %v2196 = vmul.f32 %v1318, %v2195
    %v2197 = vmul.f32 %v1319, %v2195
    %s2198 = sld [smem:[#allocation7 + $0x4f]]
    %v2199 = vstv %s2198
    %v2200 = vmul.f32 %v1320, %v2199
    %v2201 = vmul.f32 %v1321, %v2199
    %v2202 = vadd.f32 %v2196, %v2200
    %v2203 = vadd.f32 %v2197, %v2201
    %v2204 = vmul.f32 %v2202, %v1513
    %v2205 = vmul.f32 %v2202, %v1514
    %v2206 = vmul.f32 %v2202, %v1515
    %v2207 = vmul.f32 %v2203, %v1516
    %v2208 = vmul.f32 %v2203, %v1517
    %v2209 = vmul.f32 %v2203, %v1518
    %2216 = vrot.lane.b32.xlu0 %v2204, 64
    %v2217 = vpop.permute.xlu0 %2216
    %2218 = vrot.lane.b32.xlu0 %v2205, 64
    %v2219 = vpop.permute.xlu0 %2218
    %2220 = vrot.lane.b32.xlu0 %v2206, 64
    %v2221 = vpop.permute.xlu0 %2220
    %2222 = vrot.lane.b32.xlu0 %v2207, 64
    %v2223 = vpop.permute.xlu0 %2222
    %2224 = vrot.lane.b32.xlu0 %v2208, 64
    %v2225 = vpop.permute.xlu0 %2224
    %2226 = vrot.lane.b32.xlu0 %v2209, 64
    %v2227 = vpop.permute.xlu0 %2226
    %v2228 = vsel %vm1543, %v2217, %v2219
    %v2229 = vsel %vm1543, %v2219, %v2221
    %v2230 = vsel %vm1543, %v2223, %v2225
    %v2231 = vsel %vm1543, %v2225, %v2227
    %v2238 = vadd.f32 %v2188, %v2217
    %v2239 = vadd.f32 %v2189, %v2228
    %v2240 = vadd.f32 %v2190, %v2229
    %v2241 = vadd.f32 %v2191, %v2223
    %v2242 = vadd.f32 %v2192, %v2230
    %v2243 = vadd.f32 %v2193, %v2231
    %s2244 = sld [smem:[#allocation7 + $0x25]]
    %v2245 = vstv %s2244
    %v2246 = vmul.f32 %v1318, %v2245
    %v2247 = vmul.f32 %v1319, %v2245
    %s2248 = sld [smem:[#allocation7 + $0x56]]
    %v2249 = vstv %s2248
    %v2250 = vmul.f32 %v1320, %v2249
    %v2251 = vmul.f32 %v1321, %v2249
    %v2252 = vadd.f32 %v2246, %v2250
    %v2253 = vadd.f32 %v2247, %v2251
    %v2254 = vmul.f32 %v2252, %v1513
    %v2255 = vmul.f32 %v2252, %v1514
    %v2256 = vmul.f32 %v2252, %v1515
    %v2257 = vmul.f32 %v2253, %v1516
    %v2258 = vmul.f32 %v2253, %v1517
    %v2259 = vmul.f32 %v2253, %v1518
    %2266 = vrot.lane.b32.xlu0 %v2254, 48
    %v2267 = vpop.permute.xlu0 %2266
    %2268 = vrot.lane.b32.xlu0 %v2255, 48
    %v2269 = vpop.permute.xlu0 %2268
    %2270 = vrot.lane.b32.xlu0 %v2256, 48
    %v2271 = vpop.permute.xlu0 %2270
    %2272 = vrot.lane.b32.xlu0 %v2257, 48
    %v2273 = vpop.permute.xlu0 %2272
    %2274 = vrot.lane.b32.xlu0 %v2258, 48
    %v2275 = vpop.permute.xlu0 %2274
    %2276 = vrot.lane.b32.xlu0 %v2259, 48
    %v2277 = vpop.permute.xlu0 %2276
    %v2278 = vsel %vm1594, %v2267, %v2269
    %v2279 = vsel %vm1594, %v2269, %v2271
    %v2280 = vsel %vm1594, %v2273, %v2275
    %v2281 = vsel %vm1594, %v2275, %v2277
    %v2288 = vadd.f32 %v2238, %v2267
    %v2289 = vadd.f32 %v2239, %v2278
    %v2290 = vadd.f32 %v2240, %v2279
    %v2291 = vadd.f32 %v2241, %v2273
    %v2292 = vadd.f32 %v2242, %v2280
    %v2293 = vadd.f32 %v2243, %v2281
    %s2294 = sld [smem:[#allocation7 + $0x2c]]
    %v2295 = vstv %s2294
    %v2296 = vmul.f32 %v1318, %v2295
    %v2297 = vmul.f32 %v1319, %v2295
    %s2298 = sld [smem:[#allocation7 + $0x5d]]
    %v2299 = vstv %s2298
    %v2300 = vmul.f32 %v1320, %v2299
    %v2301 = vmul.f32 %v1321, %v2299
    %v2302 = vadd.f32 %v2296, %v2300
    %v2303 = vadd.f32 %v2297, %v2301
    %v2304 = vmul.f32 %v2302, %v1513
    %v2305 = vmul.f32 %v2302, %v1514
    %v2306 = vmul.f32 %v2302, %v1515
    %v2307 = vmul.f32 %v2303, %v1516
    %v2308 = vmul.f32 %v2303, %v1517
    %v2309 = vmul.f32 %v2303, %v1518
    %2316 = vrot.lane.b32.xlu0 %v2304, 32
    %v2317 = vpop.permute.xlu0 %2316
    %2318 = vrot.lane.b32.xlu0 %v2305, 32
    %v2319 = vpop.permute.xlu0 %2318
    %2320 = vrot.lane.b32.xlu0 %v2306, 32
    %v2321 = vpop.permute.xlu0 %2320
    %2322 = vrot.lane.b32.xlu0 %v2307, 32
    %v2323 = vpop.permute.xlu0 %2322
    %2324 = vrot.lane.b32.xlu0 %v2308, 32
    %v2325 = vpop.permute.xlu0 %2324
    %2326 = vrot.lane.b32.xlu0 %v2309, 32
    %v2327 = vpop.permute.xlu0 %2326
    %v2328 = vsel %vm579, %v2317, %v2319
    %v2329 = vsel %vm579, %v2319, %v2321
    %v2330 = vsel %vm579, %v2323, %v2325
    %v2331 = vsel %vm579, %v2325, %v2327
    %v2338 = vadd.f32 %v2288, %v2317
    %v2339 = vadd.f32 %v2289, %v2328
    %v2340 = vadd.f32 %v2290, %v2329
    %v2341 = vadd.f32 %v2291, %v2323
    %v2342 = vadd.f32 %v2292, %v2330
    %v2343 = vadd.f32 %v2293, %v2331
    %s2344 = scalar_lea.vmem %s5, 2
    %v2345 = vld [vmem:[%s2344] ss:$8 sm:$0x3]
    %v2347 = vperm.slane %v2345, 0
    %v2348 = vperm.slane %v2345, 1
    %2349 = vrot.lane.b32.xlu0 %v2347, 79
    %v2350 = vpop.permute.xlu0 %2349
    %2351 = vrot.lane.b32.xlu0 %v2348, 79
    %v2352 = vpop.permute.xlu0 %2351
    %vm2353 = vcmask 646144
    %v2354 = vsel %vm2353, %v2350, %v2352
    %v2358 = vmul.f32 %v2338, %v2350
    %v2359 = vmul.f32 %v2339, %v2354
    %v2360 = vmul.f32 %v2340, %v2352
    %v2361 = vmul.f32 %v2341, %v2350
    %v2362 = vmul.f32 %v2342, %v2354
    %v2363 = vmul.f32 %v2343, %v2352
    %s2364 = sld [smem:[#allocation7 + $0x3]]
    %v2365 = vstv %s2364
    %v2366 = vmul.f32 %v1318, %v2365
    %v2367 = vmul.f32 %v1319, %v2365
    %s2368 = sld [smem:[#allocation7 + $0x34]]
    %v2369 = vstv %s2368
    %v2370 = vmul.f32 %v1320, %v2369
    %v2371 = vmul.f32 %v1321, %v2369
    %v2372 = vadd.f32 %v2366, %v2370
    %v2373 = vadd.f32 %v2367, %v2371
    %v2374 = vmul.f32 %v2372, %v1332
    %v2375 = vmul.f32 %v2372, %v1333
    %v2376 = vmul.f32 %v2372, %v1334
    %v2377 = vmul.f32 %v2373, %v1335
    %v2378 = vmul.f32 %v2373, %v1336
    %v2379 = vmul.f32 %v2373, %v1337
    %v2380 = vadd.f32 %v2374, 0.0
    %v2381 = vadd.f32 %v2375, 0.0
    %v2382 = vadd.f32 %v2376, 0.0
    %v2383 = vadd.f32 %v2377, 0.0
    %v2384 = vadd.f32 %v2378, 0.0
    %v2385 = vadd.f32 %v2379, 0.0
    %s2386 = sld [smem:[#allocation7 + $0xa]]
    %v2387 = vstv %s2386
    %v2388 = vmul.f32 %v1318, %v2387
    %v2389 = vmul.f32 %v1319, %v2387
    %s2390 = sld [smem:[#allocation7 + $0x3b]]
    %v2391 = vstv %s2390
    %v2392 = vmul.f32 %v1320, %v2391
    %v2393 = vmul.f32 %v1321, %v2391
    %v2394 = vadd.f32 %v2388, %v2392
    %v2395 = vadd.f32 %v2389, %v2393
    %v2396 = vmul.f32 %v2394, %v1332
    %v2397 = vmul.f32 %v2394, %v1333
    %v2398 = vmul.f32 %v2394, %v1334
    %v2399 = vmul.f32 %v2395, %v1335
    %v2400 = vmul.f32 %v2395, %v1336
    %v2401 = vmul.f32 %v2395, %v1337
    %2408 = vrot.lane.b32.xlu0 %v2396, 112
    %v2409 = vpop.permute.xlu0 %2408
    %2410 = vrot.lane.b32.xlu0 %v2397, 112
    %v2411 = vpop.permute.xlu0 %2410
    %2412 = vrot.lane.b32.xlu0 %v2398, 112
    %v2413 = vpop.permute.xlu0 %2412
    %2414 = vrot.lane.b32.xlu0 %v2399, 112
    %v2415 = vpop.permute.xlu0 %2414
    %2416 = vrot.lane.b32.xlu0 %v2400, 112
    %v2417 = vpop.permute.xlu0 %2416
    %2418 = vrot.lane.b32.xlu0 %v2401, 112
    %v2419 = vpop.permute.xlu0 %2418
    %v2420 = vsel %vm1384, %v2409, %v2411
    %v2421 = vsel %vm1384, %v2411, %v2413
    %v2422 = vsel %vm1384, %v2415, %v2417
    %v2423 = vsel %vm1384, %v2417, %v2419
    %v2430 = vadd.f32 %v2380, %v2420
    %v2431 = vadd.f32 %v2381, %v2421
    %v2432 = vadd.f32 %v2382, %v2413
    %v2433 = vadd.f32 %v2383, %v2422
    %v2434 = vadd.f32 %v2384, %v2423
    %v2435 = vadd.f32 %v2385, %v2419
    %s2436 = sld [smem:[#allocation7 + $0x11]]
    %v2437 = vstv %s2436
    %v2438 = vmul.f32 %v1318, %v2437
    %v2439 = vmul.f32 %v1319, %v2437
    %s2440 = sld [smem:[#allocation7 + $0x42]]
    %v2441 = vstv %s2440
    %v2442 = vmul.f32 %v1320, %v2441
    %v2443 = vmul.f32 %v1321, %v2441
    %v2444 = vadd.f32 %v2438, %v2442
    %v2445 = vadd.f32 %v2439, %v2443
    %v2446 = vmul.f32 %v2444, %v1332
    %v2447 = vmul.f32 %v2444, %v1333
    %v2448 = vmul.f32 %v2444, %v1334
    %v2449 = vmul.f32 %v2445, %v1335
    %v2450 = vmul.f32 %v2445, %v1336
    %v2451 = vmul.f32 %v2445, %v1337
    %2458 = vrot.lane.b32.xlu0 %v2446, 96
    %v2459 = vpop.permute.xlu0 %2458
    %2460 = vrot.lane.b32.xlu0 %v2447, 96
    %v2461 = vpop.permute.xlu0 %2460
    %2462 = vrot.lane.b32.xlu0 %v2448, 96
    %v2463 = vpop.permute.xlu0 %2462
    %2464 = vrot.lane.b32.xlu0 %v2449, 96
    %v2465 = vpop.permute.xlu0 %2464
    %2466 = vrot.lane.b32.xlu0 %v2450, 96
    %v2467 = vpop.permute.xlu0 %2466
    %2468 = vrot.lane.b32.xlu0 %v2451, 96
    %v2469 = vpop.permute.xlu0 %2468
    %v2470 = vsel %vm1435, %v2459, %v2461
    %v2471 = vsel %vm1435, %v2461, %v2463
    %v2472 = vsel %vm1435, %v2465, %v2467
    %v2473 = vsel %vm1435, %v2467, %v2469
    %v2480 = vadd.f32 %v2430, %v2470
    %v2481 = vadd.f32 %v2431, %v2471
    %v2482 = vadd.f32 %v2432, %v2463
    %v2483 = vadd.f32 %v2433, %v2472
    %v2484 = vadd.f32 %v2434, %v2473
    %v2485 = vadd.f32 %v2435, %v2469
    %s2486 = sld [smem:[#allocation7 + $0x18]]
    %v2487 = vstv %s2486
    %v2488 = vmul.f32 %v1318, %v2487
    %v2489 = vmul.f32 %v1319, %v2487
    %s2490 = sld [smem:[#allocation7 + $0x49]]
    %v2491 = vstv %s2490
    %v2492 = vmul.f32 %v1320, %v2491
    %v2493 = vmul.f32 %v1321, %v2491
    %v2494 = vadd.f32 %v2488, %v2492
    %v2495 = vadd.f32 %v2489, %v2493
    %v2496 = vmul.f32 %v2494, %v1333
    %v2497 = vmul.f32 %v2494, %v1334
    %v2498 = vmul.f32 %v2495, %v1336
    %v2499 = vmul.f32 %v2495, %v1337
    %2504 = vrot.lane.b32.xlu0 %v2496, 80
    %v2505 = vpop.permute.xlu0 %2504
    %2506 = vrot.lane.b32.xlu0 %v2497, 80
    %v2507 = vpop.permute.xlu0 %2506
    %2508 = vrot.lane.b32.xlu0 %v2498, 80
    %v2509 = vpop.permute.xlu0 %2508
    %2510 = vrot.lane.b32.xlu0 %v2499, 80
    %v2511 = vpop.permute.xlu0 %2510
    %v2512 = vsel %vm1486, %v2505, %v2507
    %v2513 = vsel %vm1486, %v2509, %v2511
    %v2520 = vadd.f32 %v2480, %v2505
    %v2521 = vadd.f32 %v2481, %v2512
    %v2522 = vadd.f32 %v2482, %v2507
    %v2523 = vadd.f32 %v2483, %v2509
    %v2524 = vadd.f32 %v2484, %v2513
    %v2525 = vadd.f32 %v2485, %v2511
    %s2526 = sld [smem:[#allocation7 + $0x1f]]
    %v2527 = vstv %s2526
    %v2528 = vmul.f32 %v1318, %v2527
    %v2529 = vmul.f32 %v1319, %v2527
    %s2530 = sld [smem:[#allocation7 + $0x50]]
    %v2531 = vstv %s2530
    %v2532 = vmul.f32 %v1320, %v2531
    %v2533 = vmul.f32 %v1321, %v2531
    %v2534 = vadd.f32 %v2528, %v2532
    %v2535 = vadd.f32 %v2529, %v2533
    %v2536 = vmul.f32 %v2534, %v1513
    %v2537 = vmul.f32 %v2534, %v1514
    %v2538 = vmul.f32 %v2534, %v1515
    %v2539 = vmul.f32 %v2535, %v1516
    %v2540 = vmul.f32 %v2535, %v1517
    %v2541 = vmul.f32 %v2535, %v1518
    %2548 = vrot.lane.b32.xlu0 %v2536, 64
    %v2549 = vpop.permute.xlu0 %2548
    %2550 = vrot.lane.b32.xlu0 %v2537, 64
    %v2551 = vpop.permute.xlu0 %2550
    %2552 = vrot.lane.b32.xlu0 %v2538, 64
    %v2553 = vpop.permute.xlu0 %2552
    %2554 = vrot.lane.b32.xlu0 %v2539, 64
    %v2555 = vpop.permute.xlu0 %2554
    %2556 = vrot.lane.b32.xlu0 %v2540, 64
    %v2557 = vpop.permute.xlu0 %2556
    %2558 = vrot.lane.b32.xlu0 %v2541, 64
    %v2559 = vpop.permute.xlu0 %2558
    %v2560 = vsel %vm1543, %v2549, %v2551
    %v2561 = vsel %vm1543, %v2551, %v2553
    %v2562 = vsel %vm1543, %v2555, %v2557
    %v2563 = vsel %vm1543, %v2557, %v2559
    %v2570 = vadd.f32 %v2520, %v2549
    %v2571 = vadd.f32 %v2521, %v2560
    %v2572 = vadd.f32 %v2522, %v2561
    %v2573 = vadd.f32 %v2523, %v2555
    %v2574 = vadd.f32 %v2524, %v2562
    %v2575 = vadd.f32 %v2525, %v2563
    %s2576 = sld [smem:[#allocation7 + $0x26]]
    %v2577 = vstv %s2576
    %v2578 = vmul.f32 %v1318, %v2577
    %v2579 = vmul.f32 %v1319, %v2577
    %s2580 = sld [smem:[#allocation7 + $0x57]]
    %v2581 = vstv %s2580
    %v2582 = vmul.f32 %v1320, %v2581
    %v2583 = vmul.f32 %v1321, %v2581
    %v2584 = vadd.f32 %v2578, %v2582
    %v2585 = vadd.f32 %v2579, %v2583
    %v2586 = vmul.f32 %v2584, %v1513
    %v2587 = vmul.f32 %v2584, %v1514
    %v2588 = vmul.f32 %v2584, %v1515
    %v2589 = vmul.f32 %v2585, %v1516
    %v2590 = vmul.f32 %v2585, %v1517
    %v2591 = vmul.f32 %v2585, %v1518
    %2598 = vrot.lane.b32.xlu0 %v2586, 48
    %v2599 = vpop.permute.xlu0 %2598
    %2600 = vrot.lane.b32.xlu0 %v2587, 48
    %v2601 = vpop.permute.xlu0 %2600
    %2602 = vrot.lane.b32.xlu0 %v2588, 48
    %v2603 = vpop.permute.xlu0 %2602
    %2604 = vrot.lane.b32.xlu0 %v2589, 48
    %v2605 = vpop.permute.xlu0 %2604
    %2606 = vrot.lane.b32.xlu0 %v2590, 48
    %v2607 = vpop.permute.xlu0 %2606
    %2608 = vrot.lane.b32.xlu0 %v2591, 48
    %v2609 = vpop.permute.xlu0 %2608
    %v2610 = vsel %vm1594, %v2599, %v2601
    %v2611 = vsel %vm1594, %v2601, %v2603
    %v2612 = vsel %vm1594, %v2605, %v2607
    %v2613 = vsel %vm1594, %v2607, %v2609
    %v2620 = vadd.f32 %v2570, %v2599
    %v2621 = vadd.f32 %v2571, %v2610
    %v2622 = vadd.f32 %v2572, %v2611
    %v2623 = vadd.f32 %v2573, %v2605
    %v2624 = vadd.f32 %v2574, %v2612
    %v2625 = vadd.f32 %v2575, %v2613
    %s2626 = sld [smem:[#allocation7 + $0x2d]]
    %v2627 = vstv %s2626
    %v2628 = vmul.f32 %v1318, %v2627
    %v2629 = vmul.f32 %v1319, %v2627
    %s2630 = sld [smem:[#allocation7 + $0x5e]]
    %v2631 = vstv %s2630
    %v2632 = vmul.f32 %v1320, %v2631
    %v2633 = vmul.f32 %v1321, %v2631
    %v2634 = vadd.f32 %v2628, %v2632
    %v2635 = vadd.f32 %v2629, %v2633
    %v2636 = vmul.f32 %v2634, %v1513
    %v2637 = vmul.f32 %v2634, %v1514
    %v2638 = vmul.f32 %v2634, %v1515
    %v2639 = vmul.f32 %v2635, %v1516
    %v2640 = vmul.f32 %v2635, %v1517
    %v2641 = vmul.f32 %v2635, %v1518
    %2648 = vrot.lane.b32.xlu0 %v2636, 32
    %v2649 = vpop.permute.xlu0 %2648
    %2650 = vrot.lane.b32.xlu0 %v2637, 32
    %v2651 = vpop.permute.xlu0 %2650
    %2652 = vrot.lane.b32.xlu0 %v2638, 32
    %v2653 = vpop.permute.xlu0 %2652
    %2654 = vrot.lane.b32.xlu0 %v2639, 32
    %v2655 = vpop.permute.xlu0 %2654
    %2656 = vrot.lane.b32.xlu0 %v2640, 32
    %v2657 = vpop.permute.xlu0 %2656
    %2658 = vrot.lane.b32.xlu0 %v2641, 32
    %v2659 = vpop.permute.xlu0 %2658
    %v2660 = vsel %vm579, %v2649, %v2651
    %v2661 = vsel %vm579, %v2651, %v2653
    %v2662 = vsel %vm579, %v2655, %v2657
    %v2663 = vsel %vm579, %v2657, %v2659
    %v2670 = vadd.f32 %v2620, %v2649
    %v2671 = vadd.f32 %v2621, %v2660
    %v2672 = vadd.f32 %v2622, %v2661
    %v2673 = vadd.f32 %v2623, %v2655
    %v2674 = vadd.f32 %v2624, %v2662
    %v2675 = vadd.f32 %v2625, %v2663
    %s2676 = scalar_lea.vmem %s5, 3
    %v2677 = vld [vmem:[%s2676] ss:$8 sm:$0x3]
    %v2679 = vperm.slane %v2677, 0
    %v2680 = vperm.slane %v2677, 1
    %2681 = vrot.lane.b32.xlu0 %v2679, 80
    %v2682 = vpop.permute.xlu0 %2681
    %2683 = vrot.lane.b32.xlu0 %v2680, 80
    %v2684 = vpop.permute.xlu0 %2683
    %v2685 = vsel %vm1486, %v2682, %v2684
    %v2689 = vmul.f32 %v2670, %v2682
    %v2690 = vmul.f32 %v2671, %v2685
    %v2691 = vmul.f32 %v2672, %v2684
    %v2692 = vmul.f32 %v2673, %v2682
    %v2693 = vmul.f32 %v2674, %v2685
    %v2694 = vmul.f32 %v2675, %v2684
    %s2695 = sld [smem:[#allocation7 + $0x4]]
    %v2696 = vstv %s2695
    %v2697 = vmul.f32 %v1318, %v2696
    %v2698 = vmul.f32 %v1319, %v2696
    %s2699 = sld [smem:[#allocation7 + $0x35]]
    %v2700 = vstv %s2699
    %v2701 = vmul.f32 %v1320, %v2700
    %v2702 = vmul.f32 %v1321, %v2700
    %v2703 = vadd.f32 %v2697, %v2701
    %v2704 = vadd.f32 %v2698, %v2702
    %v2705 = vmul.f32 %v2703, %v1332
    %v2706 = vmul.f32 %v2703, %v1333
    %v2707 = vmul.f32 %v2703, %v1334
    %v2708 = vmul.f32 %v2704, %v1335
    %v2709 = vmul.f32 %v2704, %v1336
    %v2710 = vmul.f32 %v2704, %v1337
    %v2711 = vadd.f32 %v2705, 0.0
    %v2712 = vadd.f32 %v2706, 0.0
    %v2713 = vadd.f32 %v2707, 0.0
    %v2714 = vadd.f32 %v2708, 0.0
    %v2715 = vadd.f32 %v2709, 0.0
    %v2716 = vadd.f32 %v2710, 0.0
    %s2717 = sld [smem:[#allocation7 + $0xb]]
    %v2718 = vstv %s2717
    %v2719 = vmul.f32 %v1318, %v2718
    %v2720 = vmul.f32 %v1319, %v2718
    %s2721 = sld [smem:[#allocation7 + $0x3c]]
    %v2722 = vstv %s2721
    %v2723 = vmul.f32 %v1320, %v2722
    %v2724 = vmul.f32 %v1321, %v2722
    %v2725 = vadd.f32 %v2719, %v2723
    %v2726 = vadd.f32 %v2720, %v2724
    %v2727 = vmul.f32 %v2725, %v1332
    %v2728 = vmul.f32 %v2725, %v1333
    %v2729 = vmul.f32 %v2725, %v1334
    %v2730 = vmul.f32 %v2726, %v1335
    %v2731 = vmul.f32 %v2726, %v1336
    %v2732 = vmul.f32 %v2726, %v1337
    %2739 = vrot.lane.b32.xlu0 %v2727, 112
    %v2740 = vpop.permute.xlu0 %2739
    %2741 = vrot.lane.b32.xlu0 %v2728, 112
    %v2742 = vpop.permute.xlu0 %2741
    %2743 = vrot.lane.b32.xlu0 %v2729, 112
    %v2744 = vpop.permute.xlu0 %2743
    %2745 = vrot.lane.b32.xlu0 %v2730, 112
    %v2746 = vpop.permute.xlu0 %2745
    %2747 = vrot.lane.b32.xlu0 %v2731, 112
    %v2748 = vpop.permute.xlu0 %2747
    %2749 = vrot.lane.b32.xlu0 %v2732, 112
    %v2750 = vpop.permute.xlu0 %2749
    %v2751 = vsel %vm1384, %v2740, %v2742
    %v2752 = vsel %vm1384, %v2742, %v2744
    %v2753 = vsel %vm1384, %v2746, %v2748
    %v2754 = vsel %vm1384, %v2748, %v2750
    %v2761 = vadd.f32 %v2711, %v2751
    %v2762 = vadd.f32 %v2712, %v2752
    %v2763 = vadd.f32 %v2713, %v2744
    %v2764 = vadd.f32 %v2714, %v2753
    %v2765 = vadd.f32 %v2715, %v2754
    %v2766 = vadd.f32 %v2716, %v2750
    %s2767 = sld [smem:[#allocation7 + $0x12]]
    %v2768 = vstv %s2767
    %v2769 = vmul.f32 %v1318, %v2768
    %v2770 = vmul.f32 %v1319, %v2768
    %s2771 = sld [smem:[#allocation7 + $0x43]]
    %v2772 = vstv %s2771
    %v2773 = vmul.f32 %v1320, %v2772
    %v2774 = vmul.f32 %v1321, %v2772
    %v2775 = vadd.f32 %v2769, %v2773
    %v2776 = vadd.f32 %v2770, %v2774
    %v2777 = vmul.f32 %v2775, %v1332
    %v2778 = vmul.f32 %v2775, %v1333
    %v2779 = vmul.f32 %v2775, %v1334
    %v2780 = vmul.f32 %v2776, %v1335
    %v2781 = vmul.f32 %v2776, %v1336
    %v2782 = vmul.f32 %v2776, %v1337
    %2789 = vrot.lane.b32.xlu0 %v2777, 96
    %v2790 = vpop.permute.xlu0 %2789
    %2791 = vrot.lane.b32.xlu0 %v2778, 96
    %v2792 = vpop.permute.xlu0 %2791
    %2793 = vrot.lane.b32.xlu0 %v2779, 96
    %v2794 = vpop.permute.xlu0 %2793
    %2795 = vrot.lane.b32.xlu0 %v2780, 96
    %v2796 = vpop.permute.xlu0 %2795
    %2797 = vrot.lane.b32.xlu0 %v2781, 96
    %v2798 = vpop.permute.xlu0 %2797
    %2799 = vrot.lane.b32.xlu0 %v2782, 96
    %v2800 = vpop.permute.xlu0 %2799
    %v2801 = vsel %vm1435, %v2790, %v2792
    %v2802 = vsel %vm1435, %v2792, %v2794
    %v2803 = vsel %vm1435, %v2796, %v2798
    %v2804 = vsel %vm1435, %v2798, %v2800
    %v2811 = vadd.f32 %v2761, %v2801
    %v2812 = vadd.f32 %v2762, %v2802
    %v2813 = vadd.f32 %v2763, %v2794
    %v2814 = vadd.f32 %v2764, %v2803
    %v2815 = vadd.f32 %v2765, %v2804
    %v2816 = vadd.f32 %v2766, %v2800
    %s2817 = sld [smem:[#allocation7 + $0x19]]
    %v2818 = vstv %s2817
    %v2819 = vmul.f32 %v1318, %v2818
    %v2820 = vmul.f32 %v1319, %v2818
    %s2821 = sld [smem:[#allocation7 + $0x4a]]
    %v2822 = vstv %s2821
    %v2823 = vmul.f32 %v1320, %v2822
    %v2824 = vmul.f32 %v1321, %v2822
    %v2825 = vadd.f32 %v2819, %v2823
    %v2826 = vadd.f32 %v2820, %v2824
    %v2827 = vmul.f32 %v2825, %v1513
    %v2828 = vmul.f32 %v2825, %v1514
    %v2829 = vmul.f32 %v2825, %v1515
    %v2830 = vmul.f32 %v2826, %v1516
    %v2831 = vmul.f32 %v2826, %v1517
    %v2832 = vmul.f32 %v2826, %v1518
    %2839 = vrot.lane.b32.xlu0 %v2827, 80
    %v2840 = vpop.permute.xlu0 %2839
    %2841 = vrot.lane.b32.xlu0 %v2828, 80
    %v2842 = vpop.permute.xlu0 %2841
    %2843 = vrot.lane.b32.xlu0 %v2829, 80
    %v2844 = vpop.permute.xlu0 %2843
    %2845 = vrot.lane.b32.xlu0 %v2830, 80
    %v2846 = vpop.permute.xlu0 %2845
    %2847 = vrot.lane.b32.xlu0 %v2831, 80
    %v2848 = vpop.permute.xlu0 %2847
    %2849 = vrot.lane.b32.xlu0 %v2832, 80
    %v2850 = vpop.permute.xlu0 %2849
    %v2851 = vsel %vm1486, %v2840, %v2842
    %v2852 = vsel %vm1486, %v2842, %v2844
    %v2853 = vsel %vm1486, %v2846, %v2848
    %v2854 = vsel %vm1486, %v2848, %v2850
    %v2861 = vadd.f32 %v2811, %v2840
    %v2862 = vadd.f32 %v2812, %v2851
    %v2863 = vadd.f32 %v2813, %v2852
    %v2864 = vadd.f32 %v2814, %v2846
    %v2865 = vadd.f32 %v2815, %v2853
    %v2866 = vadd.f32 %v2816, %v2854
    %s2867 = sld [smem:[#allocation7 + $0x20]]
    %v2868 = vstv %s2867
    %v2869 = vmul.f32 %v1318, %v2868
    %v2870 = vmul.f32 %v1319, %v2868
    %s2871 = sld [smem:[#allocation7 + $0x51]]
    %v2872 = vstv %s2871
    %v2873 = vmul.f32 %v1320, %v2872
    %v2874 = vmul.f32 %v1321, %v2872
    %v2875 = vadd.f32 %v2869, %v2873
    %v2876 = vadd.f32 %v2870, %v2874
    %v2877 = vmul.f32 %v2875, %v1513
    %v2878 = vmul.f32 %v2875, %v1514
    %v2879 = vmul.f32 %v2875, %v1515
    %v2880 = vmul.f32 %v2876, %v1516
    %v2881 = vmul.f32 %v2876, %v1517
    %v2882 = vmul.f32 %v2876, %v1518
    %2889 = vrot.lane.b32.xlu0 %v2877, 64
    %v2890 = vpop.permute.xlu0 %2889
    %2891 = vrot.lane.b32.xlu0 %v2878, 64
    %v2892 = vpop.permute.xlu0 %2891
    %2893 = vrot.lane.b32.xlu0 %v2879, 64
    %v2894 = vpop.permute.xlu0 %2893
    %2895 = vrot.lane.b32.xlu0 %v2880, 64
    %v2896 = vpop.permute.xlu0 %2895
    %2897 = vrot.lane.b32.xlu0 %v2881, 64
    %v2898 = vpop.permute.xlu0 %2897
    %2899 = vrot.lane.b32.xlu0 %v2882, 64
    %v2900 = vpop.permute.xlu0 %2899
    %v2901 = vsel %vm1543, %v2890, %v2892
    %v2902 = vsel %vm1543, %v2892, %v2894
    %v2903 = vsel %vm1543, %v2896, %v2898
    %v2904 = vsel %vm1543, %v2898, %v2900
    %v2911 = vadd.f32 %v2861, %v2890
    %v2912 = vadd.f32 %v2862, %v2901
    %v2913 = vadd.f32 %v2863, %v2902
    %v2914 = vadd.f32 %v2864, %v2896
    %v2915 = vadd.f32 %v2865, %v2903
    %v2916 = vadd.f32 %v2866, %v2904
    %s2917 = sld [smem:[#allocation7 + $0x27]]
    %v2918 = vstv %s2917
    %v2919 = vmul.f32 %v1318, %v2918
    %v2920 = vmul.f32 %v1319, %v2918
    %s2921 = sld [smem:[#allocation7 + $0x58]]
    %v2922 = vstv %s2921
    %v2923 = vmul.f32 %v1320, %v2922
    %v2924 = vmul.f32 %v1321, %v2922
    %v2925 = vadd.f32 %v2919, %v2923
    %v2926 = vadd.f32 %v2920, %v2924
    %v2927 = vmul.f32 %v2925, %v1513
    %v2928 = vmul.f32 %v2925, %v1514
    %v2929 = vmul.f32 %v2925, %v1515
    %v2930 = vmul.f32 %v2926, %v1516
    %v2931 = vmul.f32 %v2926, %v1517
    %v2932 = vmul.f32 %v2926, %v1518
    %2939 = vrot.lane.b32.xlu0 %v2927, 48
    %v2940 = vpop.permute.xlu0 %2939
    %2941 = vrot.lane.b32.xlu0 %v2928, 48
    %v2942 = vpop.permute.xlu0 %2941
    %2943 = vrot.lane.b32.xlu0 %v2929, 48
    %v2944 = vpop.permute.xlu0 %2943
    %2945 = vrot.lane.b32.xlu0 %v2930, 48
    %v2946 = vpop.permute.xlu0 %2945
    %2947 = vrot.lane.b32.xlu0 %v2931, 48
    %v2948 = vpop.permute.xlu0 %2947
    %2949 = vrot.lane.b32.xlu0 %v2932, 48
    %v2950 = vpop.permute.xlu0 %2949
    %v2951 = vsel %vm1594, %v2940, %v2942
    %v2952 = vsel %vm1594, %v2942, %v2944
    %v2953 = vsel %vm1594, %v2946, %v2948
    %v2954 = vsel %vm1594, %v2948, %v2950
    %v2961 = vadd.f32 %v2911, %v2940
    %v2962 = vadd.f32 %v2912, %v2951
    %v2963 = vadd.f32 %v2913, %v2952
    %v2964 = vadd.f32 %v2914, %v2946
    %v2965 = vadd.f32 %v2915, %v2953
    %v2966 = vadd.f32 %v2916, %v2954
    %s2967 = sld [smem:[#allocation7 + $0x2e]]
    %v2968 = vstv %s2967
    %v2969 = vmul.f32 %v1318, %v2968
    %v2970 = vmul.f32 %v1319, %v2968
    %s2971 = sld [smem:[#allocation7 + $0x5f]]
    %v2972 = vstv %s2971
    %v2973 = vmul.f32 %v1320, %v2972
    %v2974 = vmul.f32 %v1321, %v2972
    %v2975 = vadd.f32 %v2969, %v2973
    %v2976 = vadd.f32 %v2970, %v2974
    %v2977 = vmul.f32 %v2975, %v1513
    %v2978 = vmul.f32 %v2975, %v1514
    %v2979 = vmul.f32 %v2975, %v1515
    %v2980 = vmul.f32 %v2976, %v1516
    %v2981 = vmul.f32 %v2976, %v1517
    %v2982 = vmul.f32 %v2976, %v1518
    %2989 = vrot.lane.b32.xlu0 %v2977, 32
    %v2990 = vpop.permute.xlu0 %2989
    %2991 = vrot.lane.b32.xlu0 %v2978, 32
    %v2992 = vpop.permute.xlu0 %2991
    %2993 = vrot.lane.b32.xlu0 %v2979, 32
    %v2994 = vpop.permute.xlu0 %2993
    %2995 = vrot.lane.b32.xlu0 %v2980, 32
    %v2996 = vpop.permute.xlu0 %2995
    %2997 = vrot.lane.b32.xlu0 %v2981, 32
    %v2998 = vpop.permute.xlu0 %2997
    %2999 = vrot.lane.b32.xlu0 %v2982, 32
    %v3000 = vpop.permute.xlu0 %2999
    %v3001 = vsel %vm579, %v2990, %v2992
    %v3002 = vsel %vm579, %v2992, %v2994
    %v3003 = vsel %vm579, %v2996, %v2998
    %v3004 = vsel %vm579, %v2998, %v3000
    %v3011 = vadd.f32 %v2961, %v2990
    %v3012 = vadd.f32 %v2962, %v3001
    %v3013 = vadd.f32 %v2963, %v3002
    %v3014 = vadd.f32 %v2964, %v2996
    %v3015 = vadd.f32 %v2965, %v3003
    %v3016 = vadd.f32 %v2966, %v3004
    %s3017 = scalar_lea.vmem %s5, 4
    %v3018 = vld [vmem:[%s3017] ss:$8 sm:$0x3]
    %v3020 = vperm.slane %v3018, 0
    %v3021 = vperm.slane %v3018, 1
    %3022 = vrot.lane.b32.xlu0 %v3020, 81
    %v3023 = vpop.permute.xlu0 %3022
    %3024 = vrot.lane.b32.xlu0 %v3021, 81
    %v3025 = vpop.permute.xlu0 %3024
    %vm3026 = vcmask 662528
    %v3027 = vsel %vm3026, %v3023, %v3025
    %v3031 = vmul.f32 %v3011, %v3023
    %v3032 = vmul.f32 %v3012, %v3027
    %v3033 = vmul.f32 %v3013, %v3025
    %v3034 = vmul.f32 %v3014, %v3023
    %v3035 = vmul.f32 %v3015, %v3027
    %v3036 = vmul.f32 %v3016, %v3025
    %s3037 = sld [smem:[#allocation7 + $0x5]]
    %v3038 = vstv %s3037
    %v3039 = vmul.f32 %v1318, %v3038
    %v3040 = vmul.f32 %v1319, %v3038
    %s3041 = sld [smem:[#allocation7 + $0x36]]
    %v3042 = vstv %s3041
    %v3043 = vmul.f32 %v1320, %v3042
    %v3044 = vmul.f32 %v1321, %v3042
    %v3045 = vadd.f32 %v3039, %v3043
    %v3046 = vadd.f32 %v3040, %v3044
    %v3047 = vmul.f32 %v3045, %v1332
    %v3048 = vmul.f32 %v3045, %v1333
    %v3049 = vmul.f32 %v3045, %v1334
    %v3050 = vmul.f32 %v3046, %v1335
    %v3051 = vmul.f32 %v3046, %v1336
    %v3052 = vmul.f32 %v3046, %v1337
    %v3053 = vadd.f32 %v3047, 0.0
    %v3054 = vadd.f32 %v3048, 0.0
    %v3055 = vadd.f32 %v3049, 0.0
    %v3056 = vadd.f32 %v3050, 0.0
    %v3057 = vadd.f32 %v3051, 0.0
    %v3058 = vadd.f32 %v3052, 0.0
    %s3059 = sld [smem:[#allocation7 + $0xc]]
    %v3060 = vstv %s3059
    %v3061 = vmul.f32 %v1318, %v3060
    %v3062 = vmul.f32 %v1319, %v3060
    %s3063 = sld [smem:[#allocation7 + $0x3d]]
    %v3064 = vstv %s3063
    %v3065 = vmul.f32 %v1320, %v3064
    %v3066 = vmul.f32 %v1321, %v3064
    %v3067 = vadd.f32 %v3061, %v3065
    %v3068 = vadd.f32 %v3062, %v3066
    %v3069 = vmul.f32 %v3067, %v1332
    %v3070 = vmul.f32 %v3067, %v1333
    %v3071 = vmul.f32 %v3067, %v1334
    %v3072 = vmul.f32 %v3068, %v1335
    %v3073 = vmul.f32 %v3068, %v1336
    %v3074 = vmul.f32 %v3068, %v1337
    %3081 = vrot.lane.b32.xlu0 %v3069, 112
    %v3082 = vpop.permute.xlu0 %3081
    %3083 = vrot.lane.b32.xlu0 %v3070, 112
    %v3084 = vpop.permute.xlu0 %3083
    %3085 = vrot.lane.b32.xlu0 %v3071, 112
    %v3086 = vpop.permute.xlu0 %3085
    %3087 = vrot.lane.b32.xlu0 %v3072, 112
    %v3088 = vpop.permute.xlu0 %3087
    %3089 = vrot.lane.b32.xlu0 %v3073, 112
    %v3090 = vpop.permute.xlu0 %3089
    %3091 = vrot.lane.b32.xlu0 %v3074, 112
    %v3092 = vpop.permute.xlu0 %3091
    %v3093 = vsel %vm1384, %v3082, %v3084
    %v3094 = vsel %vm1384, %v3084, %v3086
    %v3095 = vsel %vm1384, %v3088, %v3090
    %v3096 = vsel %vm1384, %v3090, %v3092
    %v3103 = vadd.f32 %v3053, %v3093
    %v3104 = vadd.f32 %v3054, %v3094
    %v3105 = vadd.f32 %v3055, %v3086
    %v3106 = vadd.f32 %v3056, %v3095
    %v3107 = vadd.f32 %v3057, %v3096
    %v3108 = vadd.f32 %v3058, %v3092
    %s3109 = sld [smem:[#allocation7 + $0x13]]
    %v3110 = vstv %s3109
    %v3111 = vmul.f32 %v1318, %v3110
    %v3112 = vmul.f32 %v1319, %v3110
    %s3113 = sld [smem:[#allocation7 + $0x44]]
    %v3114 = vstv %s3113
    %v3115 = vmul.f32 %v1320, %v3114
    %v3116 = vmul.f32 %v1321, %v3114
    %v3117 = vadd.f32 %v3111, %v3115
    %v3118 = vadd.f32 %v3112, %v3116
    %v3119 = vmul.f32 %v3117, %v1332
    %v3120 = vmul.f32 %v3117, %v1333
    %v3121 = vmul.f32 %v3117, %v1334
    %v3122 = vmul.f32 %v3118, %v1335
    %v3123 = vmul.f32 %v3118, %v1336
    %v3124 = vmul.f32 %v3118, %v1337
    %3131 = vrot.lane.b32.xlu0 %v3119, 96
    %v3132 = vpop.permute.xlu0 %3131
    %3133 = vrot.lane.b32.xlu0 %v3120, 96
    %v3134 = vpop.permute.xlu0 %3133
    %3135 = vrot.lane.b32.xlu0 %v3121, 96
    %v3136 = vpop.permute.xlu0 %3135
    %3137 = vrot.lane.b32.xlu0 %v3122, 96
    %v3138 = vpop.permute.xlu0 %3137
    %3139 = vrot.lane.b32.xlu0 %v3123, 96
    %v3140 = vpop.permute.xlu0 %3139
    %3141 = vrot.lane.b32.xlu0 %v3124, 96
    %v3142 = vpop.permute.xlu0 %3141
    %v3143 = vsel %vm1435, %v3132, %v3134
    %v3144 = vsel %vm1435, %v3134, %v3136
    %v3145 = vsel %vm1435, %v3138, %v3140
    %v3146 = vsel %vm1435, %v3140, %v3142
    %v3153 = vadd.f32 %v3103, %v3143
    %v3154 = vadd.f32 %v3104, %v3144
    %v3155 = vadd.f32 %v3105, %v3136
    %v3156 = vadd.f32 %v3106, %v3145
    %v3157 = vadd.f32 %v3107, %v3146
    %v3158 = vadd.f32 %v3108, %v3142
    %s3159 = sld [smem:[#allocation7 + $0x1a]]
    %v3160 = vstv %s3159
    %v3161 = vmul.f32 %v1318, %v3160
    %v3162 = vmul.f32 %v1319, %v3160
    %s3163 = sld [smem:[#allocation7 + $0x4b]]
    %v3164 = vstv %s3163
    %v3165 = vmul.f32 %v1320, %v3164
    %v3166 = vmul.f32 %v1321, %v3164
    %v3167 = vadd.f32 %v3161, %v3165
    %v3168 = vadd.f32 %v3162, %v3166
    %v3169 = vmul.f32 %v3167, %v1513
    %v3170 = vmul.f32 %v3167, %v1514
    %v3171 = vmul.f32 %v3167, %v1515
    %v3172 = vmul.f32 %v3168, %v1516
    %v3173 = vmul.f32 %v3168, %v1517
    %v3174 = vmul.f32 %v3168, %v1518
    %3181 = vrot.lane.b32.xlu0 %v3169, 80
    %v3182 = vpop.permute.xlu0 %3181
    %3183 = vrot.lane.b32.xlu0 %v3170, 80
    %v3184 = vpop.permute.xlu0 %3183
    %3185 = vrot.lane.b32.xlu0 %v3171, 80
    %v3186 = vpop.permute.xlu0 %3185
    %3187 = vrot.lane.b32.xlu0 %v3172, 80
    %v3188 = vpop.permute.xlu0 %3187
    %3189 = vrot.lane.b32.xlu0 %v3173, 80
    %v3190 = vpop.permute.xlu0 %3189
    %3191 = vrot.lane.b32.xlu0 %v3174, 80
    %v3192 = vpop.permute.xlu0 %3191
    %v3193 = vsel %vm1486, %v3182, %v3184
    %v3194 = vsel %vm1486, %v3184, %v3186
    %v3195 = vsel %vm1486, %v3188, %v3190
    %v3196 = vsel %vm1486, %v3190, %v3192
    %v3203 = vadd.f32 %v3153, %v3182
    %v3204 = vadd.f32 %v3154, %v3193
    %v3205 = vadd.f32 %v3155, %v3194
    %v3206 = vadd.f32 %v3156, %v3188
    %v3207 = vadd.f32 %v3157, %v3195
    %v3208 = vadd.f32 %v3158, %v3196
    %s3209 = sld [smem:[#allocation7 + $0x21]]
    %v3210 = vstv %s3209
    %v3211 = vmul.f32 %v1318, %v3210
    %v3212 = vmul.f32 %v1319, %v3210
    %s3213 = sld [smem:[#allocation7 + $0x52]]
    %v3214 = vstv %s3213
    %v3215 = vmul.f32 %v1320, %v3214
    %v3216 = vmul.f32 %v1321, %v3214
    %v3217 = vadd.f32 %v3211, %v3215
    %v3218 = vadd.f32 %v3212, %v3216
    %v3219 = vmul.f32 %v3217, %v1513
    %v3220 = vmul.f32 %v3217, %v1514
    %v3221 = vmul.f32 %v3217, %v1515
    %v3222 = vmul.f32 %v3218, %v1516
    %v3223 = vmul.f32 %v3218, %v1517
    %v3224 = vmul.f32 %v3218, %v1518
    %3231 = vrot.lane.b32.xlu0 %v3219, 64
    %v3232 = vpop.permute.xlu0 %3231
    %3233 = vrot.lane.b32.xlu0 %v3220, 64
    %v3234 = vpop.permute.xlu0 %3233
    %3235 = vrot.lane.b32.xlu0 %v3221, 64
    %v3236 = vpop.permute.xlu0 %3235
    %3237 = vrot.lane.b32.xlu0 %v3222, 64
    %v3238 = vpop.permute.xlu0 %3237
    %3239 = vrot.lane.b32.xlu0 %v3223, 64
    %v3240 = vpop.permute.xlu0 %3239
    %3241 = vrot.lane.b32.xlu0 %v3224, 64
    %v3242 = vpop.permute.xlu0 %3241
    %v3243 = vsel %vm1543, %v3232, %v3234
    %v3244 = vsel %vm1543, %v3234, %v3236
    %v3245 = vsel %vm1543, %v3238, %v3240
    %v3246 = vsel %vm1543, %v3240, %v3242
    %v3253 = vadd.f32 %v3203, %v3232
    %v3254 = vadd.f32 %v3204, %v3243
    %v3255 = vadd.f32 %v3205, %v3244
    %v3256 = vadd.f32 %v3206, %v3238
    %v3257 = vadd.f32 %v3207, %v3245
    %v3258 = vadd.f32 %v3208, %v3246
    %s3259 = sld [smem:[#allocation7 + $0x28]]
    %v3260 = vstv %s3259
    %v3261 = vmul.f32 %v1318, %v3260
    %v3262 = vmul.f32 %v1319, %v3260
    %s3263 = sld [smem:[#allocation7 + $0x59]]
    %v3264 = vstv %s3263
    %v3265 = vmul.f32 %v1320, %v3264
    %v3266 = vmul.f32 %v1321, %v3264
    %v3267 = vadd.f32 %v3261, %v3265
    %v3268 = vadd.f32 %v3262, %v3266
    %v3269 = vmul.f32 %v3267, %v1513
    %v3270 = vmul.f32 %v3267, %v1514
    %v3271 = vmul.f32 %v3267, %v1515
    %v3272 = vmul.f32 %v3268, %v1516
    %v3273 = vmul.f32 %v3268, %v1517
    %v3274 = vmul.f32 %v3268, %v1518
    %3281 = vrot.lane.b32.xlu0 %v3269, 48
    %v3282 = vpop.permute.xlu0 %3281
    %3283 = vrot.lane.b32.xlu0 %v3270, 48
    %v3284 = vpop.permute.xlu0 %3283
    %3285 = vrot.lane.b32.xlu0 %v3271, 48
    %v3286 = vpop.permute.xlu0 %3285
    %3287 = vrot.lane.b32.xlu0 %v3272, 48
    %v3288 = vpop.permute.xlu0 %3287
    %3289 = vrot.lane.b32.xlu0 %v3273, 48
    %v3290 = vpop.permute.xlu0 %3289
    %3291 = vrot.lane.b32.xlu0 %v3274, 48
    %v3292 = vpop.permute.xlu0 %3291
    %v3293 = vsel %vm1594, %v3282, %v3284
    %v3294 = vsel %vm1594, %v3284, %v3286
    %v3295 = vsel %vm1594, %v3288, %v3290
    %v3296 = vsel %vm1594, %v3290, %v3292
    %v3303 = vadd.f32 %v3253, %v3282
    %v3304 = vadd.f32 %v3254, %v3293
    %v3305 = vadd.f32 %v3255, %v3294
    %v3306 = vadd.f32 %v3256, %v3288
    %v3307 = vadd.f32 %v3257, %v3295
    %v3308 = vadd.f32 %v3258, %v3296
    %s3309 = sld [smem:[#allocation7 + $0x2f]]
    %v3310 = vstv %s3309
    %v3311 = vmul.f32 %v1318, %v3310
    %v3312 = vmul.f32 %v1319, %v3310
    %s3313 = sld [smem:[#allocation7 + $0x60]]
    %v3314 = vstv %s3313
    %v3315 = vmul.f32 %v1320, %v3314
    %v3316 = vmul.f32 %v1321, %v3314
    %v3317 = vadd.f32 %v3311, %v3315
    %v3318 = vadd.f32 %v3312, %v3316
    %v3319 = vmul.f32 %v3317, %v1513
    %v3320 = vmul.f32 %v3317, %v1514
    %v3321 = vmul.f32 %v3317, %v1515
    %v3322 = vmul.f32 %v3318, %v1516
    %v3323 = vmul.f32 %v3318, %v1517
    %v3324 = vmul.f32 %v3318, %v1518
    %3331 = vrot.lane.b32.xlu0 %v3319, 32
    %v3332 = vpop.permute.xlu0 %3331
    %3333 = vrot.lane.b32.xlu0 %v3320, 32
    %v3334 = vpop.permute.xlu0 %3333
    %3335 = vrot.lane.b32.xlu0 %v3321, 32
    %v3336 = vpop.permute.xlu0 %3335
    %3337 = vrot.lane.b32.xlu0 %v3322, 32
    %v3338 = vpop.permute.xlu0 %3337
    %3339 = vrot.lane.b32.xlu0 %v3323, 32
    %v3340 = vpop.permute.xlu0 %3339
    %3341 = vrot.lane.b32.xlu0 %v3324, 32
    %v3342 = vpop.permute.xlu0 %3341
    %v3343 = vsel %vm579, %v3332, %v3334
    %v3344 = vsel %vm579, %v3334, %v3336
    %v3345 = vsel %vm579, %v3338, %v3340
    %v3346 = vsel %vm579, %v3340, %v3342
    %v3353 = vadd.f32 %v3303, %v3332
    %v3354 = vadd.f32 %v3304, %v3343
    %v3355 = vadd.f32 %v3305, %v3344
    %v3356 = vadd.f32 %v3306, %v3338
    %v3357 = vadd.f32 %v3307, %v3345
    %v3358 = vadd.f32 %v3308, %v3346
    %s3359 = scalar_lea.vmem %s5, 5
    %v3360 = vld [vmem:[%s3359] ss:$8 sm:$0x3]
    %v3362 = vperm.slane %v3360, 0
    %v3363 = vperm.slane %v3360, 1
    %3364 = vrot.lane.b32.xlu0 %v3362, 82
    %v3365 = vpop.permute.xlu0 %3364
    %3366 = vrot.lane.b32.xlu0 %v3363, 82
    %v3367 = vpop.permute.xlu0 %3366
    %vm3368 = vcmask 670720
    %v3369 = vsel %vm3368, %v3365, %v3367
    %v3373 = vmul.f32 %v3353, %v3365
    %v3374 = vmul.f32 %v3354, %v3369
    %v3375 = vmul.f32 %v3355, %v3367
    %v3376 = vmul.f32 %v3356, %v3365
    %v3377 = vmul.f32 %v3357, %v3369
    %v3378 = vmul.f32 %v3358, %v3367
    %s3379 = sld [smem:[#allocation7 + $0x6]]
    %v3380 = vstv %s3379
    %v3381 = vmul.f32 %v1318, %v3380
    %v3382 = vmul.f32 %v1319, %v3380
    %s3383 = sld [smem:[#allocation7 + $0x37]]
    %v3384 = vstv %s3383
    %v3385 = vmul.f32 %v1320, %v3384
    %v3386 = vmul.f32 %v1321, %v3384
    %v3387 = vadd.f32 %v3381, %v3385
    %v3388 = vadd.f32 %v3382, %v3386
    %v3389 = vmul.f32 %v3387, %v1332
    %v3390 = vmul.f32 %v3387, %v1333
    %v3391 = vmul.f32 %v3387, %v1334
    %v3392 = vmul.f32 %v3388, %v1335
    %v3393 = vmul.f32 %v3388, %v1336
    %v3394 = vmul.f32 %v3388, %v1337
    %v3395 = vadd.f32 %v3389, 0.0
    %v3396 = vadd.f32 %v3390, 0.0
    %v3397 = vadd.f32 %v3391, 0.0
    %v3398 = vadd.f32 %v3392, 0.0
    %v3399 = vadd.f32 %v3393, 0.0
    %v3400 = vadd.f32 %v3394, 0.0
    %s3401 = sld [smem:[#allocation7 + $0xd]]
    %v3402 = vstv %s3401
    %v3403 = vmul.f32 %v1318, %v3402
    %v3404 = vmul.f32 %v1319, %v3402
    %s3405 = sld [smem:[#allocation7 + $0x3e]]
    %v3406 = vstv %s3405
    %v3407 = vmul.f32 %v1320, %v3406
    %v3408 = vmul.f32 %v1321, %v3406
    %v3409 = vadd.f32 %v3403, %v3407
    %v3410 = vadd.f32 %v3404, %v3408
    %v3411 = vmul.f32 %v3409, %v1332
    %v3412 = vmul.f32 %v3409, %v1333
    %v3413 = vmul.f32 %v3409, %v1334
    %v3414 = vmul.f32 %v3410, %v1335
    %v3415 = vmul.f32 %v3410, %v1336
    %v3416 = vmul.f32 %v3410, %v1337
    %3423 = vrot.lane.b32.xlu0 %v3411, 112
    %v3424 = vpop.permute.xlu0 %3423
    %3425 = vrot.lane.b32.xlu0 %v3412, 112
    %v3426 = vpop.permute.xlu0 %3425
    %3427 = vrot.lane.b32.xlu0 %v3413, 112
    %v3428 = vpop.permute.xlu0 %3427
    %3429 = vrot.lane.b32.xlu0 %v3414, 112
    %v3430 = vpop.permute.xlu0 %3429
    %3431 = vrot.lane.b32.xlu0 %v3415, 112
    %v3432 = vpop.permute.xlu0 %3431
    %3433 = vrot.lane.b32.xlu0 %v3416, 112
    %v3434 = vpop.permute.xlu0 %3433
    %v3435 = vsel %vm1384, %v3424, %v3426
    %v3436 = vsel %vm1384, %v3426, %v3428
    %v3437 = vsel %vm1384, %v3430, %v3432
    %v3438 = vsel %vm1384, %v3432, %v3434
    %v3445 = vadd.f32 %v3395, %v3435
    %v3446 = vadd.f32 %v3396, %v3436
    %v3447 = vadd.f32 %v3397, %v3428
    %v3448 = vadd.f32 %v3398, %v3437
    %v3449 = vadd.f32 %v3399, %v3438
    %v3450 = vadd.f32 %v3400, %v3434
    %s3451 = sld [smem:[#allocation7 + $0x14]]
    %v3452 = vstv %s3451
    %v3453 = vmul.f32 %v1318, %v3452
    %v3454 = vmul.f32 %v1319, %v3452
    %s3455 = sld [smem:[#allocation7 + $0x45]]
    %v3456 = vstv %s3455
    %v3457 = vmul.f32 %v1320, %v3456
    %v3458 = vmul.f32 %v1321, %v3456
    %v3459 = vadd.f32 %v3453, %v3457
    %v3460 = vadd.f32 %v3454, %v3458
    %v3461 = vmul.f32 %v3459, %v1332
    %v3462 = vmul.f32 %v3459, %v1333
    %v3463 = vmul.f32 %v3459, %v1334
    %v3464 = vmul.f32 %v3460, %v1335
    %v3465 = vmul.f32 %v3460, %v1336
    %v3466 = vmul.f32 %v3460, %v1337
    %3473 = vrot.lane.b32.xlu0 %v3461, 96
    %v3474 = vpop.permute.xlu0 %3473
    %3475 = vrot.lane.b32.xlu0 %v3462, 96
    %v3476 = vpop.permute.xlu0 %3475
    %3477 = vrot.lane.b32.xlu0 %v3463, 96
    %v3478 = vpop.permute.xlu0 %3477
    %3479 = vrot.lane.b32.xlu0 %v3464, 96
    %v3480 = vpop.permute.xlu0 %3479
    %3481 = vrot.lane.b32.xlu0 %v3465, 96
    %v3482 = vpop.permute.xlu0 %3481
    %3483 = vrot.lane.b32.xlu0 %v3466, 96
    %v3484 = vpop.permute.xlu0 %3483
    %v3485 = vsel %vm1435, %v3474, %v3476
    %v3486 = vsel %vm1435, %v3476, %v3478
    %v3487 = vsel %vm1435, %v3480, %v3482
    %v3488 = vsel %vm1435, %v3482, %v3484
    %v3495 = vadd.f32 %v3445, %v3485
    %v3496 = vadd.f32 %v3446, %v3486
    %v3497 = vadd.f32 %v3447, %v3478
    %v3498 = vadd.f32 %v3448, %v3487
    %v3499 = vadd.f32 %v3449, %v3488
    %v3500 = vadd.f32 %v3450, %v3484
    %s3501 = sld [smem:[#allocation7 + $0x1b]]
    %v3502 = vstv %s3501
    %v3503 = vmul.f32 %v1318, %v3502
    %v3504 = vmul.f32 %v1319, %v3502
    %s3505 = sld [smem:[#allocation7 + $0x4c]]
    %v3506 = vstv %s3505
    %v3507 = vmul.f32 %v1320, %v3506
    %v3508 = vmul.f32 %v1321, %v3506
    %v3509 = vadd.f32 %v3503, %v3507
    %v3510 = vadd.f32 %v3504, %v3508
    %v3511 = vmul.f32 %v3509, %v1513
    %v3512 = vmul.f32 %v3509, %v1514
    %v3513 = vmul.f32 %v3509, %v1515
    %v3514 = vmul.f32 %v3510, %v1516
    %v3515 = vmul.f32 %v3510, %v1517
    %v3516 = vmul.f32 %v3510, %v1518
    %3523 = vrot.lane.b32.xlu0 %v3511, 80
    %v3524 = vpop.permute.xlu0 %3523
    %3525 = vrot.lane.b32.xlu0 %v3512, 80
    %v3526 = vpop.permute.xlu0 %3525
    %3527 = vrot.lane.b32.xlu0 %v3513, 80
    %v3528 = vpop.permute.xlu0 %3527
    %3529 = vrot.lane.b32.xlu0 %v3514, 80
    %v3530 = vpop.permute.xlu0 %3529
    %3531 = vrot.lane.b32.xlu0 %v3515, 80
    %v3532 = vpop.permute.xlu0 %3531
    %3533 = vrot.lane.b32.xlu0 %v3516, 80
    %v3534 = vpop.permute.xlu0 %3533
    %v3535 = vsel %vm1486, %v3524, %v3526
    %v3536 = vsel %vm1486, %v3526, %v3528
    %v3537 = vsel %vm1486, %v3530, %v3532
    %v3538 = vsel %vm1486, %v3532, %v3534
    %v3545 = vadd.f32 %v3495, %v3524
    %v3546 = vadd.f32 %v3496, %v3535
    %v3547 = vadd.f32 %v3497, %v3536
    %v3548 = vadd.f32 %v3498, %v3530
    %v3549 = vadd.f32 %v3499, %v3537
    %v3550 = vadd.f32 %v3500, %v3538
    %s3551 = sld [smem:[#allocation7 + $0x22]]
    %v3552 = vstv %s3551
    %v3553 = vmul.f32 %v1318, %v3552
    %v3554 = vmul.f32 %v1319, %v3552
    %s3555 = sld [smem:[#allocation7 + $0x53]]
    %v3556 = vstv %s3555
    %v3557 = vmul.f32 %v1320, %v3556
    %v3558 = vmul.f32 %v1321, %v3556
    %v3559 = vadd.f32 %v3553, %v3557
    %v3560 = vadd.f32 %v3554, %v3558
    %v3561 = vmul.f32 %v3559, %v1513
    %v3562 = vmul.f32 %v3559, %v1514
    %v3563 = vmul.f32 %v3559, %v1515
    %v3564 = vmul.f32 %v3560, %v1516
    %v3565 = vmul.f32 %v3560, %v1517
    %v3566 = vmul.f32 %v3560, %v1518
    %3573 = vrot.lane.b32.xlu0 %v3561, 64
    %v3574 = vpop.permute.xlu0 %3573
    %3575 = vrot.lane.b32.xlu0 %v3562, 64
    %v3576 = vpop.permute.xlu0 %3575
    %3577 = vrot.lane.b32.xlu0 %v3563, 64
    %v3578 = vpop.permute.xlu0 %3577
    %3579 = vrot.lane.b32.xlu0 %v3564, 64
    %v3580 = vpop.permute.xlu0 %3579
    %3581 = vrot.lane.b32.xlu0 %v3565, 64
    %v3582 = vpop.permute.xlu0 %3581
    %3583 = vrot.lane.b32.xlu0 %v3566, 64
    %v3584 = vpop.permute.xlu0 %3583
    %v3585 = vsel %vm1543, %v3574, %v3576
    %v3586 = vsel %vm1543, %v3576, %v3578
    %v3587 = vsel %vm1543, %v3580, %v3582
    %v3588 = vsel %vm1543, %v3582, %v3584
    %v3595 = vadd.f32 %v3545, %v3574
    %v3596 = vadd.f32 %v3546, %v3585
    %v3597 = vadd.f32 %v3547, %v3586
    %v3598 = vadd.f32 %v3548, %v3580
    %v3599 = vadd.f32 %v3549, %v3587
    %v3600 = vadd.f32 %v3550, %v3588
    %s3601 = sld [smem:[#allocation7 + $0x29]]
    %v3602 = vstv %s3601
    %v3603 = vmul.f32 %v1318, %v3602
    %v3604 = vmul.f32 %v1319, %v3602
    %s3605 = sld [smem:[#allocation7 + $0x5a]]
    %v3606 = vstv %s3605
    %v3607 = vmul.f32 %v1320, %v3606
    %v3608 = vmul.f32 %v1321, %v3606
    %v3609 = vadd.f32 %v3603, %v3607
    %v3610 = vadd.f32 %v3604, %v3608
    %v3611 = vmul.f32 %v3609, %v1513
    %v3612 = vmul.f32 %v3609, %v1514
    %v3613 = vmul.f32 %v3609, %v1515
    %v3614 = vmul.f32 %v3610, %v1516
    %v3615 = vmul.f32 %v3610, %v1517
    %v3616 = vmul.f32 %v3610, %v1518
    %3623 = vrot.lane.b32.xlu0 %v3611, 48
    %v3624 = vpop.permute.xlu0 %3623
    %3625 = vrot.lane.b32.xlu0 %v3612, 48
    %v3626 = vpop.permute.xlu0 %3625
    %3627 = vrot.lane.b32.xlu0 %v3613, 48
    %v3628 = vpop.permute.xlu0 %3627
    %3629 = vrot.lane.b32.xlu0 %v3614, 48
    %v3630 = vpop.permute.xlu0 %3629
    %3631 = vrot.lane.b32.xlu0 %v3615, 48
    %v3632 = vpop.permute.xlu0 %3631
    %3633 = vrot.lane.b32.xlu0 %v3616, 48
    %v3634 = vpop.permute.xlu0 %3633
    %v3635 = vsel %vm1594, %v3624, %v3626
    %v3636 = vsel %vm1594, %v3626, %v3628
    %v3637 = vsel %vm1594, %v3630, %v3632
    %v3638 = vsel %vm1594, %v3632, %v3634
    %v3645 = vadd.f32 %v3595, %v3624
    %v3646 = vadd.f32 %v3596, %v3635
    %v3647 = vadd.f32 %v3597, %v3636
    %v3648 = vadd.f32 %v3598, %v3630
    %v3649 = vadd.f32 %v3599, %v3637
    %v3650 = vadd.f32 %v3600, %v3638
    %s3651 = sld [smem:[#allocation7 + $0x30]]
    %v3652 = vstv %s3651
    %v3653 = vmul.f32 %v1318, %v3652
    %v3654 = vmul.f32 %v1319, %v3652
    %s3655 = sld [smem:[#allocation7 + $0x61]]
    %v3656 = vstv %s3655
    %v3657 = vmul.f32 %v1320, %v3656
    %v3658 = vmul.f32 %v1321, %v3656
    %v3659 = vadd.f32 %v3653, %v3657
    %v3660 = vadd.f32 %v3654, %v3658
    %v3661 = vmul.f32 %v3659, %v1513
    %v3662 = vmul.f32 %v3659, %v1514
    %v3663 = vmul.f32 %v3659, %v1515
    %v3664 = vmul.f32 %v3660, %v1516
    %v3665 = vmul.f32 %v3660, %v1517
    %v3666 = vmul.f32 %v3660, %v1518
    %3673 = vrot.lane.b32.xlu0 %v3661, 32
    %v3674 = vpop.permute.xlu0 %3673
    %3675 = vrot.lane.b32.xlu0 %v3662, 32
    %v3676 = vpop.permute.xlu0 %3675
    %3677 = vrot.lane.b32.xlu0 %v3663, 32
    %v3678 = vpop.permute.xlu0 %3677
    %3679 = vrot.lane.b32.xlu0 %v3664, 32
    %v3680 = vpop.permute.xlu0 %3679
    %3681 = vrot.lane.b32.xlu0 %v3665, 32
    %v3682 = vpop.permute.xlu0 %3681
    %3683 = vrot.lane.b32.xlu0 %v3666, 32
    %v3684 = vpop.permute.xlu0 %3683
    %v3685 = vsel %vm579, %v3674, %v3676
    %v3686 = vsel %vm579, %v3676, %v3678
    %v3687 = vsel %vm579, %v3680, %v3682
    %v3688 = vsel %vm579, %v3682, %v3684
    %v3695 = vadd.f32 %v3645, %v3674
    %v3696 = vadd.f32 %v3646, %v3685
    %v3697 = vadd.f32 %v3647, %v3686
    %v3698 = vadd.f32 %v3648, %v3680
    %v3699 = vadd.f32 %v3649, %v3687
    %v3700 = vadd.f32 %v3650, %v3688
    %s3701 = scalar_lea.vmem %s5, 6
    %v3702 = vld [vmem:[%s3701] ss:$8 sm:$0x3]
    %v3704 = vperm.slane %v3702, 0
    %v3705 = vperm.slane %v3702, 1
    %3706 = vrot.lane.b32.xlu0 %v3704, 83
    %v3707 = vpop.permute.xlu0 %3706
    %3708 = vrot.lane.b32.xlu0 %v3705, 83
    %v3709 = vpop.permute.xlu0 %3708
    %vm3710 = vcmask 678912
    %v3711 = vsel %vm3710, %v3707, %v3709
    %v3715 = vmul.f32 %v3695, %v3707
    %v3716 = vmul.f32 %v3696, %v3711
    %v3717 = vmul.f32 %v3697, %v3709
    %v3718 = vmul.f32 %v3698, %v3707
    %v3719 = vmul.f32 %v3699, %v3711
    %v3720 = vmul.f32 %v3700, %v3709
    %3727 = vrot.lane.b32.xlu0 %v2016, 127
    %v3728 = vpop.permute.xlu0 %3727
    %3729 = vrot.lane.b32.xlu0 %v2017, 127
    %v3730 = vpop.permute.xlu0 %3729
    %3731 = vrot.lane.b32.xlu0 %v2018, 127
    %v3732 = vpop.permute.xlu0 %3731
    %3733 = vrot.lane.b32.xlu0 %v2019, 127
    %v3734 = vpop.permute.xlu0 %3733
    %3735 = vrot.lane.b32.xlu0 %v2020, 127
    %v3736 = vpop.permute.xlu0 %3735
    %3737 = vrot.lane.b32.xlu0 %v2021, 127
    %v3738 = vpop.permute.xlu0 %3737
    %vm3739 = vcmask 1039360
    %v3740 = vsel %vm3739, %v3728, %v3730
    %v3741 = vsel %vm3739, %v3730, %v3732
    %v3742 = vsel %vm3739, %v3734, %v3736
    %v3743 = vsel %vm3739, %v3736, %v3738
    %v3750 = vadd.f32 %v1674, %v3740
    %v3751 = vadd.f32 %v1675, %v3741
    %v3752 = vadd.f32 %v1676, %v3732
    %v3753 = vadd.f32 %v1677, %v3742
    %v3754 = vadd.f32 %v1678, %v3743
    %v3755 = vadd.f32 %v1679, %v3738
    %3762 = vrot.lane.b32.xlu0 %v2689, 127
    %v3763 = vpop.permute.xlu0 %3762
    %3764 = vrot.lane.b32.xlu0 %v2690, 127
    %v3765 = vpop.permute.xlu0 %3764
    %3766 = vrot.lane.b32.xlu0 %v2691, 127
    %v3767 = vpop.permute.xlu0 %3766
    %3768 = vrot.lane.b32.xlu0 %v2692, 127
    %v3769 = vpop.permute.xlu0 %3768
    %3770 = vrot.lane.b32.xlu0 %v2693, 127
    %v3771 = vpop.permute.xlu0 %3770
    %3772 = vrot.lane.b32.xlu0 %v2694, 127
    %v3773 = vpop.permute.xlu0 %3772
    %v3774 = vsel %vm3739, %v3763, %v3765
    %v3775 = vsel %vm3739, %v3765, %v3767
    %v3776 = vsel %vm3739, %v3769, %v3771
    %v3777 = vsel %vm3739, %v3771, %v3773
    %v3784 = vadd.f32 %v2358, %v3774
    %v3785 = vadd.f32 %v2359, %v3775
    %v3786 = vadd.f32 %v2360, %v3767
    %v3787 = vadd.f32 %v2361, %v3776
    %v3788 = vadd.f32 %v2362, %v3777
    %v3789 = vadd.f32 %v2363, %v3773
    %3796 = vrot.lane.b32.xlu0 %v3784, 126
    %v3797 = vpop.permute.xlu0 %3796
    %3798 = vrot.lane.b32.xlu0 %v3785, 126
    %v3799 = vpop.permute.xlu0 %3798
    %3800 = vrot.lane.b32.xlu0 %v3786, 126
    %v3801 = vpop.permute.xlu0 %3800
    %3802 = vrot.lane.b32.xlu0 %v3787, 126
    %v3803 = vpop.permute.xlu0 %3802
    %3804 = vrot.lane.b32.xlu0 %v3788, 126
    %v3805 = vpop.permute.xlu0 %3804
    %3806 = vrot.lane.b32.xlu0 %v3789, 126
    %v3807 = vpop.permute.xlu0 %3806
    %vm3808 = vcmask 1031168
    %v3809 = vsel %vm3808, %v3797, %v3799
    %v3810 = vsel %vm3808, %v3799, %v3801
    %v3811 = vsel %vm3808, %v3803, %v3805
    %v3812 = vsel %vm3808, %v3805, %v3807
    %v3819 = vadd.f32 %v3750, %v3809
    %v3820 = vadd.f32 %v3751, %v3810
    %v3821 = vadd.f32 %v3752, %v3801
    %v3822 = vadd.f32 %v3753, %v3811
    %v3823 = vadd.f32 %v3754, %v3812
    %v3824 = vadd.f32 %v3755, %v3807
    %3831 = vrot.lane.b32.xlu0 %v3373, 127
    %v3832 = vpop.permute.xlu0 %3831
    %3833 = vrot.lane.b32.xlu0 %v3374, 127
    %v3834 = vpop.permute.xlu0 %3833
    %3835 = vrot.lane.b32.xlu0 %v3375, 127
    %v3836 = vpop.permute.xlu0 %3835
    %3837 = vrot.lane.b32.xlu0 %v3376, 127
    %v3838 = vpop.permute.xlu0 %3837
    %3839 = vrot.lane.b32.xlu0 %v3377, 127
    %v3840 = vpop.permute.xlu0 %3839
    %3841 = vrot.lane.b32.xlu0 %v3378, 127
    %v3842 = vpop.permute.xlu0 %3841
    %v3843 = vsel %vm3739, %v3832, %v3834
    %v3844 = vsel %vm3739, %v3834, %v3836
    %v3845 = vsel %vm3739, %v3838, %v3840
    %v3846 = vsel %vm3739, %v3840, %v3842
    %v3853 = vadd.f32 %v3031, %v3843
    %v3854 = vadd.f32 %v3032, %v3844
    %v3855 = vadd.f32 %v3033, %v3836
    %v3856 = vadd.f32 %v3034, %v3845
    %v3857 = vadd.f32 %v3035, %v3846
    %v3858 = vadd.f32 %v3036, %v3842
    %3865 = vrot.lane.b32.xlu0 %v3715, 126
    %v3866 = vpop.permute.xlu0 %3865
    %3867 = vrot.lane.b32.xlu0 %v3716, 126
    %v3868 = vpop.permute.xlu0 %3867
    %3869 = vrot.lane.b32.xlu0 %v3717, 126
    %v3870 = vpop.permute.xlu0 %3869
    %3871 = vrot.lane.b32.xlu0 %v3718, 126
    %v3872 = vpop.permute.xlu0 %3871
    %3873 = vrot.lane.b32.xlu0 %v3719, 126
    %v3874 = vpop.permute.xlu0 %3873
    %3875 = vrot.lane.b32.xlu0 %v3720, 126
    %v3876 = vpop.permute.xlu0 %3875
    %v3877 = vsel %vm3808, %v3866, %v3868
    %v3878 = vsel %vm3808, %v3868, %v3870
    %v3879 = vsel %vm3808, %v3872, %v3874
    %v3880 = vsel %vm3808, %v3874, %v3876
    %v3887 = vadd.f32 %v3853, %v3877
    %v3888 = vadd.f32 %v3854, %v3878
    %v3889 = vadd.f32 %v3855, %v3870
    %v3890 = vadd.f32 %v3856, %v3879
    %v3891 = vadd.f32 %v3857, %v3880
    %v3892 = vadd.f32 %v3858, %v3876
    %3899 = vrot.lane.b32.xlu0 %v3887, 124
    %v3900 = vpop.permute.xlu0 %3899
    %3901 = vrot.lane.b32.xlu0 %v3888, 124
    %v3902 = vpop.permute.xlu0 %3901
    %3903 = vrot.lane.b32.xlu0 %v3889, 124
    %v3904 = vpop.permute.xlu0 %3903
    %3905 = vrot.lane.b32.xlu0 %v3890, 124
    %v3906 = vpop.permute.xlu0 %3905
    %3907 = vrot.lane.b32.xlu0 %v3891, 124
    %v3908 = vpop.permute.xlu0 %3907
    %3909 = vrot.lane.b32.xlu0 %v3892, 124
    %v3910 = vpop.permute.xlu0 %3909
    %vm3911 = vcmask 1014784
    %v3912 = vsel %vm3911, %v3900, %v3902
    %v3913 = vsel %vm3911, %v3902, %v3904
    %v3914 = vsel %vm3911, %v3906, %v3908
    %v3915 = vsel %vm3911, %v3908, %v3910
    %v3922 = vadd.f32 %v3819, %v3912
    %v3923 = vadd.f32 %v3820, %v3913
    %v3924 = vadd.f32 %v3821, %v3904
    %v3925 = vadd.f32 %v3822, %v3914
    %v3926 = vadd.f32 %v3823, %v3915
    %v3927 = vadd.f32 %v3824, %v3910
    %v3928 = vadd.f32 %v3922, %v3925
    %v3929 = vadd.f32 %v3923, %v3926
    %v3930 = vadd.f32 %v3924, %v3927
    %s3931 = sld [smem:[#allocation8]]
    %v3932 = vstv %s3931
    %v3933 = vmul.f32 %v3928, %v3932
    %v3934 = vmul.f32 %v3929, %v3932
    %v3935 = vmul.f32 %v3930, %v3932
    %s3936 = sld [smem:[#allocation8 + $0x1]]
    %v3937 = vstv %s3936
    %v3938 = vadd.f32 %v3933, %v3937
    %v3939 = vadd.f32 %v3934, %v3937
    %v3940 = vadd.f32 %v3935, %v3937
    %v3941 = vxor.u32 %v3938, 2147483648
    %v3942 = vxor.u32 %v3939, 2147483648
    %v3943 = vxor.u32 %v3940, 2147483648
    %v3944 = vmul.f32 %v3941, 1.442695
    %v3945 = vpow.pop %v3944
    %v3946 = vmul.f32 %v3942, 1.442695
    %v3947 = vpow.pop %v3946
    %v3948 = vmul.f32 %v3943, 1.442695
    %v3949 = vpow.pop %v3948
    %v3950 = vadd.f32 %v3945, 1.0
    %v3951 = vadd.f32 %v3947, 1.0
    %v3952 = vadd.f32 %v3949, 1.0
    %v3953 = vrcp.pop %v3950
    %v3954 = vmul.f32 %v3950, %v3953
    %v3955 = vsub.f32 1.0, %v3954
    %v3956 = vmul.f32 %v3953, %v3955
    %v3957 = vadd.f32 %v3953, %v3956
    %vm3958 = vweird.f32 %v3950
    %vm3959 = vweird.f32 %v3953
    %vm3960 = vmor %vm3958, %vm3959
    %v3961 = vsel %vm3960, %v3953, %v3957
    %v3962 = vand.u32 2147483647, %v3950
    %vm3963 = vcmp.eq.f32.partialorder %v3962, 8.507059e+37
    %v3964 = vand.u32 %v3950, 2147483648
    %v3965 = vor.u32 1.1754944e-38, %v3964
    %v3966 = vsel %vm3963, %v3965, %v3961
    %v3967 = vmul.f32 1.0, %v3966
    %v3968 = vrcp.pop %v3951
    %v3969 = vmul.f32 %v3951, %v3968
    %v3970 = vsub.f32 1.0, %v3969
    %v3971 = vmul.f32 %v3968, %v3970
    %v3972 = vadd.f32 %v3968, %v3971
    %vm3973 = vweird.f32 %v3951
    %vm3974 = vweird.f32 %v3968
    %vm3975 = vmor %vm3973, %vm3974
    %v3976 = vsel %vm3975, %v3968, %v3972
    %v3977 = vand.u32 2147483647, %v3951
    %vm3978 = vcmp.eq.f32.partialorder %v3977, 8.507059e+37
    %v3979 = vand.u32 %v3951, 2147483648
    %v3980 = vor.u32 1.1754944e-38, %v3979
    %v3981 = vsel %vm3978, %v3980, %v3976
    %v3982 = vmul.f32 1.0, %v3981
    %v3983 = vrcp.pop %v3952
    %v3984 = vmul.f32 %v3952, %v3983
    %v3985 = vsub.f32 1.0, %v3984
    %v3986 = vmul.f32 %v3983, %v3985
    %v3987 = vadd.f32 %v3983, %v3986
    %vm3988 = vweird.f32 %v3952
    %vm3989 = vweird.f32 %v3983
    %vm3990 = vmor %vm3988, %vm3989
    %v3991 = vsel %vm3990, %v3983, %v3987
    %v3992 = vand.u32 2147483647, %v3952
    %vm3993 = vcmp.eq.f32.partialorder %v3992, 8.507059e+37
    %v3994 = vand.u32 %v3952, 2147483648
    %v3995 = vor.u32 1.1754944e-38, %v3994
    %v3996 = vsel %vm3993, %v3995, %v3991
    %v3997 = vmul.f32 1.0, %v3996
    %v4001 = vrot.slane %v3982, 7
    %v4002 = vrot.slane %v3997, 6
    %vm4003 = vcmask 1040384
    %v4004 = vsel %vm4003, %v3967, %v4001
    %vm4005 = vcmask 1041408
    %v4006 = vsel %vm4005, %v4004, %v4002
    %v4007 = vsel %vm462, %v3967, %v4001
    %vm4008 = vcmask 1042433
    %v4009 = vsel %vm4008, %v4007, %v4002
    %v4010 = vrot.slane %v4009, 1
    %v4011 = vsel %vm464, %v3967, %v4001
    %vm4012 = vcmask 1043458
    %v4013 = vsel %vm4012, %v4011, %v4002
    %v4014 = vrot.slane %v4013, 2
    %v4015 = vsel %vm466, %v3967, %v4001
    %vm4016 = vcmask 1044483
    %v4017 = vsel %vm4016, %v4015, %v4002
    %v4018 = vrot.slane %v4017, 3
    %v4019 = vsel %vm468, %v3967, %v4001
    %vm4020 = vcmask 1045508
    %v4021 = vsel %vm4020, %v4019, %v4002
    %v4022 = vrot.slane %v4021, 4
    %v4023 = vsel %vm470, %v3967, %v4001
    %vm4024 = vcmask 1046533
    %v4025 = vsel %vm4024, %v4023, %v4002
    %v4026 = vrot.slane %v4025, 5
    %v4027 = vsel %vm472, %v3967, %v4001
    %vm4028 = vcmask 1045504
    %v4029 = vsel %vm4028, %v4002, %v4027
    %v4030 = vrot.slane %v4029, 6
    %vm4031 = vcmask 1046528
    %v4032 = vsel %vm4031, %v4001, %v3967
    %vm4033 = vcmask 1046529
    %v4034 = vsel %vm4033, %v4002, %v4032
    %v4035 = vrot.slane %v4034, 7
    %v4036 = vperm.slane %v4006, 0
    %v4037 = vperm.slane %v4006, 1
    %v4038 = vperm.slane %v4006, 2
    %v4039 = vperm.slane %v4010, 0
    %v4040 = vperm.slane %v4010, 1
    %v4041 = vperm.slane %v4010, 2
    %v4042 = vperm.slane %v4014, 0
    %v4043 = vperm.slane %v4014, 1
    %v4044 = vperm.slane %v4014, 2
    %v4045 = vperm.slane %v4018, 0
    %v4046 = vperm.slane %v4018, 1
    %v4047 = vperm.slane %v4018, 2
    %v4048 = vperm.slane %v4022, 0
    %v4049 = vperm.slane %v4022, 1
    %v4050 = vperm.slane %v4022, 2
    %v4051 = vperm.slane %v4026, 0
    %v4052 = vperm.slane %v4026, 1
    %v4053 = vperm.slane %v4026, 2
    %v4054 = vperm.slane %v4030, 0
    %v4055 = vperm.slane %v4030, 1
    %v4056 = vperm.slane %v4030, 2
    %v4057 = vperm.slane %v4035, 0
    %v4058 = vperm.slane %v4035, 1
    %v4059 = vperm.slane %v4035, 2
    %4060 = vrot.lane.b32.xlu0 %v4036, 51
    %v4061 = vpop.permute.xlu0 %4060
    %4062 = vrot.lane.b32.xlu0 %v4037, 51
    %v4063 = vpop.permute.xlu0 %4062
    %4064 = vrot.lane.b32.xlu0 %v4038, 51
    %v4065 = vpop.permute.xlu0 %4064
    %4066 = vrot.lane.b32.xlu0 %v4039, 51
    %v4067 = vpop.permute.xlu0 %4066
    %4068 = vrot.lane.b32.xlu0 %v4040, 51
    %v4069 = vpop.permute.xlu0 %4068
    %4070 = vrot.lane.b32.xlu0 %v4041, 51
    %v4071 = vpop.permute.xlu0 %4070
    %4072 = vrot.lane.b32.xlu0 %v4042, 51
    %v4073 = vpop.permute.xlu0 %4072
    %4074 = vrot.lane.b32.xlu0 %v4043, 51
    %v4075 = vpop.permute.xlu0 %4074
    %4076 = vrot.lane.b32.xlu0 %v4044, 51
    %v4077 = vpop.permute.xlu0 %4076
    %4078 = vrot.lane.b32.xlu0 %v4045, 51
    %v4079 = vpop.permute.xlu0 %4078
    %4080 = vrot.lane.b32.xlu0 %v4046, 51
    %v4081 = vpop.permute.xlu0 %4080
    %4082 = vrot.lane.b32.xlu0 %v4047, 51
    %v4083 = vpop.permute.xlu0 %4082
    %4084 = vrot.lane.b32.xlu0 %v4048, 51
    %v4085 = vpop.permute.xlu0 %4084
    %4086 = vrot.lane.b32.xlu0 %v4049, 51
    %v4087 = vpop.permute.xlu0 %4086
    %4088 = vrot.lane.b32.xlu0 %v4050, 51
    %v4089 = vpop.permute.xlu0 %4088
    %4090 = vrot.lane.b32.xlu0 %v4051, 51
    %v4091 = vpop.permute.xlu0 %4090
    %4092 = vrot.lane.b32.xlu0 %v4052, 51
    %v4093 = vpop.permute.xlu0 %4092
    %4094 = vrot.lane.b32.xlu0 %v4053, 51
    %v4095 = vpop.permute.xlu0 %4094
    %4096 = vrot.lane.b32.xlu0 %v4054, 51
    %v4097 = vpop.permute.xlu0 %4096
    %4098 = vrot.lane.b32.xlu0 %v4055, 51
    %v4099 = vpop.permute.xlu0 %4098
    %4100 = vrot.lane.b32.xlu0 %v4056, 51
    %v4101 = vpop.permute.xlu0 %4100
    %4102 = vrot.lane.b32.xlu0 %v4057, 51
    %v4103 = vpop.permute.xlu0 %4102
    %4104 = vrot.lane.b32.xlu0 %v4058, 51
    %v4105 = vpop.permute.xlu0 %4104
    %4106 = vrot.lane.b32.xlu0 %v4059, 51
    %v4107 = vpop.permute.xlu0 %4106
    %vm4108 = vcmask 416768
    %v4109 = vsel %vm4108, %v4061, %v4063
    %v4110 = vsel %vm4108, %v4063, %v4065
    %v4111 = vsel %vm4108, %v4067, %v4069
    %v4112 = vsel %vm4108, %v4069, %v4071
    %v4113 = vsel %vm4108, %v4073, %v4075
    %v4114 = vsel %vm4108, %v4075, %v4077
    %v4115 = vsel %vm4108, %v4079, %v4081
    %v4116 = vsel %vm4108, %v4081, %v4083
    %v4117 = vsel %vm4108, %v4085, %v4087
    %v4118 = vsel %vm4108, %v4087, %v4089
    %v4119 = vsel %vm4108, %v4091, %v4093
    %v4120 = vsel %vm4108, %v4093, %v4095
    %v4121 = vsel %vm4108, %v4097, %v4099
    %v4122 = vsel %vm4108, %v4099, %v4101
    %v4123 = vsel %vm4108, %v4103, %v4105
    %v4124 = vsel %vm4108, %v4105, %v4107
    %v4141 = vmul.f32 %v864, %v4109
    %v4142 = vmul.f32 %v865, %v4110
    %v4143 = vmul.f32 %v866, %v4109
    %v4144 = vmul.f32 %v867, %v4110
    %v4145 = vmul.f32 %v868, %v4109
    %v4146 = vmul.f32 %v869, %v4110
    %v4147 = vmul.f32 %v870, %v4109
    %v4148 = vmul.f32 %v871, %v4110
    %v4149 = vmul.f32 %v872, %v4111
    %v4150 = vmul.f32 %v873, %v4112
    %v4151 = vmul.f32 %v874, %v4111
    %v4152 = vmul.f32 %v875, %v4112
    %v4153 = vmul.f32 %v876, %v4111
    %v4154 = vmul.f32 %v877, %v4112
    %v4155 = vmul.f32 %v878, %v4111
    %v4156 = vmul.f32 %v879, %v4112
    %v4157 = vmul.f32 %v880, %v4113
    %v4158 = vmul.f32 %v881, %v4114
    %v4159 = vmul.f32 %v882, %v4113
    %v4160 = vmul.f32 %v883, %v4114
    %v4161 = vmul.f32 %v884, %v4113
    %v4162 = vmul.f32 %v885, %v4114
    %v4163 = vmul.f32 %v886, %v4113
    %v4164 = vmul.f32 %v887, %v4114
    %v4165 = vmul.f32 %v888, %v4115
    %v4166 = vmul.f32 %v889, %v4116
    %v4167 = vmul.f32 %v890, %v4115
    %v4168 = vmul.f32 %v891, %v4116
    %v4169 = vmul.f32 %v892, %v4115
    %v4170 = vmul.f32 %v893, %v4116
    %v4171 = vmul.f32 %v894, %v4115
    %v4172 = vmul.f32 %v895, %v4116
    %v4173 = vmul.f32 %v896, %v4117
    %v4174 = vmul.f32 %v897, %v4118
    %v4175 = vmul.f32 %v898, %v4117
    %v4176 = vmul.f32 %v899, %v4118
    %v4177 = vmul.f32 %v900, %v4117
    %v4178 = vmul.f32 %v901, %v4118
    %v4179 = vmul.f32 %v902, %v4117
    %v4180 = vmul.f32 %v903, %v4118
    %v4181 = vmul.f32 %v904, %v4119
    %v4182 = vmul.f32 %v905, %v4120
    %v4183 = vmul.f32 %v906, %v4119
    %v4184 = vmul.f32 %v907, %v4120
    %v4185 = vmul.f32 %v908, %v4119
    %v4186 = vmul.f32 %v909, %v4120
    %v4187 = vmul.f32 %v910, %v4119
    %v4188 = vmul.f32 %v911, %v4120
    %v4189 = vmul.f32 %v912, %v4121
    %v4190 = vmul.f32 %v913, %v4122
    %v4191 = vmul.f32 %v914, %v4121
    %v4192 = vmul.f32 %v915, %v4122
    %v4193 = vmul.f32 %v916, %v4121
    %v4194 = vmul.f32 %v917, %v4122
    %v4195 = vmul.f32 %v918, %v4121
    %v4196 = vmul.f32 %v919, %v4122
    %v4197 = vmul.f32 %v920, %v4123
    %v4198 = vmul.f32 %v921, %v4124
    %v4199 = vmul.f32 %v922, %v4123
    %v4200 = vmul.f32 %v923, %v4124
    %v4201 = vmul.f32 %v924, %v4123
    %v4202 = vmul.f32 %v925, %v4124
    %v4203 = vmul.f32 %v926, %v4123
    %v4204 = vmul.f32 %v927, %v4124
    %4205 = vst [vmem:[#allocation10] sm:$0xff] %v4141
    %4206 = vst [vmem:[#allocation10 + $0x8] sm:$0xff] %v4142
    %4207 = vst [vmem:[#allocation10 + $0x10] sm:$0xff] %v4143
    %4208 = vst [vmem:[#allocation10 + $0x18] sm:$0xff] %v4144
    %4209 = vst [vmem:[#allocation10 + $0x20] sm:$0xff] %v4145
    %4210 = vst [vmem:[#allocation10 + $0x28] sm:$0xff] %v4146
    %4211 = vst [vmem:[#allocation10 + $0x30] sm:$0xff] %v4147
    %4212 = vst [vmem:[#allocation10 + $0x38] sm:$0xff] %v4148
    %4213 = vst [vmem:[#allocation10 + $0x40] sm:$0xff] %v4149
    %4214 = vst [vmem:[#allocation10 + $0x48] sm:$0xff] %v4150
    %4215 = vst [vmem:[#allocation10 + $0x50] sm:$0xff] %v4151
    %4216 = vst [vmem:[#allocation10 + $0x58] sm:$0xff] %v4152
    %4217 = vst [vmem:[#allocation10 + $0x60] sm:$0xff] %v4153
    %4218 = vst [vmem:[#allocation10 + $0x68] sm:$0xff] %v4154
    %4219 = vst [vmem:[#allocation10 + $0x70] sm:$0xff] %v4155
    %4220 = vst [vmem:[#allocation10 + $0x78] sm:$0xff] %v4156
    %4221 = vst [vmem:[#allocation10 + $0x80] sm:$0xff] %v4157
    %4222 = vst [vmem:[#allocation10 + $0x88] sm:$0xff] %v4158
    %4223 = vst [vmem:[#allocation10 + $0x90] sm:$0xff] %v4159
    %4224 = vst [vmem:[#allocation10 + $0x98] sm:$0xff] %v4160
    %4225 = vst [vmem:[#allocation10 + $0xa0] sm:$0xff] %v4161
    %4226 = vst [vmem:[#allocation10 + $0xa8] sm:$0xff] %v4162
    %4227 = vst [vmem:[#allocation10 + $0xb0] sm:$0xff] %v4163
    %4228 = vst [vmem:[#allocation10 + $0xb8] sm:$0xff] %v4164
    %4229 = vst [vmem:[#allocation10 + $0xc0] sm:$0xff] %v4165
    %4230 = vst [vmem:[#allocation10 + $0xc8] sm:$0xff] %v4166
    %4231 = vst [vmem:[#allocation10 + $0xd0] sm:$0xff] %v4167
    %4232 = vst [vmem:[#allocation10 + $0xd8] sm:$0xff] %v4168
    %4233 = vst [vmem:[#allocation10 + $0xe0] sm:$0xff] %v4169
    %4234 = vst [vmem:[#allocation10 + $0xe8] sm:$0xff] %v4170
    %4235 = vst [vmem:[#allocation10 + $0xf0] sm:$0xff] %v4171
    %4236 = vst [vmem:[#allocation10 + $0xf8] sm:$0xff] %v4172
    %4237 = vst [vmem:[#allocation10 + $0x100] sm:$0xff] %v4173
    %4238 = vst [vmem:[#allocation10 + $0x108] sm:$0xff] %v4174
    %4239 = vst [vmem:[#allocation10 + $0x110] sm:$0xff] %v4175
    %4240 = vst [vmem:[#allocation10 + $0x118] sm:$0xff] %v4176
    %4241 = vst [vmem:[#allocation10 + $0x120] sm:$0xff] %v4177
    %4242 = vst [vmem:[#allocation10 + $0x128] sm:$0xff] %v4178
    %4243 = vst [vmem:[#allocation10 + $0x130] sm:$0xff] %v4179
    %4244 = vst [vmem:[#allocation10 + $0x138] sm:$0xff] %v4180
    %4245 = vst [vmem:[#allocation10 + $0x140] sm:$0xff] %v4181
    %4246 = vst [vmem:[#allocation10 + $0x148] sm:$0xff] %v4182
    %4247 = vst [vmem:[#allocation10 + $0x150] sm:$0xff] %v4183
    %4248 = vst [vmem:[#allocation10 + $0x158] sm:$0xff] %v4184
    %4249 = vst [vmem:[#allocation10 + $0x160] sm:$0xff] %v4185
    %4250 = vst [vmem:[#allocation10 + $0x168] sm:$0xff] %v4186
    %4251 = vst [vmem:[#allocation10 + $0x170] sm:$0xff] %v4187
    %4252 = vst [vmem:[#allocation10 + $0x178] sm:$0xff] %v4188
    %4253 = vst [vmem:[#allocation10 + $0x180] sm:$0xff] %v4189
    %4254 = vst [vmem:[#allocation10 + $0x188] sm:$0xff] %v4190
    %4255 = vst [vmem:[#allocation10 + $0x190] sm:$0xff] %v4191
    %4256 = vst [vmem:[#allocation10 + $0x198] sm:$0xff] %v4192
    %4257 = vst [vmem:[#allocation10 + $0x1a0] sm:$0xff] %v4193
    %4258 = vst [vmem:[#allocation10 + $0x1a8] sm:$0xff] %v4194
    %4259 = vst [vmem:[#allocation10 + $0x1b0] sm:$0xff] %v4195
    %4260 = vst [vmem:[#allocation10 + $0x1b8] sm:$0xff] %v4196
    %4261 = vst [vmem:[#allocation10 + $0x1c0] sm:$0xff] %v4197
    %4262 = vst [vmem:[#allocation10 + $0x1c8] sm:$0xff] %v4198
    %4263 = vst [vmem:[#allocation10 + $0x1d0] sm:$0xff] %v4199
    %4264 = vst [vmem:[#allocation10 + $0x1d8] sm:$0xff] %v4200
    %4265 = vst [vmem:[#allocation10 + $0x1e0] sm:$0xff] %v4201
    %4266 = vst [vmem:[#allocation10 + $0x1e8] sm:$0xff] %v4202
    %4267 = vst [vmem:[#allocation10 + $0x1f0] sm:$0xff] %v4203
    %4268 = vst [vmem:[#allocation10 + $0x1f8] sm:$0xff] %v4204
    // Predicated region
    $region46: #{tpu_custom_call.1} parent=1 // pred_check
      _
    $region47: #{tpu_custom_call.1} parent=1 // pred_check_branch
      %4270 = sbr.rel (0) target = $region49
    $region48: #{tpu_custom_call.1} parent=1 // pred_region
      %4272 = vsyncadd [#allocation5], 0
      %s4273 = sshll.u32 [#allocation10], 4
      %s4274 = int_to_ptr.vmem [resolvable:$true] %s4273
      %s4275 = sshll.u32 %s8, 4
      %s4276 = int_to_ptr.hbm [resolvable:$true] %s4275
      %4281 = dma.vmem_to_hbm [thread:$0]  %s4274, 8192, %s4276, [#allocation5], 256, 256, 16
    $region49: #{tpu_custom_call.1} parent=1 // pred_fallthru
      _
    // Predicated region
    $region50: #{tpu_custom_call.1} parent=1 // pred_check
      _
    $region51: #{tpu_custom_call.1} parent=1 // pred_check_branch
      %4283 = sbr.rel (0) target = $region53
    $region52: #{tpu_custom_call.1} parent=1 // pred_region
      %4285 = dma.done [#allocation5], 8192
    $region53: #{tpu_custom_call.1} parent=1 // pred_fallthru
      _
    %4286 = vsyncpa [#allocation4], 1
    %4287 = vsyncpa [#allocation5], 1
    %4288 = vsyncpa [#allocation6], 1
    %4289 = vsyncpa [#allocation9], 1

</llo_original>
